<compile_context>
chip_gen: v7x
topology: tpu7x:2x2x1
jax: 0.10.0
libtpu: 0.0.40
codegen_flags: <defaults>
</compile_context>

<pallas_src>
import functools
import math

import jax
import jax.numpy as jnp
from jax.experimental import pallas as pl
from jax.experimental.pallas import tpu as pltpu

MATMUL_DTYPE = jnp.bfloat16   # MXU operand dtype; accumulation is always f32.
_ROW_TILE = 256               # target rows per grid step for M-tiled kernels


def _row_tile(m):
    """Full-array block when small (keeps (8,128)-rule via 'equal full dim'),
    otherwise a 256-row tile (multiple of 8) so the pipeline streams rows."""
    return m if m <= _ROW_TILE else _ROW_TILE


def _parallel(n=1):
    return pltpu.CompilerParams(dimension_semantics=("parallel",) * n)


def _bytes(*arrays):
    return int(sum(a.size * a.dtype.itemsize for a in arrays))


# ----------------------------- Pallas kernel bodies -----------------------------

def _layernorm(x, g, b):
    mean = jnp.mean(x, axis=-1, keepdims=True)
    var = jnp.mean(jnp.square(x - mean), axis=-1, keepdims=True)
    return (x - mean) * jax.lax.rsqrt(var + 1e-5) * g + b


def _linear_kernel(x_ref, w_ref, b_ref, o_ref):
    x = x_ref[...].astype(w_ref.dtype)
    y = jnp.dot(x, w_ref[...], preferred_element_type=jnp.float32) + b_ref[...]
    o_ref[...] = y.astype(o_ref.dtype)


def _block_kernel(x_ref, g1_ref, b1_ref, wqkv_ref, bqkv_ref,
                  wproj_ref, bproj_ref, g2_ref, b2_ref,
                  w1_ref, bb1_ref, w2_ref, bb2_ref, o_ref, *, num_heads):
    """One full pre-LN transformer block for one batch element.

    Intermediates (qkv slab, per-head scores, MLP hidden) live entirely in
    VMEM/vregs; only the (S, D) residual stream crosses the HBM boundary.
    """
    x = x_ref[0]                                           # (S, D) f32 residual

    # ---- pre-LN multi-head self-attention -------------------------------
    xn = _layernorm(x, g1_ref[...], b1_ref[...])
    qkv = jnp.dot(xn.astype(wqkv_ref.dtype), wqkv_ref[...],
                  preferred_element_type=jnp.float32) + bqkv_ref[...]
    qkv = qkv.astype(MATMUL_DTYPE)                         # (S, 3*D) lane-dense
    s_len, three_d = qkv.shape
    d = three_d // 3
    dh = d // num_heads
    scale = 1.0 / math.sqrt(dh)
    outs = []
    for h in range(num_heads):                             # static, unrolled
        q = qkv[:, h * dh:(h + 1) * dh]
        k = qkv[:, d + h * dh:d + (h + 1) * dh]
        v = qkv[:, 2 * d + h * dh:2 * d + (h + 1) * dh]
        s = jax.lax.dot_general(q, k, (((1,), (1,)), ((), ())),
                                preferred_element_type=jnp.float32) * scale
        m = jnp.max(s, axis=-1, keepdims=True)
        e = jnp.exp(s - m)
        denom = jnp.sum(e, axis=-1, keepdims=True)
        p = e * pl.reciprocal(denom, approx=True)          # EUP slot
        outs.append(jnp.dot(p.astype(v.dtype), v,
                            preferred_element_type=jnp.float32))
    attn = jnp.concatenate(outs, axis=-1).astype(MATMUL_DTYPE)   # (S, D)
    y = jnp.dot(attn, wproj_ref[...],
                preferred_element_type=jnp.float32) + bproj_ref[...]
    x = x + y                                              # residual 1 (f32)

    # ---- pre-LN GELU MLP --------------------------------------------------
    xn2 = _layernorm(x, g2_ref[...], b2_ref[...])
    h1 = jnp.dot(xn2.astype(w1_ref.dtype), w1_ref[...],
                 preferred_element_type=jnp.float32) + bb1_ref[...]
    # TODO(synk): PyTorch nn.GELU defaults to the exact erf form; the tanh
    # approximation is used here (f32 VPU/EUP path) for robust TPU lowering.
    h1 = jax.nn.gelu(h1, approximate=True)
    y2 = jnp.dot(h1.astype(w2_ref.dtype), w2_ref[...],
                 preferred_element_type=jnp.float32) + bb2_ref[...]
    o_ref[0] = (x + y2).astype(o_ref.dtype)                # residual 2


# ------------------------------- kernel wrappers -------------------------------

def pallas_linear(x2d, w, b, out_dtype=jnp.float32):
    """y = x2d @ w + b, row-tiled; weight/bias blocks stay VMEM-resident."""
    M, K = x2d.shape
    N = w.shape[1]
    tm = _row_tile(M)
    cost = pl.CostEstimate(
        flops=2 * M * K * N, transcendentals=0,
        bytes_accessed=_bytes(x2d, w, b) + M * N * jnp.dtype(out_dtype).itemsize)
    return pl.pallas_call(
        _linear_kernel,
        grid=(pl.cdiv(M, tm),),
        in_specs=[
            pl.BlockSpec((tm, K), lambda i: (i, 0)),
            pl.BlockSpec((K, N), lambda i: (0, 0)),
            pl.BlockSpec((1, N), lambda i: (0, 0)),
        ],
        out_specs=pl.BlockSpec((tm, N), lambda i: (i, 0)),
        out_shape=jax.ShapeDtypeStruct((M, N), out_dtype),
        compiler_params=_parallel(1),
        cost_estimate=cost,
    )(x2d, w, b.reshape(1, N))


def pallas_transformer_block(x, p, num_heads):
    """x: (B, S, D) f32 -> (B, S, D) f32; one fused kernel per batch element."""
    B, S, D = x.shape
    Dff = p["fc1_w"].shape[1]
    flops = B * (2 * S * D * 3 * D        # QKV projection
                 + 4 * S * S * D          # QK^T and PV across all heads
                 + 2 * S * D * D          # output projection
                 + 4 * S * D * Dff        # MLP
                 + 16 * S * D)            # layernorms / residuals
    trans = B * (num_heads * S * S + S * Dff)
    weight_bytes = _bytes(p["qkv_w"], p["proj_w"], p["fc1_w"], p["fc2_w"])
    cost = pl.CostEstimate(flops=flops, transcendentals=trans,
                           bytes_accessed=2 * _bytes(x) + weight_bytes)
    const2 = lambda b: (0, 0)             # VMEM-resident weight / bias blocks
    return pl.pallas_call(
        functools.partial(_block_kernel, num_heads=num_heads),
        grid=(B,),
        in_specs=[
            pl.BlockSpec((1, S, D), lambda b: (b, 0, 0)),   # residual stream
            pl.BlockSpec((1, D), const2),                   # ln1 gamma
            pl.BlockSpec((1, D), const2),                   # ln1 beta
            pl.BlockSpec((D, 3 * D), const2),               # qkv weight
            pl.BlockSpec((1, 3 * D), const2),               # qkv bias
            pl.BlockSpec((D, D), const2),                   # proj weight
            pl.BlockSpec((1, D), const2),                   # proj bias
            pl.BlockSpec((1, D), const2),                   # ln2 gamma
            pl.BlockSpec((1, D), const2),                   # ln2 beta
            pl.BlockSpec((D, Dff), const2),                 # fc1 weight
            pl.BlockSpec((1, Dff), const2),                 # fc1 bias
            pl.BlockSpec((Dff, D), const2),                 # fc2 weight
            pl.BlockSpec((1, D), const2),                   # fc2 bias
        ],
        out_specs=pl.BlockSpec((1, S, D), lambda b: (b, 0, 0)),
        out_shape=jax.ShapeDtypeStruct((B, S, D), jnp.float32),
        compiler_params=_parallel(1),
        cost_estimate=cost,
    )(x,
      p["ln1_g"].reshape(1, D), p["ln1_b"].reshape(1, D),
      p["qkv_w"], p["qkv_b"].reshape(1, 3 * D),
      p["proj_w"], p["proj_b"].reshape(1, D),
      p["ln2_g"].reshape(1, D), p["ln2_b"].reshape(1, D),
      p["fc1_w"], p["fc1_b"].reshape(1, Dff),
      p["fc2_w"], p["fc2_b"].reshape(1, D))


def run_transformer(x, blocks, num_heads):
    for p in blocks:
        x = pallas_transformer_block(x, p, num_heads)
    return x


# -------------------------------- DenoMAE model ---------------------------------

def patchify(x, p):
    """NCHW -> (B, n_patches, C*p*p), (C, kh, kw) order (= Conv2d weight order)."""
    B, C, H, W = x.shape
    hp, wp = H // p, W // p
    x = x.reshape(B, C, hp, p, wp, p)
    x = x.transpose(0, 2, 4, 1, 3, 5)  # (B, hp, wp, C, p, p)
    return x.reshape(B, hp * wp, C * p * p)


def random_masking(x, mask_ratio, key):
    # TODO(synk): argsort-based random shuffle has no clean Pallas equivalent;
    # done in plain JAX (data prep, not the compute hot path).
    N, L, D = x.shape
    len_keep = int(L * (1 - mask_ratio))
    noise = jax.random.uniform(key, (N, L))
    ids_shuffle = jnp.argsort(noise, axis=1)
    ids_restore = jnp.argsort(ids_shuffle, axis=1)
    ids_keep = ids_shuffle[:, :len_keep]
    x_masked = jnp.take_along_axis(x, ids_keep[:, :, None], axis=1)
    mask = jnp.ones((N, L), dtype=jnp.float32)
    mask = mask.at[:, :len_keep].set(0.0)
    mask = jnp.take_along_axis(mask, ids_restore, axis=1)
    return x_masked, mask, ids_restore


def _dense_init(key, shape, scale=0.02):
    return (scale * jax.random.normal(key, shape)).astype(MATMUL_DTYPE)


def init_block(key, D):
    ks = jax.random.split(key, 4)
    return dict(
        ln1_g=jnp.ones((D,), jnp.float32), ln1_b=jnp.zeros((D,), jnp.float32),
        qkv_w=_dense_init(ks[0], (D, 3 * D)), qkv_b=jnp.zeros((3 * D,), jnp.float32),
        proj_w=_dense_init(ks[1], (D, D)), proj_b=jnp.zeros((D,), jnp.float32),
        ln2_g=jnp.ones((D,), jnp.float32), ln2_b=jnp.zeros((D,), jnp.float32),
        fc1_w=_dense_init(ks[2], (D, 4 * D)), fc1_b=jnp.zeros((4 * D,), jnp.float32),
        fc2_w=_dense_init(ks[3], (4 * D, D)), fc2_b=jnp.zeros((D,), jnp.float32),
    )


def init_denomae(key, cfg):
    D = cfg["embed_dim"]
    P = cfg["patch_size"]
    C = cfg["in_chans"]
    M = cfg["num_modalities"]
    n_patches = (cfg["img_size"] // P) ** 2
    patch_dim = C * P * P

    k_pe, k_enc, k_dec, k_head = jax.random.split(key, 4)
    return dict(
        # cls_token / pos_embed initialized to zeros, matching the PyTorch init
        cls_token=jnp.zeros((1, 1, D), jnp.float32),
        pos_embed=jnp.zeros((1, n_patches + 1, D), jnp.float32),
        patch_embeds=[
            dict(w=_dense_init(jax.random.fold_in(k_pe, i), (patch_dim, D)),
                 b=jnp.zeros((D,), jnp.float32))
            for i in range(M)
        ],
        encoder=[init_block(jax.random.fold_in(k_enc, d), D)
                 for d in range(cfg["encoder_depth"])],
        decoders=[
            [init_block(jax.random.fold_in(jax.random.fold_in(k_dec, i), d), D)
             for d in range(cfg["decoder_depth"])]
            for i in range(M)
        ],
        modality_heads=[
            dict(w=_dense_init(jax.random.fold_in(k_head, i), (D, patch_dim)),
                 b=jnp.zeros((patch_dim,), jnp.float32))
            for i in range(M)
        ],
    )


def deno_mae_forward(params, inputs, mask_key, cfg):
    M = cfg["num_modalities"]
    P = cfg["patch_size"]
    C = cfg["in_chans"]
    D = cfg["embed_dim"]
    img = cfg["img_size"]
    num_heads = cfg["num_heads"]
    mask_ratio = cfg["mask_ratio"]
    n_patches = (img // P) ** 2
    assert len(inputs) == M

    masked_embeddings, masks, ids_restores = [], [], []
    for i, x in enumerate(inputs):
        B = x.shape[0]
        patches = patchify(x, P)                                   # (B, L, C*p*p)
        pe = params["patch_embeds"][i]
        emb = pallas_linear(patches.reshape(B * n_patches, -1), pe["w"], pe["b"])
        emb = emb.reshape(B, n_patches, D)
        emb = emb + params["pos_embed"][:, 1:, :]
        x_masked, mask, ids_restore = random_masking(
            emb, mask_ratio, jax.random.fold_in(mask_key, i))
        masked_embeddings.append(x_masked)
        masks.append(mask)
        ids_restores.append(ids_restore)

    x_masked = jnp.concatenate(masked_embeddings, axis=1)
    cls_token = params["cls_token"] + params["pos_embed"][:, :1, :]
    cls_tokens = jnp.broadcast_to(cls_token, (x_masked.shape[0], 1, D))
    x_masked = jnp.concatenate([cls_tokens, x_masked], axis=1)

    encoded = run_transformer(x_masked, params["encoder"], num_heads)

    decoded_outputs = []
    segment_length = (encoded.shape[1] - 1) // M
    for i in range(M):
        start = 1 + i * segment_length
        end = 1 + (i + 1) * segment_length
        decoded = run_transformer(encoded[:, start:end],
                                  params["decoders"][i], num_heads)
        decoded_outputs.append(decoded)

    reconstructions = []
    n_keep = int(n_patches * (1 - mask_ratio))
    for i, decoded in enumerate(decoded_outputs):
        B, S, _ = decoded.shape
        head = params["modality_heads"][i]
        rec = pallas_linear(decoded.reshape(B * S, D), head["w"], head["b"])
        # Same (P, P, C) reshape order as the reference's rec.reshape(B,-1,P,P,C).
        rec = rec.reshape(B, S, P, P, C)
        full_rec = jnp.zeros((B, n_patches, P, P, C), jnp.float32)
        full_rec = full_rec.at[:, :n_keep].set(rec)
        idx = ids_restores[i][:, :, None, None, None]
        full_rec = jnp.take_along_axis(full_rec, idx, axis=1)
        # NOTE: mirrors the reference exactly: permute(0,1,4,2,3).reshape(B,C,H,W),
        # i.e. a logical flatten of (B, L, C, P, P).  It does NOT re-assemble the
        # (hp, wp) patch grid -- that is the reference module's behavior and is
        # reproduced here bit-for-bit on purpose.
        full_rec = jnp.transpose(full_rec, (0, 1, 4, 2, 3)).reshape(B, C, img, img)
        reconstructions.append(full_rec)

    return reconstructions, masks


# ------------------------------------ main ---------------------------------------

if __name__ == "__main__":
    cfg = dict(
        num_modalities=2,
        img_size=16,
        patch_size=4,
        in_chans=3,
        mask_ratio=0.75,
        embed_dim=32,
        encoder_depth=2,
        decoder_depth=1,
        num_heads=4,
    )
    B = 2

    key = jax.random.PRNGKey(0)
    pkey, xkey, mkey = jax.random.split(key, 3)

    params = init_denomae(pkey, cfg)
    inputs = [
        jax.random.normal(
            jax.random.fold_in(xkey, i),
            (B, cfg["in_chans"], cfg["img_size"], cfg["img_size"]),
            dtype=jnp.float32,
        )
        for i in range(cfg["num_modalities"])
    ]

    fwd = jax.jit(functools.partial(deno_mae_forward, cfg=cfg))
    recons, masks = fwd(params, inputs, mkey)
    for r in recons:
        jax.block_until_ready(r)
    for m in masks:
        jax.block_until_ready(m)

    n_patches = (cfg["img_size"] // cfg["patch_size"]) ** 2
    assert len(recons) == cfg["num_modalities"]
    assert recons[0].shape == (B, cfg["in_chans"], cfg["img_size"], cfg["img_size"])
    assert masks[0].shape == (B, n_patches)
    assert all(jnp.isfinite(r).all() for r in recons)

    print("KERNEL_OK")
</pallas_src>

<mosaic_0001>
module attributes {stable_mosaic.version = 11 : i64} {
  func.func @_linear_kernel(%arg0: i32, %arg1: memref<32x48xf32, #tpu.memory_space<vmem>>, %arg2: memref<48x32xbf16, #tpu.memory_space<vmem>>, %arg3: memref<1x32xf32, #tpu.memory_space<vmem>>, %arg4: memref<32x32xf32, #tpu.memory_space<vmem>>) attributes {dimension_semantics = [#tpu.dimension_semantics<parallel>], iteration_bounds = array<i64: 1>, scalar_prefetch = 0 : i64, scratch_operands = 0 : i64, tpu.core_type = #tpu.core_type<tc>, window_params = [{transform_indices = @transform_0, window_bounds = array<i64: 32, 48>}, {pipeline_mode = #tpu.pipeline_mode<synchronous>, transform_indices = @transform_1, window_bounds = array<i64: 48, 32>}, {pipeline_mode = #tpu.pipeline_mode<synchronous>, transform_indices = @transform_2, window_bounds = array<i64: 1, 32>}, {transform_indices = @transform_3, window_bounds = array<i64: 32, 32>}]} {
    %c0 = arith.constant 0 : index
    %c0_0 = arith.constant 0 : index
    %0 = vector.load %arg1[%c0, %c0_0] : memref<32x48xf32, #tpu.memory_space<vmem>>, vector<32x48xf32>
    %1 = arith.truncf %0 : vector<32x48xf32> to vector<32x48xbf16>
    %c0_1 = arith.constant 0 : index
    %c0_2 = arith.constant 0 : index
    %2 = vector.load %arg2[%c0_1, %c0_2] : memref<48x32xbf16, #tpu.memory_space<vmem>>, vector<48x32xbf16>
    %cst = arith.constant dense<0.000000e+00> : vector<32x32xf32>
    %3 = tpu.matmul %1, %2, %cst {dimension_numbers = #tpu.dot_dimension_numbers<[1], [0], [0], [1], [0, 0, 1, 1], [], []>} : vector<32x48xbf16>, vector<48x32xbf16>, vector<32x32xf32> -> vector<32x32xf32>
    %c0_3 = arith.constant 0 : index
    %c0_4 = arith.constant 0 : index
    %4 = vector.load %arg3[%c0_3, %c0_4] : memref<1x32xf32, #tpu.memory_space<vmem>>, vector<1x32xf32>
    %5 = vector.broadcast %4 : vector<1x32xf32> to vector<32x32xf32>
    %6 = arith.addf %3, %5 : vector<32x32xf32>
    %c0_5 = arith.constant 0 : index
    %c0_6 = arith.constant 0 : index
    %7 = vector.load %arg4[%c0_5, %c0_6] : memref<32x32xf32, #tpu.memory_space<vmem>>, vector<32x32xf32>
    tpu.vector_store %arg4[%c0_5, %c0_6], %6 {strides = array<i32>} : memref<32x32xf32, #tpu.memory_space<vmem>>, vector<32x32xf32>,
    return
  }
  func.func @transform_0(%arg0: i32) -> (i32, i32) {
    %c0_i32 = arith.constant 0 : i32
    %c0_i32_0 = arith.constant 0 : i32
    return %arg0, %c0_i32 : i32, i32
  }
  func.func @transform_1(%arg0: i32) -> (i32, i32) {
    %c0_i32 = arith.constant 0 : i32
    %c0_i32_0 = arith.constant 0 : i32
    %c0_i32_1 = arith.constant 0 : i32
    return %c0_i32, %c0_i32_0 : i32, i32
  }
  func.func @transform_2(%arg0: i32) -> (i32, i32) {
    %c0_i32 = arith.constant 0 : i32
    %c0_i32_0 = arith.constant 0 : i32
    %c0_i32_1 = arith.constant 0 : i32
    return %c0_i32, %c0_i32_0 : i32, i32
  }
  func.func @transform_3(%arg0: i32) -> (i32, i32) {
    %c0_i32 = arith.constant 0 : i32
    %c0_i32_0 = arith.constant 0 : i32
    return %arg0, %c0_i32 : i32, i32
  }
}

module attributes {stable_mosaic.version = 11 : i64} {
  func.func @_block_kernel(%arg0: i32, %arg1: memref<1x9x32xf32, #tpu.memory_space<vmem>>, %arg2: memref<1x32xf32, #tpu.memory_space<vmem>>, %arg3: memref<1x32xf32, #tpu.memory_space<vmem>>, %arg4: memref<32x96xbf16, #tpu.memory_space<vmem>>, %arg5: memref<1x96xf32, #tpu.memory_space<vmem>>, %arg6: memref<32x32xbf16, #tpu.memory_space<vmem>>, %arg7: memref<1x32xf32, #tpu.memory_space<vmem>>, %arg8: memref<1x32xf32, #tpu.memory_space<vmem>>, %arg9: memref<1x32xf32, #tpu.memory_space<vmem>>, %arg10: memref<32x128xbf16, #tpu.memory_space<vmem>>, %arg11: memref<1x128xf32, #tpu.memory_space<vmem>>, %arg12: memref<128x32xbf16, #tpu.memory_space<vmem>>, %arg13: memref<1x32xf32, #tpu.memory_space<vmem>>, %arg14: memref<1x9x32xf32, #tpu.memory_space<vmem>>) attributes {dimension_semantics = [#tpu.dimension_semantics<parallel>], iteration_bounds = array<i64: 2>, scalar_prefetch = 0 : i64, scratch_operands = 0 : i64, tpu.core_type = #tpu.core_type<tc>, window_params = [{transform_indices = @transform_0, window_bounds = array<i64: 1, 9, 32>}, {pipeline_mode = #tpu.pipeline_mode<synchronous>, transform_indices = @transform_1, window_bounds = array<i64: 1, 32>}, {pipeline_mode = #tpu.pipeline_mode<synchronous>, transform_indices = @transform_2, window_bounds = array<i64: 1, 32>}, {pipeline_mode = #tpu.pipeline_mode<synchronous>, transform_indices = @transform_3, window_bounds = array<i64: 32, 96>}, {pipeline_mode = #tpu.pipeline_mode<synchronous>, transform_indices = @transform_4, window_bounds = array<i64: 1, 96>}, {pipeline_mode = #tpu.pipeline_mode<synchronous>, transform_indices = @transform_5, window_bounds = array<i64: 32, 32>}, {pipeline_mode = #tpu.pipeline_mode<synchronous>, transform_indices = @transform_6, window_bounds = array<i64: 1, 32>}, {pipeline_mode = #tpu.pipeline_mode<synchronous>, transform_indices = @transform_7, window_bounds = array<i64: 1, 32>}, {pipeline_mode = #tpu.pipeline_mode<synchronous>, transform_indices = @transform_8, window_bounds = array<i64: 1, 32>}, {pipeline_mode = #tpu.pipeline_mode<synchronous>, transform_indices = @transform_9, window_bounds = array<i64: 32, 128>}, {pipeline_mode = #tpu.pipeline_mode<synchronous>, transform_indices = @transform_10, window_bounds = array<i64: 1, 128>}, {pipeline_mode = #tpu.pipeline_mode<synchronous>, transform_indices = @transform_11, window_bounds = array<i64: 128, 32>}, {pipeline_mode = #tpu.pipeline_mode<synchronous>, transform_indices = @transform_12, window_bounds = array<i64: 1, 32>}, {transform_indices = @transform_13, window_bounds = array<i64: 1, 9, 32>}]} {
    %c0 = arith.constant 0 : index
    %c0_0 = arith.constant 0 : index
    %c0_1 = arith.constant 0 : index
    %0 = vector.load %arg1[%c0, %c0_0, %c0_1] : memref<1x9x32xf32, #tpu.memory_space<vmem>>, vector<1x9x32xf32>
    %1 = vector.shape_cast %0 : vector<1x9x32xf32> to vector<9x32xf32>
    %c0_2 = arith.constant 0 : index
    %c0_3 = arith.constant 0 : index
    %2 = vector.load %arg2[%c0_2, %c0_3] : memref<1x32xf32, #tpu.memory_space<vmem>>, vector<1x32xf32>
    %c0_4 = arith.constant 0 : index
    %c0_5 = arith.constant 0 : index
    %3 = vector.load %arg3[%c0_4, %c0_5] : memref<1x32xf32, #tpu.memory_space<vmem>>, vector<1x32xf32>
    %cst = arith.constant dense<0.000000e+00> : vector<9xf32>
    %4 = vector.multi_reduction <add>, %1, %cst [1] : vector<9x32xf32> to vector<9xf32>
    %5 = vector.shape_cast %4 : vector<9xf32> to vector<9x1xf32>
    %cst_6 = arith.constant 3.200000e+01 : f32
    %6 = vector.broadcast %cst_6 : f32 to vector<9x1xf32>
    %7 = arith.divf %5, %6 : vector<9x1xf32>
    %8 = vector.broadcast %7 : vector<9x1xf32> to vector<9x32xf32>
    %9 = arith.subf %1, %8 : vector<9x32xf32>
    %10 = arith.mulf %9, %9 : vector<9x32xf32>
    %cst_7 = arith.constant dense<0.000000e+00> : vector<9xf32>
    %11 = vector.multi_reduction <add>, %10, %cst_7 [1] : vector<9x32xf32> to vector<9xf32>
    %12 = vector.shape_cast %11 : vector<9xf32> to vector<9x1xf32>
    %cst_8 = arith.constant 3.200000e+01 : f32
    %13 = vector.broadcast %cst_8 : f32 to vector<9x1xf32>
    %14 = arith.divf %12, %13 : vector<9x1xf32>
    %15 = vector.broadcast %7 : vector<9x1xf32> to vector<9x32xf32>
    %16 = arith.subf %1, %15 : vector<9x32xf32>
    %cst_9 = arith.constant 9.99999974E-6 : f32
    %17 = vector.broadcast %cst_9 : f32 to vector<9x1xf32>
    %18 = arith.addf %14, %17 : vector<9x1xf32>
    %19 = math.rsqrt %18 : vector<9x1xf32>
    %20 = vector.broadcast %19 : vector<9x1xf32> to vector<9x32xf32>
    %21 = arith.mulf %16, %20 : vector<9x32xf32>
    %22 = vector.broadcast %2 : vector<1x32xf32> to vector<9x32xf32>
    %23 = arith.mulf %21, %22 : vector<9x32xf32>
    %24 = vector.broadcast %3 : vector<1x32xf32> to vector<9x32xf32>
    %25 = arith.addf %23, %24 : vector<9x32xf32>
    %26 = arith.truncf %25 : vector<9x32xf32> to vector<9x32xbf16>
    %c0_10 = arith.constant 0 : index
    %c0_11 = arith.constant 0 : index
    %27 = vector.load %arg4[%c0_10, %c0_11] : memref<32x96xbf16, #tpu.memory_space<vmem>>, vector<32x96xbf16>
    %cst_12 = arith.constant dense<0.000000e+00> : vector<9x96xf32>
    %28 = tpu.matmul %26, %27, %cst_12 {dimension_numbers = #tpu.dot_dimension_numbers<[1], [0], [0], [1], [0, 0, 1, 1], [], []>} : vector<9x32xbf16>, vector<32x96xbf16>, vector<9x96xf32> -> vector<9x96xf32>
    %c0_13 = arith.constant 0 : index
    %c0_14 = arith.constant 0 : index
    %29 = vector.load %arg5[%c0_13, %c0_14] : memref<1x96xf32, #tpu.memory_space<vmem>>, vector<1x96xf32>
    %30 = vector.broadcast %29 : vector<1x96xf32> to vector<9x96xf32>
    %31 = arith.addf %28, %30 : vector<9x96xf32>
    %32 = arith.truncf %31 : vector<9x96xf32> to vector<9x96xbf16>
    %33 = vector.extract_strided_slice %32 {offsets = [0, 0], sizes = [9, 8], strides = [1, 1]} : vector<9x96xbf16> to vector<9x8xbf16>
    %34 = vector.extract_strided_slice %32 {offsets = [0, 32], sizes = [9, 8], strides = [1, 1]} : vector<9x96xbf16> to vector<9x8xbf16>
    %35 = vector.extract_strided_slice %32 {offsets = [0, 64], sizes = [9, 8], strides = [1, 1]} : vector<9x96xbf16> to vector<9x8xbf16>
    %cst_15 = arith.constant dense<0.000000e+00> : vector<9x9xf32>
    %36 = tpu.matmul %33, %34, %cst_15 {dimension_numbers = #tpu.dot_dimension_numbers<[1], [1], [0], [0], [0, 0, 1, 0], [], []>} : vector<9x8xbf16>, vector<9x8xbf16>, vector<9x9xf32> -> vector<9x9xf32>
    %cst_16 = arith.constant 0.353553385 : f32
    %37 = vector.broadcast %cst_16 : f32 to vector<9x9xf32>
    %38 = arith.mulf %36, %37 : vector<9x9xf32>
    %cst_17 = arith.constant dense<0xFF800000> : vector<9xf32>
    %39 = vector.multi_reduction <maximumf>, %38, %cst_17 [1] : vector<9x9xf32> to vector<9xf32>
    %40 = vector.shape_cast %39 : vector<9xf32> to vector<9x1xf32>
    %41 = vector.broadcast %40 : vector<9x1xf32> to vector<9x9xf32>
    %42 = arith.subf %38, %41 : vector<9x9xf32>
    %43 = math.exp %42 : vector<9x9xf32>
    %cst_18 = arith.constant dense<0.000000e+00> : vector<9xf32>
    %44 = vector.multi_reduction <add>, %43, %cst_18 [1] : vector<9x9xf32> to vector<9xf32>
    %45 = vector.shape_cast %44 : vector<9xf32> to vector<9x1xf32>
    %46 = tpu.reciprocal %45 {approx = true} : vector<9x1xf32> -> vector<9x1xf32>
    %47 = vector.broadcast %46 : vector<9x1xf32> to vector<9x9xf32>
    %48 = arith.mulf %43, %47 : vector<9x9xf32>
    %49 = arith.truncf %48 : vector<9x9xf32> to vector<9x9xbf16>
    %cst_19 = arith.constant dense<0.000000e+00> : vector<9x8xf32>
    %50 = tpu.matmul %49, %35, %cst_19 {dimension_numbers = #tpu.dot_dimension_numbers<[1], [0], [0], [1], [0, 0, 1, 1], [], []>} : vector<9x9xbf16>, vector<9x8xbf16>, vector<9x8xf32> -> vector<9x8xf32>
    %51 = vector.extract_strided_slice %32 {offsets = [0, 8], sizes = [9, 8], strides = [1, 1]} : vector<9x96xbf16> to vector<9x8xbf16>
    %52 = vector.extract_strided_slice %32 {offsets = [0, 40], sizes = [9, 8], strides = [1, 1]} : vector<9x96xbf16> to vector<9x8xbf16>
    %53 = vector.extract_strided_slice %32 {offsets = [0, 72], sizes = [9, 8], strides = [1, 1]} : vector<9x96xbf16> to vector<9x8xbf16>
    %cst_20 = arith.constant dense<0.000000e+00> : vector<9x9xf32>
    %54 = tpu.matmul %51, %52, %cst_20 {dimension_numbers = #tpu.dot_dimension_numbers<[1], [1], [0], [0], [0, 0, 1, 0], [], []>} : vector<9x8xbf16>, vector<9x8xbf16>, vector<9x9xf32> -> vector<9x9xf32>
    %cst_21 = arith.constant 0.353553385 : f32
    %55 = vector.broadcast %cst_21 : f32 to vector<9x9xf32>
    %56 = arith.mulf %54, %55 : vector<9x9xf32>
    %cst_22 = arith.constant dense<0xFF800000> : vector<9xf32>
    %57 = vector.multi_reduction <maximumf>, %56, %cst_22 [1] : vector<9x9xf32> to vector<9xf32>
    %58 = vector.shape_cast %57 : vector<9xf32> to vector<9x1xf32>
    %59 = vector.broadcast %58 : vector<9x1xf32> to vector<9x9xf32>
    %60 = arith.subf %56, %59 : vector<9x9xf32>
    %61 = math.exp %60 : vector<9x9xf32>
    %cst_23 = arith.constant dense<0.000000e+00> : vector<9xf32>
    %62 = vector.multi_reduction <add>, %61, %cst_23 [1] : vector<9x9xf32> to vector<9xf32>
    %63 = vector.shape_cast %62 : vector<9xf32> to vector<9x1xf32>
    %64 = tpu.reciprocal %63 {approx = true} : vector<9x1xf32> -> vector<9x1xf32>
    %65 = vector.broadcast %64 : vector<9x1xf32> to vector<9x9xf32>
    %66 = arith.mulf %61, %65 : vector<9x9xf32>
    %67 = arith.truncf %66 : vector<9x9xf32> to vector<9x9xbf16>
    %cst_24 = arith.constant dense<0.000000e+00> : vector<9x8xf32>
    %68 = tpu.matmul %67, %53, %cst_24 {dimension_numbers = #tpu.dot_dimension_numbers<[1], [0], [0], [1], [0, 0, 1, 1], [], []>} : vector<9x9xbf16>, vector<9x8xbf16>, vector<9x8xf32> -> vector<9x8xf32>
    %69 = vector.extract_strided_slice %32 {offsets = [0, 16], sizes = [9, 8], strides = [1, 1]} : vector<9x96xbf16> to vector<9x8xbf16>
    %70 = vector.extract_strided_slice %32 {offsets = [0, 48], sizes = [9, 8], strides = [1, 1]} : vector<9x96xbf16> to vector<9x8xbf16>
    %71 = vector.extract_strided_slice %32 {offsets = [0, 80], sizes = [9, 8], strides = [1, 1]} : vector<9x96xbf16> to vector<9x8xbf16>
    %cst_25 = arith.constant dense<0.000000e+00> : vector<9x9xf32>
    %72 = tpu.matmul %69, %70, %cst_25 {dimension_numbers = #tpu.dot_dimension_numbers<[1], [1], [0], [0], [0, 0, 1, 0], [], []>} : vector<9x8xbf16>, vector<9x8xbf16>, vector<9x9xf32> -> vector<9x9xf32>
    %cst_26 = arith.constant 0.353553385 : f32
    %73 = vector.broadcast %cst_26 : f32 to vector<9x9xf32>
    %74 = arith.mulf %72, %73 : vector<9x9xf32>
    %cst_27 = arith.constant dense<0xFF800000> : vector<9xf32>
    %75 = vector.multi_reduction <maximumf>, %74, %cst_27 [1] : vector<9x9xf32> to vector<9xf32>
    %76 = vector.shape_cast %75 : vector<9xf32> to vector<9x1xf32>
    %77 = vector.broadcast %76 : vector<9x1xf32> to vector<9x9xf32>
    %78 = arith.subf %74, %77 : vector<9x9xf32>
    %79 = math.exp %78 : vector<9x9xf32>
    %cst_28 = arith.constant dense<0.000000e+00> : vector<9xf32>
    %80 = vector.multi_reduction <add>, %79, %cst_28 [1] : vector<9x9xf32> to vector<9xf32>
    %81 = vector.shape_cast %80 : vector<9xf32> to vector<9x1xf32>
    %82 = tpu.reciprocal %81 {approx = true} : vector<9x1xf32> -> vector<9x1xf32>
    %83 = vector.broadcast %82 : vector<9x1xf32> to vector<9x9xf32>
    %84 = arith.mulf %79, %83 : vector<9x9xf32>
    %85 = arith.truncf %84 : vector<9x9xf32> to vector<9x9xbf16>
    %cst_29 = arith.constant dense<0.000000e+00> : vector<9x8xf32>
    %86 = tpu.matmul %85, %71, %cst_29 {dimension_numbers = #tpu.dot_dimension_numbers<[1], [0], [0], [1], [0, 0, 1, 1], [], []>} : vector<9x9xbf16>, vector<9x8xbf16>, vector<9x8xf32> -> vector<9x8xf32>
    %87 = vector.extract_strided_slice %32 {offsets = [0, 24], sizes = [9, 8], strides = [1, 1]} : vector<9x96xbf16> to vector<9x8xbf16>
    %88 = vector.extract_strided_slice %32 {offsets = [0, 56], sizes = [9, 8], strides = [1, 1]} : vector<9x96xbf16> to vector<9x8xbf16>
    %89 = vector.extract_strided_slice %32 {offsets = [0, 88], sizes = [9, 8], strides = [1, 1]} : vector<9x96xbf16> to vector<9x8xbf16>
    %cst_30 = arith.constant dense<0.000000e+00> : vector<9x9xf32>
    %90 = tpu.matmul %87, %88, %cst_30 {dimension_numbers = #tpu.dot_dimension_numbers<[1], [1], [0], [0], [0, 0, 1, 0], [], []>} : vector<9x8xbf16>, vector<9x8xbf16>, vector<9x9xf32> -> vector<9x9xf32>
    %cst_31 = arith.constant 0.353553385 : f32
    %91 = vector.broadcast %cst_31 : f32 to vector<9x9xf32>
    %92 = arith.mulf %90, %91 : vector<9x9xf32>
    %cst_32 = arith.constant dense<0xFF800000> : vector<9xf32>
    %93 = vector.multi_reduction <maximumf>, %92, %cst_32 [1] : vector<9x9xf32> to vector<9xf32>
    %94 = vector.shape_cast %93 : vector<9xf32> to vector<9x1xf32>
    %95 = vector.broadcast %94 : vector<9x1xf32> to vector<9x9xf32>
    %96 = arith.subf %92, %95 : vector<9x9xf32>
    %97 = math.exp %96 : vector<9x9xf32>
    %cst_33 = arith.constant dense<0.000000e+00> : vector<9xf32>
    %98 = vector.multi_reduction <add>, %97, %cst_33 [1] : vector<9x9xf32> to vector<9xf32>
    %99 = vector.shape_cast %98 : vector<9xf32> to vector<9x1xf32>
    %100 = tpu.reciprocal %99 {approx = true} : vector<9x1xf32> -> vector<9x1xf32>
    %101 = vector.broadcast %100 : vector<9x1xf32> to vector<9x9xf32>
    %102 = arith.mulf %97, %101 : vector<9x9xf32>
    %103 = arith.truncf %102 : vector<9x9xf32> to vector<9x9xbf16>
    %cst_34 = arith.constant dense<0.000000e+00> : vector<9x8xf32>
    %104 = tpu.matmul %103, %89, %cst_34 {dimension_numbers = #tpu.dot_dimension_numbers<[1], [0], [0], [1], [0, 0, 1, 1], [], []>} : vector<9x9xbf16>, vector<9x8xbf16>, vector<9x8xf32> -> vector<9x8xf32>
    %105 = tpu.concatenate %50, %68, %86, %104 in 1 : vector<9x8xf32>, vector<9x8xf32>, vector<9x8xf32>, vector<9x8xf32> -> vector<9x32xf32>
    %106 = arith.truncf %105 : vector<9x32xf32> to vector<9x32xbf16>
    %c0_35 = arith.constant 0 : index
    %c0_36 = arith.constant 0 : index
    %107 = vector.load %arg6[%c0_35, %c0_36] : memref<32x32xbf16, #tpu.memory_space<vmem>>, vector<32x32xbf16>
    %cst_37 = arith.constant dense<0.000000e+00> : vector<9x32xf32>
    %108 = tpu.matmul %106, %107, %cst_37 {dimension_numbers = #tpu.dot_dimension_numbers<[1], [0], [0], [1], [0, 0, 1, 1], [], []>} : vector<9x32xbf16>, vector<32x32xbf16>, vector<9x32xf32> -> vector<9x32xf32>
    %c0_38 = arith.constant 0 : index
    %c0_39 = arith.constant 0 : index
    %109 = vector.load %arg7[%c0_38, %c0_39] : memref<1x32xf32, #tpu.memory_space<vmem>>, vector<1x32xf32>
    %110 = vector.broadcast %109 : vector<1x32xf32> to vector<9x32xf32>
    %111 = arith.addf %108, %110 : vector<9x32xf32>
    %112 = arith.addf %1, %111 : vector<9x32xf32>
    %c0_40 = arith.constant 0 : index
    %c0_41 = arith.constant 0 : index
    %113 = vector.load %arg8[%c0_40, %c0_41] : memref<1x32xf32, #tpu.memory_space<vmem>>, vector<1x32xf32>
    %c0_42 = arith.constant 0 : index
    %c0_43 = arith.constant 0 : index
    %114 = vector.load %arg9[%c0_42, %c0_43] : memref<1x32xf32, #tpu.memory_space<vmem>>, vector<1x32xf32>
    %cst_44 = arith.constant dense<0.000000e+00> : vector<9xf32>
    %115 = vector.multi_reduction <add>, %112, %cst_44 [1] : vector<9x32xf32> to vector<9xf32>
    %116 = vector.shape_cast %115 : vector<9xf32> to vector<9x1xf32>
    %cst_45 = arith.constant 3.200000e+01 : f32
    %117 = vector.broadcast %cst_45 : f32 to vector<9x1xf32>
    %118 = arith.divf %116, %117 : vector<9x1xf32>
    %119 = vector.broadcast %118 : vector<9x1xf32> to vector<9x32xf32>
    %120 = arith.subf %112, %119 : vector<9x32xf32>
    %121 = arith.mulf %120, %120 : vector<9x32xf32>
    %cst_46 = arith.constant dense<0.000000e+00> : vector<9xf32>
    %122 = vector.multi_reduction <add>, %121, %cst_46 [1] : vector<9x32xf32> to vector<9xf32>
    %123 = vector.shape_cast %122 : vector<9xf32> to vector<9x1xf32>
    %cst_47 = arith.constant 3.200000e+01 : f32
    %124 = vector.broadcast %cst_47 : f32 to vector<9x1xf32>
    %125 = arith.divf %123, %124 : vector<9x1xf32>
    %126 = vector.broadcast %118 : vector<9x1xf32> to vector<9x32xf32>
    %127 = arith.subf %112, %126 : vector<9x32xf32>
    %cst_48 = arith.constant 9.99999974E-6 : f32
    %128 = vector.broadcast %cst_48 : f32 to vector<9x1xf32>
    %129 = arith.addf %125, %128 : vector<9x1xf32>
    %130 = math.rsqrt %129 : vector<9x1xf32>
    %131 = vector.broadcast %130 : vector<9x1xf32> to vector<9x32xf32>
    %132 = arith.mulf %127, %131 : vector<9x32xf32>
    %133 = vector.broadcast %113 : vector<1x32xf32> to vector<9x32xf32>
    %134 = arith.mulf %132, %133 : vector<9x32xf32>
    %135 = vector.broadcast %114 : vector<1x32xf32> to vector<9x32xf32>
    %136 = arith.addf %134, %135 : vector<9x32xf32>
    %137 = arith.truncf %136 : vector<9x32xf32> to vector<9x32xbf16>
    %c0_49 = arith.constant 0 : index
    %c0_50 = arith.constant 0 : index
    %138 = vector.load %arg10[%c0_49, %c0_50] : memref<32x128xbf16, #tpu.memory_space<vmem>>, vector<32x128xbf16>
    %cst_51 = arith.constant dense<0.000000e+00> : vector<9x128xf32>
    %139 = tpu.matmul %137, %138, %cst_51 {dimension_numbers = #tpu.dot_dimension_numbers<[1], [0], [0], [1], [0, 0, 1, 1], [], []>} : vector<9x32xbf16>, vector<32x128xbf16>, vector<9x128xf32> -> vector<9x128xf32>
    %c0_52 = arith.constant 0 : index
    %c0_53 = arith.constant 0 : index
    %140 = vector.load %arg11[%c0_52, %c0_53] : memref<1x128xf32, #tpu.memory_space<vmem>>, vector<1x128xf32>
    %141 = vector.broadcast %140 : vector<1x128xf32> to vector<9x128xf32>
    %142 = arith.addf %139, %141 : vector<9x128xf32>
    %143 = arith.mulf %142, %142 : vector<9x128xf32>
    %144 = arith.mulf %142, %143 : vector<9x128xf32>
    %cst_54 = arith.constant 4.471500e-02 : f32
    %145 = vector.broadcast %cst_54 : f32 to vector<9x128xf32>
    %146 = arith.mulf %145, %144 : vector<9x128xf32>
    %147 = arith.addf %142, %146 : vector<9x128xf32>
    %cst_55 = arith.constant 0.797884583 : f32
    %148 = vector.broadcast %cst_55 : f32 to vector<9x128xf32>
    %149 = arith.mulf %148, %147 : vector<9x128xf32>
    %150 = math.tanh %149 : vector<9x128xf32>
    %cst_56 = arith.constant 1.000000e+00 : f32
    %151 = vector.broadcast %cst_56 : f32 to vector<9x128xf32>
    %152 = arith.addf %151, %150 : vector<9x128xf32>
    %cst_57 = arith.constant 5.000000e-01 : f32
    %153 = vector.broadcast %cst_57 : f32 to vector<9x128xf32>
    %154 = arith.mulf %153, %152 : vector<9x128xf32>
    %155 = arith.mulf %142, %154 : vector<9x128xf32>
    %156 = arith.truncf %155 : vector<9x128xf32> to vector<9x128xbf16>
    %c0_58 = arith.constant 0 : index
    %c0_59 = arith.constant 0 : index
    %157 = vector.load %arg12[%c0_58, %c0_59] : memref<128x32xbf16, #tpu.memory_space<vmem>>, vector<128x32xbf16>
    %cst_60 = arith.constant dense<0.000000e+00> : vector<9x32xf32>
    %158 = tpu.matmul %156, %157, %cst_60 {dimension_numbers = #tpu.dot_dimension_numbers<[1], [0], [0], [1], [0, 0, 1, 1], [], []>} : vector<9x128xbf16>, vector<128x32xbf16>, vector<9x32xf32> -> vector<9x32xf32>
    %c0_61 = arith.constant 0 : index
    %c0_62 = arith.constant 0 : index
    %159 = vector.load %arg13[%c0_61, %c0_62] : memref<1x32xf32, #tpu.memory_space<vmem>>, vector<1x32xf32>
    %160 = vector.broadcast %159 : vector<1x32xf32> to vector<9x32xf32>
    %161 = arith.addf %158, %160 : vector<9x32xf32>
    %162 = arith.addf %112, %161 : vector<9x32xf32>
    %c0_63 = arith.constant 0 : index
    %c0_64 = arith.constant 0 : index
    %c0_65 = arith.constant 0 : index
    %163 = vector.load %arg14[%c0_63, %c0_64, %c0_65] : memref<1x9x32xf32, #tpu.memory_space<vmem>>, vector<1x9x32xf32>
    %164 = vector.shape_cast %163 : vector<1x9x32xf32> to vector<9x32xf32>
    %165 = vector.shape_cast %162 : vector<9x32xf32> to vector<1x9x32xf32>
    tpu.vector_store %arg14[%c0_63, %c0_64, %c0_65], %165 {strides = array<i32>} : memref<1x9x32xf32, #tpu.memory_space<vmem>>, vector<1x9x32xf32>,
    return
  }
  func.func @transform_0(%arg0: i32) -> (i32, i32, i32) {
    %c0_i32 = arith.constant 0 : i32
    %c0_i32_0 = arith.constant 0 : i32
    %c0_i32_1 = arith.constant 0 : i32
    return %arg0, %c0_i32, %c0_i32_0 : i32, i32, i32
  }
  func.func @transform_1(%arg0: i32) -> (i32, i32) {
    %c0_i32 = arith.constant 0 : i32
    %c0_i32_0 = arith.constant 0 : i32
    %c0_i32_1 = arith.constant 0 : i32
    return %c0_i32, %c0_i32_0 : i32, i32
  }
  func.func @transform_2(%arg0: i32) -> (i32, i32) {
    %c0_i32 = arith.constant 0 : i32
    %c0_i32_0 = arith.constant 0 : i32
    %c0_i32_1 = arith.constant 0 : i32
    return %c0_i32, %c0_i32_0 : i32, i32
  }
  func.func @transform_3(%arg0: i32) -> (i32, i32) {
    %c0_i32 = arith.constant 0 : i32
    %c0_i32_0 = arith.constant 0 : i32
    %c0_i32_1 = arith.constant 0 : i32
    return %c0_i32, %c0_i32_0 : i32, i32
  }
  func.func @transform_4(%arg0: i32) -> (i32, i32) {
    %c0_i32 = arith.constant 0 : i32
    %c0_i32_0 = arith.constant 0 : i32
    %c0_i32_1 = arith.constant 0 : i32
    return %c0_i32, %c0_i32_0 : i32, i32
  }
  func.func @transform_5(%arg0: i32) -> (i32, i32) {
    %c0_i32 = arith.constant 0 : i32
    %c0_i32_0 = arith.constant 0 : i32
    %c0_i32_1 = arith.constant 0 : i32
    return %c0_i32, %c0_i32_0 : i32, i32
  }
  func.func @transform_6(%arg0: i32) -> (i32, i32) {
    %c0_i32 = arith.constant 0 : i32
    %c0_i32_0 = arith.constant 0 : i32
    %c0_i32_1 = arith.constant 0 : i32
    return %c0_i32, %c0_i32_0 : i32, i32
  }
  func.func @transform_7(%arg0: i32) -> (i32, i32) {
    %c0_i32 = arith.constant 0 : i32
    %c0_i32_0 = arith.constant 0 : i32
    %c0_i32_1 = arith.constant 0 : i32
    return %c0_i32, %c0_i32_0 : i32, i32
  }
  func.func @transform_8(%arg0: i32) -> (i32, i32) {
    %c0_i32 = arith.constant 0 : i32
    %c0_i32_0 = arith.constant 0 : i32
    %c0_i32_1 = arith.constant 0 : i32
    return %c0_i32, %c0_i32_0 : i32, i32
  }
  func.func @transform_9(%arg0: i32) -> (i32, i32) {
    %c0_i32 = arith.constant 0 : i32
    %c0_i32_0 = arith.constant 0 : i32
    %c0_i32_1 = arith.constant 0 : i32
    return %c0_i32, %c0_i32_0 : i32, i32
  }
  func.func @transform_10(%arg0: i32) -> (i32, i32) {
    %c0_i32 = arith.constant 0 : i32
    %c0_i32_0 = arith.constant 0 : i32
    %c0_i32_1 = arith.constant 0 : i32
    return %c0_i32, %c0_i32_0 : i32, i32
  }
  func.func @transform_11(%arg0: i32) -> (i32, i32) {
    %c0_i32 = arith.constant 0 : i32
    %c0_i32_0 = arith.constant 0 : i32
    %c0_i32_1 = arith.constant 0 : i32
    return %c0_i32, %c0_i32_0 : i32, i32
  }
  func.func @transform_12(%arg0: i32) -> (i32, i32) {
    %c0_i32 = arith.constant 0 : i32
    %c0_i32_0 = arith.constant 0 : i32
    %c0_i32_1 = arith.constant 0 : i32
    return %c0_i32, %c0_i32_0 : i32, i32
  }
  func.func @transform_13(%arg0: i32) -> (i32, i32, i32) {
    %c0_i32 = arith.constant 0 : i32
    %c0_i32_0 = arith.constant 0 : i32
    %c0_i32_1 = arith.constant 0 : i32
    return %arg0, %c0_i32, %c0_i32_0 : i32, i32, i32
  }
}

module attributes {stable_mosaic.version = 11 : i64} {
  func.func @_block_kernel(%arg0: i32, %arg1: memref<1x4x32xf32, #tpu.memory_space<vmem>>, %arg2: memref<1x32xf32, #tpu.memory_space<vmem>>, %arg3: memref<1x32xf32, #tpu.memory_space<vmem>>, %arg4: memref<32x96xbf16, #tpu.memory_space<vmem>>, %arg5: memref<1x96xf32, #tpu.memory_space<vmem>>, %arg6: memref<32x32xbf16, #tpu.memory_space<vmem>>, %arg7: memref<1x32xf32, #tpu.memory_space<vmem>>, %arg8: memref<1x32xf32, #tpu.memory_space<vmem>>, %arg9: memref<1x32xf32, #tpu.memory_space<vmem>>, %arg10: memref<32x128xbf16, #tpu.memory_space<vmem>>, %arg11: memref<1x128xf32, #tpu.memory_space<vmem>>, %arg12: memref<128x32xbf16, #tpu.memory_space<vmem>>, %arg13: memref<1x32xf32, #tpu.memory_space<vmem>>, %arg14: memref<1x4x32xf32, #tpu.memory_space<vmem>>) attributes {dimension_semantics = [#tpu.dimension_semantics<parallel>], iteration_bounds = array<i64: 2>, scalar_prefetch = 0 : i64, scratch_operands = 0 : i64, tpu.core_type = #tpu.core_type<tc>, window_params = [{transform_indices = @transform_0, window_bounds = array<i64: 1, 4, 32>}, {pipeline_mode = #tpu.pipeline_mode<synchronous>, transform_indices = @transform_1, window_bounds = array<i64: 1, 32>}, {pipeline_mode = #tpu.pipeline_mode<synchronous>, transform_indices = @transform_2, window_bounds = array<i64: 1, 32>}, {pipeline_mode = #tpu.pipeline_mode<synchronous>, transform_indices = @transform_3, window_bounds = array<i64: 32, 96>}, {pipeline_mode = #tpu.pipeline_mode<synchronous>, transform_indices = @transform_4, window_bounds = array<i64: 1, 96>}, {pipeline_mode = #tpu.pipeline_mode<synchronous>, transform_indices = @transform_5, window_bounds = array<i64: 32, 32>}, {pipeline_mode = #tpu.pipeline_mode<synchronous>, transform_indices = @transform_6, window_bounds = array<i64: 1, 32>}, {pipeline_mode = #tpu.pipeline_mode<synchronous>, transform_indices = @transform_7, window_bounds = array<i64: 1, 32>}, {pipeline_mode = #tpu.pipeline_mode<synchronous>, transform_indices = @transform_8, window_bounds = array<i64: 1, 32>}, {pipeline_mode = #tpu.pipeline_mode<synchronous>, transform_indices = @transform_9, window_bounds = array<i64: 32, 128>}, {pipeline_mode = #tpu.pipeline_mode<synchronous>, transform_indices = @transform_10, window_bounds = array<i64: 1, 128>}, {pipeline_mode = #tpu.pipeline_mode<synchronous>, transform_indices = @transform_11, window_bounds = array<i64: 128, 32>}, {pipeline_mode = #tpu.pipeline_mode<synchronous>, transform_indices = @transform_12, window_bounds = array<i64: 1, 32>}, {transform_indices = @transform_13, window_bounds = array<i64: 1, 4, 32>}]} {
    %c0 = arith.constant 0 : index
    %c0_0 = arith.constant 0 : index
    %c0_1 = arith.constant 0 : index
    %0 = vector.load %arg1[%c0, %c0_0, %c0_1] : memref<1x4x32xf32, #tpu.memory_space<vmem>>, vector<1x4x32xf32>
    %1 = vector.shape_cast %0 : vector<1x4x32xf32> to vector<4x32xf32>
    %c0_2 = arith.constant 0 : index
    %c0_3 = arith.constant 0 : index
    %2 = vector.load %arg2[%c0_2, %c0_3] : memref<1x32xf32, #tpu.memory_space<vmem>>, vector<1x32xf32>
    %c0_4 = arith.constant 0 : index
    %c0_5 = arith.constant 0 : index
    %3 = vector.load %arg3[%c0_4, %c0_5] : memref<1x32xf32, #tpu.memory_space<vmem>>, vector<1x32xf32>
    %cst = arith.constant dense<0.000000e+00> : vector<4xf32>
    %4 = vector.multi_reduction <add>, %1, %cst [1] : vector<4x32xf32> to vector<4xf32>
    %5 = vector.shape_cast %4 : vector<4xf32> to vector<4x1xf32>
    %cst_6 = arith.constant 3.200000e+01 : f32
    %6 = vector.broadcast %cst_6 : f32 to vector<4x1xf32>
    %7 = arith.divf %5, %6 : vector<4x1xf32>
    %8 = vector.broadcast %7 : vector<4x1xf32> to vector<4x32xf32>
    %9 = arith.subf %1, %8 : vector<4x32xf32>
    %10 = arith.mulf %9, %9 : vector<4x32xf32>
    %cst_7 = arith.constant dense<0.000000e+00> : vector<4xf32>
    %11 = vector.multi_reduction <add>, %10, %cst_7 [1] : vector<4x32xf32> to vector<4xf32>
    %12 = vector.shape_cast %11 : vector<4xf32> to vector<4x1xf32>
    %cst_8 = arith.constant 3.200000e+01 : f32
    %13 = vector.broadcast %cst_8 : f32 to vector<4x1xf32>
    %14 = arith.divf %12, %13 : vector<4x1xf32>
    %15 = vector.broadcast %7 : vector<4x1xf32> to vector<4x32xf32>
    %16 = arith.subf %1, %15 : vector<4x32xf32>
    %cst_9 = arith.constant 9.99999974E-6 : f32
    %17 = vector.broadcast %cst_9 : f32 to vector<4x1xf32>
    %18 = arith.addf %14, %17 : vector<4x1xf32>
    %19 = math.rsqrt %18 : vector<4x1xf32>
    %20 = vector.broadcast %19 : vector<4x1xf32> to vector<4x32xf32>
    %21 = arith.mulf %16, %20 : vector<4x32xf32>
    %22 = vector.broadcast %2 : vector<1x32xf32> to vector<4x32xf32>
    %23 = arith.mulf %21, %22 : vector<4x32xf32>
    %24 = vector.broadcast %3 : vector<1x32xf32> to vector<4x32xf32>
    %25 = arith.addf %23, %24 : vector<4x32xf32>
    %26 = arith.truncf %25 : vector<4x32xf32> to vector<4x32xbf16>
    %c0_10 = arith.constant 0 : index
    %c0_11 = arith.constant 0 : index
    %27 = vector.load %arg4[%c0_10, %c0_11] : memref<32x96xbf16, #tpu.memory_space<vmem>>, vector<32x96xbf16>
    %cst_12 = arith.constant dense<0.000000e+00> : vector<4x96xf32>
    %28 = tpu.matmul %26, %27, %cst_12 {dimension_numbers = #tpu.dot_dimension_numbers<[1], [0], [0], [1], [0, 0, 1, 1], [], []>} : vector<4x32xbf16>, vector<32x96xbf16>, vector<4x96xf32> -> vector<4x96xf32>
    %c0_13 = arith.constant 0 : index
    %c0_14 = arith.constant 0 : index
    %29 = vector.load %arg5[%c0_13, %c0_14] : memref<1x96xf32, #tpu.memory_space<vmem>>, vector<1x96xf32>
    %30 = vector.broadcast %29 : vector<1x96xf32> to vector<4x96xf32>
    %31 = arith.addf %28, %30 : vector<4x96xf32>
    %32 = arith.truncf %31 : vector<4x96xf32> to vector<4x96xbf16>
    %33 = vector.extract_strided_slice %32 {offsets = [0, 0], sizes = [4, 8], strides = [1, 1]} : vector<4x96xbf16> to vector<4x8xbf16>
    %34 = vector.extract_strided_slice %32 {offsets = [0, 32], sizes = [4, 8], strides = [1, 1]} : vector<4x96xbf16> to vector<4x8xbf16>
    %35 = vector.extract_strided_slice %32 {offsets = [0, 64], sizes = [4, 8], strides = [1, 1]} : vector<4x96xbf16> to vector<4x8xbf16>
    %cst_15 = arith.constant dense<0.000000e+00> : vector<4x4xf32>
    %36 = tpu.matmul %33, %34, %cst_15 {dimension_numbers = #tpu.dot_dimension_numbers<[1], [1], [0], [0], [0, 0, 1, 0], [], []>} : vector<4x8xbf16>, vector<4x8xbf16>, vector<4x4xf32> -> vector<4x4xf32>
    %cst_16 = arith.constant 0.353553385 : f32
    %37 = vector.broadcast %cst_16 : f32 to vector<4x4xf32>
    %38 = arith.mulf %36, %37 : vector<4x4xf32>
    %cst_17 = arith.constant dense<0xFF800000> : vector<4xf32>
    %39 = vector.multi_reduction <maximumf>, %38, %cst_17 [1] : vector<4x4xf32> to vector<4xf32>
    %40 = vector.shape_cast %39 : vector<4xf32> to vector<4x1xf32>
    %41 = vector.broadcast %40 : vector<4x1xf32> to vector<4x4xf32>
    %42 = arith.subf %38, %41 : vector<4x4xf32>
    %43 = math.exp %42 : vector<4x4xf32>
    %cst_18 = arith.constant dense<0.000000e+00> : vector<4xf32>
    %44 = vector.multi_reduction <add>, %43, %cst_18 [1] : vector<4x4xf32> to vector<4xf32>
    %45 = vector.shape_cast %44 : vector<4xf32> to vector<4x1xf32>
    %46 = tpu.reciprocal %45 {approx = true} : vector<4x1xf32> -> vector<4x1xf32>
    %47 = vector.broadcast %46 : vector<4x1xf32> to vector<4x4xf32>
    %48 = arith.mulf %43, %47 : vector<4x4xf32>
    %49 = arith.truncf %48 : vector<4x4xf32> to vector<4x4xbf16>
    %cst_19 = arith.constant dense<0.000000e+00> : vector<4x8xf32>
    %50 = tpu.matmul %49, %35, %cst_19 {dimension_numbers = #tpu.dot_dimension_numbers<[1], [0], [0], [1], [0, 0, 1, 1], [], []>} : vector<4x4xbf16>, vector<4x8xbf16>, vector<4x8xf32> -> vector<4x8xf32>
    %51 = vector.extract_strided_slice %32 {offsets = [0, 8], sizes = [4, 8], strides = [1, 1]} : vector<4x96xbf16> to vector<4x8xbf16>
    %52 = vector.extract_strided_slice %32 {offsets = [0, 40], sizes = [4, 8], strides = [1, 1]} : vector<4x96xbf16> to vector<4x8xbf16>
    %53 = vector.extract_strided_slice %32 {offsets = [0, 72], sizes = [4, 8], strides = [1, 1]} : vector<4x96xbf16> to vector<4x8xbf16>
    %cst_20 = arith.constant dense<0.000000e+00> : vector<4x4xf32>
    %54 = tpu.matmul %51, %52, %cst_20 {dimension_numbers = #tpu.dot_dimension_numbers<[1], [1], [0], [0], [0, 0, 1, 0], [], []>} : vector<4x8xbf16>, vector<4x8xbf16>, vector<4x4xf32> -> vector<4x4xf32>
    %cst_21 = arith.constant 0.353553385 : f32
    %55 = vector.broadcast %cst_21 : f32 to vector<4x4xf32>
    %56 = arith.mulf %54, %55 : vector<4x4xf32>
    %cst_22 = arith.constant dense<0xFF800000> : vector<4xf32>
    %57 = vector.multi_reduction <maximumf>, %56, %cst_22 [1] : vector<4x4xf32> to vector<4xf32>
    %58 = vector.shape_cast %57 : vector<4xf32> to vector<4x1xf32>
    %59 = vector.broadcast %58 : vector<4x1xf32> to vector<4x4xf32>
    %60 = arith.subf %56, %59 : vector<4x4xf32>
    %61 = math.exp %60 : vector<4x4xf32>
    %cst_23 = arith.constant dense<0.000000e+00> : vector<4xf32>
    %62 = vector.multi_reduction <add>, %61, %cst_23 [1] : vector<4x4xf32> to vector<4xf32>
    %63 = vector.shape_cast %62 : vector<4xf32> to vector<4x1xf32>
    %64 = tpu.reciprocal %63 {approx = true} : vector<4x1xf32> -> vector<4x1xf32>
    %65 = vector.broadcast %64 : vector<4x1xf32> to vector<4x4xf32>
    %66 = arith.mulf %61, %65 : vector<4x4xf32>
    %67 = arith.truncf %66 : vector<4x4xf32> to vector<4x4xbf16>
    %cst_24 = arith.constant dense<0.000000e+00> : vector<4x8xf32>
    %68 = tpu.matmul %67, %53, %cst_24 {dimension_numbers = #tpu.dot_dimension_numbers<[1], [0], [0], [1], [0, 0, 1, 1], [], []>} : vector<4x4xbf16>, vector<4x8xbf16>, vector<4x8xf32> -> vector<4x8xf32>
    %69 = vector.extract_strided_slice %32 {offsets = [0, 16], sizes = [4, 8], strides = [1, 1]} : vector<4x96xbf16> to vector<4x8xbf16>
    %70 = vector.extract_strided_slice %32 {offsets = [0, 48], sizes = [4, 8], strides = [1, 1]} : vector<4x96xbf16> to vector<4x8xbf16>
    %71 = vector.extract_strided_slice %32 {offsets = [0, 80], sizes = [4, 8], strides = [1, 1]} : vector<4x96xbf16> to vector<4x8xbf16>
    %cst_25 = arith.constant dense<0.000000e+00> : vector<4x4xf32>
    %72 = tpu.matmul %69, %70, %cst_25 {dimension_numbers = #tpu.dot_dimension_numbers<[1], [1], [0], [0], [0, 0, 1, 0], [], []>} : vector<4x8xbf16>, vector<4x8xbf16>, vector<4x4xf32> -> vector<4x4xf32>
    %cst_26 = arith.constant 0.353553385 : f32
    %73 = vector.broadcast %cst_26 : f32 to vector<4x4xf32>
    %74 = arith.mulf %72, %73 : vector<4x4xf32>
    %cst_27 = arith.constant dense<0xFF800000> : vector<4xf32>
    %75 = vector.multi_reduction <maximumf>, %74, %cst_27 [1] : vector<4x4xf32> to vector<4xf32>
    %76 = vector.shape_cast %75 : vector<4xf32> to vector<4x1xf32>
    %77 = vector.broadcast %76 : vector<4x1xf32> to vector<4x4xf32>
    %78 = arith.subf %74, %77 : vector<4x4xf32>
    %79 = math.exp %78 : vector<4x4xf32>
    %cst_28 = arith.constant dense<0.000000e+00> : vector<4xf32>
    %80 = vector.multi_reduction <add>, %79, %cst_28 [1] : vector<4x4xf32> to vector<4xf32>
    %81 = vector.shape_cast %80 : vector<4xf32> to vector<4x1xf32>
    %82 = tpu.reciprocal %81 {approx = true} : vector<4x1xf32> -> vector<4x1xf32>
    %83 = vector.broadcast %82 : vector<4x1xf32> to vector<4x4xf32>
    %84 = arith.mulf %79, %83 : vector<4x4xf32>
    %85 = arith.truncf %84 : vector<4x4xf32> to vector<4x4xbf16>
    %cst_29 = arith.constant dense<0.000000e+00> : vector<4x8xf32>
    %86 = tpu.matmul %85, %71, %cst_29 {dimension_numbers = #tpu.dot_dimension_numbers<[1], [0], [0], [1], [0, 0, 1, 1], [], []>} : vector<4x4xbf16>, vector<4x8xbf16>, vector<4x8xf32> -> vector<4x8xf32>
    %87 = vector.extract_strided_slice %32 {offsets = [0, 24], sizes = [4, 8], strides = [1, 1]} : vector<4x96xbf16> to vector<4x8xbf16>
    %88 = vector.extract_strided_slice %32 {offsets = [0, 56], sizes = [4, 8], strides = [1, 1]} : vector<4x96xbf16> to vector<4x8xbf16>
    %89 = vector.extract_strided_slice %32 {offsets = [0, 88], sizes = [4, 8], strides = [1, 1]} : vector<4x96xbf16> to vector<4x8xbf16>
    %cst_30 = arith.constant dense<0.000000e+00> : vector<4x4xf32>
    %90 = tpu.matmul %87, %88, %cst_30 {dimension_numbers = #tpu.dot_dimension_numbers<[1], [1], [0], [0], [0, 0, 1, 0], [], []>} : vector<4x8xbf16>, vector<4x8xbf16>, vector<4x4xf32> -> vector<4x4xf32>
    %cst_31 = arith.constant 0.353553385 : f32
    %91 = vector.broadcast %cst_31 : f32 to vector<4x4xf32>
    %92 = arith.mulf %90, %91 : vector<4x4xf32>
    %cst_32 = arith.constant dense<0xFF800000> : vector<4xf32>
    %93 = vector.multi_reduction <maximumf>, %92, %cst_32 [1] : vector<4x4xf32> to vector<4xf32>
    %94 = vector.shape_cast %93 : vector<4xf32> to vector<4x1xf32>
    %95 = vector.broadcast %94 : vector<4x1xf32> to vector<4x4xf32>
    %96 = arith.subf %92, %95 : vector<4x4xf32>
    %97 = math.exp %96 : vector<4x4xf32>
    %cst_33 = arith.constant dense<0.000000e+00> : vector<4xf32>
    %98 = vector.multi_reduction <add>, %97, %cst_33 [1] : vector<4x4xf32> to vector<4xf32>
    %99 = vector.shape_cast %98 : vector<4xf32> to vector<4x1xf32>
    %100 = tpu.reciprocal %99 {approx = true} : vector<4x1xf32> -> vector<4x1xf32>
    %101 = vector.broadcast %100 : vector<4x1xf32> to vector<4x4xf32>
    %102 = arith.mulf %97, %101 : vector<4x4xf32>
    %103 = arith.truncf %102 : vector<4x4xf32> to vector<4x4xbf16>
    %cst_34 = arith.constant dense<0.000000e+00> : vector<4x8xf32>
    %104 = tpu.matmul %103, %89, %cst_34 {dimension_numbers = #tpu.dot_dimension_numbers<[1], [0], [0], [1], [0, 0, 1, 1], [], []>} : vector<4x4xbf16>, vector<4x8xbf16>, vector<4x8xf32> -> vector<4x8xf32>
    %105 = tpu.concatenate %50, %68, %86, %104 in 1 : vector<4x8xf32>, vector<4x8xf32>, vector<4x8xf32>, vector<4x8xf32> -> vector<4x32xf32>
    %106 = arith.truncf %105 : vector<4x32xf32> to vector<4x32xbf16>
    %c0_35 = arith.constant 0 : index
    %c0_36 = arith.constant 0 : index
    %107 = vector.load %arg6[%c0_35, %c0_36] : memref<32x32xbf16, #tpu.memory_space<vmem>>, vector<32x32xbf16>
    %cst_37 = arith.constant dense<0.000000e+00> : vector<4x32xf32>
    %108 = tpu.matmul %106, %107, %cst_37 {dimension_numbers = #tpu.dot_dimension_numbers<[1], [0], [0], [1], [0, 0, 1, 1], [], []>} : vector<4x32xbf16>, vector<32x32xbf16>, vector<4x32xf32> -> vector<4x32xf32>
    %c0_38 = arith.constant 0 : index
    %c0_39 = arith.constant 0 : index
    %109 = vector.load %arg7[%c0_38, %c0_39] : memref<1x32xf32, #tpu.memory_space<vmem>>, vector<1x32xf32>
    %110 = vector.broadcast %109 : vector<1x32xf32> to vector<4x32xf32>
    %111 = arith.addf %108, %110 : vector<4x32xf32>
    %112 = arith.addf %1, %111 : vector<4x32xf32>
    %c0_40 = arith.constant 0 : index
    %c0_41 = arith.constant 0 : index
    %113 = vector.load %arg8[%c0_40, %c0_41] : memref<1x32xf32, #tpu.memory_space<vmem>>, vector<1x32xf32>
    %c0_42 = arith.constant 0 : index
    %c0_43 = arith.constant 0 : index
    %114 = vector.load %arg9[%c0_42, %c0_43] : memref<1x32xf32, #tpu.memory_space<vmem>>, vector<1x32xf32>
    %cst_44 = arith.constant dense<0.000000e+00> : vector<4xf32>
    %115 = vector.multi_reduction <add>, %112, %cst_44 [1] : vector<4x32xf32> to vector<4xf32>
    %116 = vector.shape_cast %115 : vector<4xf32> to vector<4x1xf32>
    %cst_45 = arith.constant 3.200000e+01 : f32
    %117 = vector.broadcast %cst_45 : f32 to vector<4x1xf32>
    %118 = arith.divf %116, %117 : vector<4x1xf32>
    %119 = vector.broadcast %118 : vector<4x1xf32> to vector<4x32xf32>
    %120 = arith.subf %112, %119 : vector<4x32xf32>
    %121 = arith.mulf %120, %120 : vector<4x32xf32>
    %cst_46 = arith.constant dense<0.000000e+00> : vector<4xf32>
    %122 = vector.multi_reduction <add>, %121, %cst_46 [1] : vector<4x32xf32> to vector<4xf32>
    %123 = vector.shape_cast %122 : vector<4xf32> to vector<4x1xf32>
    %cst_47 = arith.constant 3.200000e+01 : f32
    %124 = vector.broadcast %cst_47 : f32 to vector<4x1xf32>
    %125 = arith.divf %123, %124 : vector<4x1xf32>
    %126 = vector.broadcast %118 : vector<4x1xf32> to vector<4x32xf32>
    %127 = arith.subf %112, %126 : vector<4x32xf32>
    %cst_48 = arith.constant 9.99999974E-6 : f32
    %128 = vector.broadcast %cst_48 : f32 to vector<4x1xf32>
    %129 = arith.addf %125, %128 : vector<4x1xf32>
    %130 = math.rsqrt %129 : vector<4x1xf32>
    %131 = vector.broadcast %130 : vector<4x1xf32> to vector<4x32xf32>
    %132 = arith.mulf %127, %131 : vector<4x32xf32>
    %133 = vector.broadcast %113 : vector<1x32xf32> to vector<4x32xf32>
    %134 = arith.mulf %132, %133 : vector<4x32xf32>
    %135 = vector.broadcast %114 : vector<1x32xf32> to vector<4x32xf32>
    %136 = arith.addf %134, %135 : vector<4x32xf32>
    %137 = arith.truncf %136 : vector<4x32xf32> to vector<4x32xbf16>
    %c0_49 = arith.constant 0 : index
    %c0_50 = arith.constant 0 : index
    %138 = vector.load %arg10[%c0_49, %c0_50] : memref<32x128xbf16, #tpu.memory_space<vmem>>, vector<32x128xbf16>
    %cst_51 = arith.constant dense<0.000000e+00> : vector<4x128xf32>
    %139 = tpu.matmul %137, %138, %cst_51 {dimension_numbers = #tpu.dot_dimension_numbers<[1], [0], [0], [1], [0, 0, 1, 1], [], []>} : vector<4x32xbf16>, vector<32x128xbf16>, vector<4x128xf32> -> vector<4x128xf32>
    %c0_52 = arith.constant 0 : index
    %c0_53 = arith.constant 0 : index
    %140 = vector.load %arg11[%c0_52, %c0_53] : memref<1x128xf32, #tpu.memory_space<vmem>>, vector<1x128xf32>
    %141 = vector.broadcast %140 : vector<1x128xf32> to vector<4x128xf32>
    %142 = arith.addf %139, %141 : vector<4x128xf32>
    %143 = arith.mulf %142, %142 : vector<4x128xf32>
    %144 = arith.mulf %142, %143 : vector<4x128xf32>
    %cst_54 = arith.constant 4.471500e-02 : f32
    %145 = vector.broadcast %cst_54 : f32 to vector<4x128xf32>
    %146 = arith.mulf %145, %144 : vector<4x128xf32>
    %147 = arith.addf %142, %146 : vector<4x128xf32>
    %cst_55 = arith.constant 0.797884583 : f32
    %148 = vector.broadcast %cst_55 : f32 to vector<4x128xf32>
    %149 = arith.mulf %148, %147 : vector<4x128xf32>
    %150 = math.tanh %149 : vector<4x128xf32>
    %cst_56 = arith.constant 1.000000e+00 : f32
    %151 = vector.broadcast %cst_56 : f32 to vector<4x128xf32>
    %152 = arith.addf %151, %150 : vector<4x128xf32>
    %cst_57 = arith.constant 5.000000e-01 : f32
    %153 = vector.broadcast %cst_57 : f32 to vector<4x128xf32>
    %154 = arith.mulf %153, %152 : vector<4x128xf32>
    %155 = arith.mulf %142, %154 : vector<4x128xf32>
    %156 = arith.truncf %155 : vector<4x128xf32> to vector<4x128xbf16>
    %c0_58 = arith.constant 0 : index
    %c0_59 = arith.constant 0 : index
    %157 = vector.load %arg12[%c0_58, %c0_59] : memref<128x32xbf16, #tpu.memory_space<vmem>>, vector<128x32xbf16>
    %cst_60 = arith.constant dense<0.000000e+00> : vector<4x32xf32>
    %158 = tpu.matmul %156, %157, %cst_60 {dimension_numbers = #tpu.dot_dimension_numbers<[1], [0], [0], [1], [0, 0, 1, 1], [], []>} : vector<4x128xbf16>, vector<128x32xbf16>, vector<4x32xf32> -> vector<4x32xf32>
    %c0_61 = arith.constant 0 : index
    %c0_62 = arith.constant 0 : index
    %159 = vector.load %arg13[%c0_61, %c0_62] : memref<1x32xf32, #tpu.memory_space<vmem>>, vector<1x32xf32>
    %160 = vector.broadcast %159 : vector<1x32xf32> to vector<4x32xf32>
    %161 = arith.addf %158, %160 : vector<4x32xf32>
    %162 = arith.addf %112, %161 : vector<4x32xf32>
    %c0_63 = arith.constant 0 : index
    %c0_64 = arith.constant 0 : index
    %c0_65 = arith.constant 0 : index
    %163 = vector.load %arg14[%c0_63, %c0_64, %c0_65] : memref<1x4x32xf32, #tpu.memory_space<vmem>>, vector<1x4x32xf32>
    %164 = vector.shape_cast %163 : vector<1x4x32xf32> to vector<4x32xf32>
    %165 = vector.shape_cast %162 : vector<4x32xf32> to vector<1x4x32xf32>
    tpu.vector_store %arg14[%c0_63, %c0_64, %c0_65], %165 {strides = array<i32>} : memref<1x4x32xf32, #tpu.memory_space<vmem>>, vector<1x4x32xf32>,
    return
  }
  func.func @transform_0(%arg0: i32) -> (i32, i32, i32) {
    %c0_i32 = arith.constant 0 : i32
    %c0_i32_0 = arith.constant 0 : i32
    %c0_i32_1 = arith.constant 0 : i32
    return %arg0, %c0_i32, %c0_i32_0 : i32, i32, i32
  }
  func.func @transform_1(%arg0: i32) -> (i32, i32) {
    %c0_i32 = arith.constant 0 : i32
    %c0_i32_0 = arith.constant 0 : i32
    %c0_i32_1 = arith.constant 0 : i32
    return %c0_i32, %c0_i32_0 : i32, i32
  }
  func.func @transform_2(%arg0: i32) -> (i32, i32) {
    %c0_i32 = arith.constant 0 : i32
    %c0_i32_0 = arith.constant 0 : i32
    %c0_i32_1 = arith.constant 0 : i32
    return %c0_i32, %c0_i32_0 : i32, i32
  }
  func.func @transform_3(%arg0: i32) -> (i32, i32) {
    %c0_i32 = arith.constant 0 : i32
    %c0_i32_0 = arith.constant 0 : i32
    %c0_i32_1 = arith.constant 0 : i32
    return %c0_i32, %c0_i32_0 : i32, i32
  }
  func.func @transform_4(%arg0: i32) -> (i32, i32) {
    %c0_i32 = arith.constant 0 : i32
    %c0_i32_0 = arith.constant 0 : i32
    %c0_i32_1 = arith.constant 0 : i32
    return %c0_i32, %c0_i32_0 : i32, i32
  }
  func.func @transform_5(%arg0: i32) -> (i32, i32) {
    %c0_i32 = arith.constant 0 : i32
    %c0_i32_0 = arith.constant 0 : i32
    %c0_i32_1 = arith.constant 0 : i32
    return %c0_i32, %c0_i32_0 : i32, i32
  }
  func.func @transform_6(%arg0: i32) -> (i32, i32) {
    %c0_i32 = arith.constant 0 : i32
    %c0_i32_0 = arith.constant 0 : i32
    %c0_i32_1 = arith.constant 0 : i32
    return %c0_i32, %c0_i32_0 : i32, i32
  }
  func.func @transform_7(%arg0: i32) -> (i32, i32) {
    %c0_i32 = arith.constant 0 : i32
    %c0_i32_0 = arith.constant 0 : i32
    %c0_i32_1 = arith.constant 0 : i32
    return %c0_i32, %c0_i32_0 : i32, i32
  }
  func.func @transform_8(%arg0: i32) -> (i32, i32) {
    %c0_i32 = arith.constant 0 : i32
    %c0_i32_0 = arith.constant 0 : i32
    %c0_i32_1 = arith.constant 0 : i32
    return %c0_i32, %c0_i32_0 : i32, i32
  }
  func.func @transform_9(%arg0: i32) -> (i32, i32) {
    %c0_i32 = arith.constant 0 : i32
    %c0_i32_0 = arith.constant 0 : i32
    %c0_i32_1 = arith.constant 0 : i32
    return %c0_i32, %c0_i32_0 : i32, i32
  }
  func.func @transform_10(%arg0: i32) -> (i32, i32) {
    %c0_i32 = arith.constant 0 : i32
    %c0_i32_0 = arith.constant 0 : i32
    %c0_i32_1 = arith.constant 0 : i32
    return %c0_i32, %c0_i32_0 : i32, i32
  }
  func.func @transform_11(%arg0: i32) -> (i32, i32) {
    %c0_i32 = arith.constant 0 : i32
    %c0_i32_0 = arith.constant 0 : i32
    %c0_i32_1 = arith.constant 0 : i32
    return %c0_i32, %c0_i32_0 : i32, i32
  }
  func.func @transform_12(%arg0: i32) -> (i32, i32) {
    %c0_i32 = arith.constant 0 : i32
    %c0_i32_0 = arith.constant 0 : i32
    %c0_i32_1 = arith.constant 0 : i32
    return %c0_i32, %c0_i32_0 : i32, i32
  }
  func.func @transform_13(%arg0: i32) -> (i32, i32, i32) {
    %c0_i32 = arith.constant 0 : i32
    %c0_i32_0 = arith.constant 0 : i32
    %c0_i32_1 = arith.constant 0 : i32
    return %arg0, %c0_i32, %c0_i32_0 : i32, i32, i32
  }
}

module attributes {stable_mosaic.version = 11 : i64} {
  func.func @_linear_kernel(%arg0: i32, %arg1: memref<8x32xf32, #tpu.memory_space<vmem>>, %arg2: memref<32x48xbf16, #tpu.memory_space<vmem>>, %arg3: memref<1x48xf32, #tpu.memory_space<vmem>>, %arg4: memref<8x48xf32, #tpu.memory_space<vmem>>) attributes {dimension_semantics = [#tpu.dimension_semantics<parallel>], iteration_bounds = array<i64: 1>, scalar_prefetch = 0 : i64, scratch_operands = 0 : i64, tpu.core_type = #tpu.core_type<tc>, window_params = [{transform_indices = @transform_0, window_bounds = array<i64: 8, 32>}, {pipeline_mode = #tpu.pipeline_mode<synchronous>, transform_indices = @transform_1, window_bounds = array<i64: 32, 48>}, {pipeline_mode = #tpu.pipeline_mode<synchronous>, transform_indices = @transform_2, window_bounds = array<i64: 1, 48>}, {transform_indices = @transform_3, window_bounds = array<i64: 8, 48>}]} {
    %c0 = arith.constant 0 : index
    %c0_0 = arith.constant 0 : index
    %0 = vector.load %arg1[%c0, %c0_0] : memref<8x32xf32, #tpu.memory_space<vmem>>, vector<8x32xf32>
    %1 = arith.truncf %0 : vector<8x32xf32> to vector<8x32xbf16>
    %c0_1 = arith.constant 0 : index
    %c0_2 = arith.constant 0 : index
    %2 = vector.load %arg2[%c0_1, %c0_2] : memref<32x48xbf16, #tpu.memory_space<vmem>>, vector<32x48xbf16>
    %cst = arith.constant dense<0.000000e+00> : vector<8x48xf32>
    %3 = tpu.matmul %1, %2, %cst {dimension_numbers = #tpu.dot_dimension_numbers<[1], [0], [0], [1], [0, 0, 1, 1], [], []>} : vector<8x32xbf16>, vector<32x48xbf16>, vector<8x48xf32> -> vector<8x48xf32>
    %c0_3 = arith.constant 0 : index
    %c0_4 = arith.constant 0 : index
    %4 = vector.load %arg3[%c0_3, %c0_4] : memref<1x48xf32, #tpu.memory_space<vmem>>, vector<1x48xf32>
    %5 = vector.broadcast %4 : vector<1x48xf32> to vector<8x48xf32>
    %6 = arith.addf %3, %5 : vector<8x48xf32>
    %c0_5 = arith.constant 0 : index
    %c0_6 = arith.constant 0 : index
    %7 = vector.load %arg4[%c0_5, %c0_6] : memref<8x48xf32, #tpu.memory_space<vmem>>, vector<8x48xf32>
    tpu.vector_store %arg4[%c0_5, %c0_6], %6 {strides = array<i32>} : memref<8x48xf32, #tpu.memory_space<vmem>>, vector<8x48xf32>,
    return
  }
  func.func @transform_0(%arg0: i32) -> (i32, i32) {
    %c0_i32 = arith.constant 0 : i32
    %c0_i32_0 = arith.constant 0 : i32
    return %arg0, %c0_i32 : i32, i32
  }
  func.func @transform_1(%arg0: i32) -> (i32, i32) {
    %c0_i32 = arith.constant 0 : i32
    %c0_i32_0 = arith.constant 0 : i32
    %c0_i32_1 = arith.constant 0 : i32
    return %c0_i32, %c0_i32_0 : i32, i32
  }
  func.func @transform_2(%arg0: i32) -> (i32, i32) {
    %c0_i32 = arith.constant 0 : i32
    %c0_i32_0 = arith.constant 0 : i32
    %c0_i32_1 = arith.constant 0 : i32
    return %c0_i32, %c0_i32_0 : i32, i32
  }
  func.func @transform_3(%arg0: i32) -> (i32, i32) {
    %c0_i32 = arith.constant 0 : i32
    %c0_i32_0 = arith.constant 0 : i32
    return %arg0, %c0_i32 : i32, i32
  }
}

</mosaic_0001>

<llo_original>
// kernel: deno_mae_forward.8
$region0: #{deno_mae_forward.8}
  #allocation0 [shape = 'u32[]', space=smem, size = 0x4, offset = 0x4, fixed_abs, tag = 'smem constant byte address 0x4 - core index']
  #allocation1 [shape = 'u32[144,128]{1,0:T(1,128)}', space=vmem, size = 0x12000, scoped, tag = 'internal scratch']
  %s0 = inlined_call_operand.vmem [shape: f32[32,48], index: 0, kind: input, shape index: {}]
  %s1 = inlined_call_operand.vmem [shape: bf16[48,32], index: 1, kind: input, shape index: {}]
  %s2 = inlined_call_operand.vmem [shape: f32[1,32], index: 2, kind: input, shape index: {}]
  %s3 = inlined_call_operand.vmem [shape: f32[32,32], index: 3, kind: output, shape index: {}]
  %s4 = sld [smem:[#allocation0]]
  $region22: #{deno_mae_forward.8} parent=0
    _
  %s6 = ssub.s32 1, %s4
  %s7 = scalar_select 0, %s6, %s4
  // Predicated region
  $region2: #{deno_mae_forward.8} parent=0 // pred_check
    _
  $region3: #{deno_mae_forward.8} parent=0 // pred_check_branch
    %9 = sbr.rel (0) target = $region5
  $region4: #{deno_mae_forward.8} parent=0 // pred_region
    _
  $region5: #{deno_mae_forward.8} parent=0 // pred_fallthru
    _
  // Predicated region
  $region6: #{deno_mae_forward.8} parent=0 // pred_check
    _
  $region7: #{deno_mae_forward.8} parent=0 // pred_check_branch
    %11 = sbr.rel (0) target = $region9
  $region8: #{deno_mae_forward.8} parent=0 // pred_region
    _
  $region9: #{deno_mae_forward.8} parent=0 // pred_fallthru
    _
  // Predicated region
  $region10: #{deno_mae_forward.8} parent=0 // pred_check
    _
  $region11: #{deno_mae_forward.8} parent=0 // pred_check_branch
    %13 = sbr.rel (0) target = $region13
  $region12: #{deno_mae_forward.8} parent=0 // pred_region
    _
  $region13: #{deno_mae_forward.8} parent=0 // pred_fallthru
    _
  %v15 = vld [vmem:[%s0] sm:$0xff]
  %v16 = vld [vmem:[%s0 + $0x8] sm:$0xff]
  %v17 = vld [vmem:[%s0 + $0x10] sm:$0xff]
  %v18 = vld [vmem:[%s0 + $0x18] sm:$0xff]
  %v19 = vpack.c.bf16 %v16, %v15
  %v20 = vpack.c.bf16 %v18, %v17
  %v21 = vld [vmem:[%s1] sm:$0xf]
  %v22 = vld [vmem:[%s1 + $0x4] sm:$0xf]
  %v23 = vld [vmem:[%s1 + $0x8] sm:$0xf]
  %v24 = vld [vmem:[%s1 + $0xc] sm:$0xf]
  %v25 = vld [vmem:[%s1 + $0x10] sm:$0xf]
  %v26 = vld [vmem:[%s1 + $0x14] sm:$0xf]
  %v27 = vld [vmem:[%s2] sm:$0x1]
  %v29 = vlaneseq
  %v30 = vshrl.u32 %v29, 7
  %v31 = vsub.s32 0, %v30
  %v32 = vrot.slane %v27, %v31
  %v40 = vunpack.c.l.b16 %v21
  %v41 = vunpack.c.l.b16 %v22
  %v42 = vunpack.c.l.b16 %v23
  %v43 = vunpack.c.l.b16 %v24
  %v44 = vunpack.c.l.b16 %v25
  %v45 = vunpack.c.l.b16 %v26
  %v46 = vpack.c.b16 %v41, %v40
  %v47 = vpack.c.b16 %v43, %v42
  %v48 = vpack.c.b16 %v45, %v44
  %vm52 = vcmask 392192
  %v54 = vsel %vm52, %v19, 0
  %v57 = vsel %vm52, %v20, 0
  %59 = vmatprep.subr.bf16.mxu0 0
  %60 = vmatpush1.bf16.msra.mxu0 %v46
  %61 = vmatprep.subr.bf16.mxu0 0
  %62 = vmatpush1.bf16.msra.mxu0 %v47
  %63 = vmatprep.subr.bf16.mxu0 0
  %64 = vmatpush1.bf16.msra.mxu0 %v48
  %65 = vmatprep.subr.bf16.mxu0 0
  %66 = vmatpush1.bf16.msra.mxu0 0
  %67 = vmatprep.subr.bf16.mxu0 0
  %68 = vmatpush1.bf16.msra.mxu0 0
  %69 = vmatprep.subr.bf16.mxu0 0
  %70 = vmatpush1.bf16.msra.mxu0 0
  %71 = vmatprep.subr.bf16.mxu0 0
  %72 = vmatpush1.bf16.msra.mxu0 0
  %73 = vmatprep.subr.bf16.mxu0 0
  %74 = vmatpush1.bf16.msra.mxu0 0
  %75 = vmatprep.subr.bf16.mxu0 0
  %76 = vmatpush1.bf16.msra.mxu0 0
  %77 = vmatprep.subr.bf16.mxu0 0
  %78 = vmatpush1.bf16.msra.mxu0 0
  %79 = vmatprep.subr.bf16.mxu0 0
  %80 = vmatpush1.bf16.msra.mxu0 0
  %81 = vmatprep.subr.bf16.mxu0 0
  %82 = vmatpush1.bf16.msra.mxu0 0
  %83 = vmatprep.subr.bf16.mxu0 0
  %84 = vmatpush1.bf16.msra.mxu0 0
  %85 = vmatprep.subr.bf16.mxu0 0
  %86 = vmatpush1.bf16.msra.mxu0 0
  %87 = vmatprep.subr.bf16.mxu0 0
  %88 = vmatpush1.bf16.msra.mxu0 0
  %89 = vmatprep.subr.bf16.mxu0 0
  %90 = vmatpush1.bf16.msra.mxu0 0
  %91 = vmatprep.mubr.bf16.mxu0 0
  %92 = vmatmul.mubr.bf16.gmra.mrb[0].mxu0 %v54
  %v93 = vpop.f32.mrb[0].mxu0
  %v94 = vadd.f32 %v32, %v93
  %v95 = vpop.f32.mrb[0].mxu0
  %v96 = vpop.f32.mrb[0].mxu0
  %v97 = vadd.f32 %v32, %v96
  %v98 = vpop.f32.mrb[0].mxu0
  %99 = vmatprep.mubr.bf16.mxu0 0
  %100 = vmatmul.mubr.bf16.gmra.mrb[0].mxu0 %v57
  %v101 = vpop.f32.mrb[0].mxu0
  %v102 = vadd.f32 %v32, %v101
  %v103 = vpop.f32.mrb[0].mxu0
  %v104 = vpop.f32.mrb[0].mxu0
  %v105 = vadd.f32 %v32, %v104
  %v106 = vpop.f32.mrb[0].mxu0
  %107 = vdwg.mxu0
  %vm108 = vcmask 261120
  %109 = vst.msk [vmem:[%s3] sm:$0xff] %vm108, %v94
  %110 = vst.msk [vmem:[%s3 + $0x8] sm:$0xff] %vm108, %v97
  %111 = vst.msk [vmem:[%s3 + $0x10] sm:$0xff] %vm108, %v102
  %112 = vst.msk [vmem:[%s3 + $0x18] sm:$0xff] %vm108, %v105
  // Predicated region
  $region14: #{deno_mae_forward.8} parent=0 // pred_check
    _
  $region15: #{deno_mae_forward.8} parent=0 // pred_check_branch
    %114 = sbr.rel (0) target = $region17
  $region16: #{deno_mae_forward.8} parent=0 // pred_region
    _
  $region17: #{deno_mae_forward.8} parent=0 // pred_fallthru
    _
  // Predicated region
  $region18: #{deno_mae_forward.8} parent=0 // pred_check
    _
  $region19: #{deno_mae_forward.8} parent=0 // pred_check_branch
    %116 = sbr.rel (0) target = $region21
  $region20: #{deno_mae_forward.8} parent=0 // pred_region
    _
  $region21: #{deno_mae_forward.8} parent=0 // pred_fallthru
    _

// kernel: deno_mae_forward.17
$region0: #{deno_mae_forward.17}
  #allocation0 [shape = 'u32[]', space=smem, size = 0x4, offset = 0x4, fixed_abs, tag = 'smem constant byte address 0x4 - core index']
  #allocation1 [shape = 'u32[144,128]{1,0:T(1,128)}', space=vmem, size = 0x12000, scoped, tag = 'internal scratch']
  %s0 = inlined_call_operand.vmem [shape: f32[8,32], index: 0, kind: input, shape index: {}]
  %s1 = inlined_call_operand.vmem [shape: bf16[32,48], index: 1, kind: input, shape index: {}]
  %s2 = inlined_call_operand.vmem [shape: f32[1,48], index: 2, kind: input, shape index: {}]
  %s3 = inlined_call_operand.vmem [shape: f32[8,48], index: 3, kind: output, shape index: {}]
  %s4 = sld [smem:[#allocation0]]
  $region22: #{deno_mae_forward.17} parent=0
    _
  %s6 = ssub.s32 1, %s4
  %s7 = scalar_select 0, %s6, %s4
  // Predicated region
  $region2: #{deno_mae_forward.17} parent=0 // pred_check
    _
  $region3: #{deno_mae_forward.17} parent=0 // pred_check_branch
    %9 = sbr.rel (0) target = $region5
  $region4: #{deno_mae_forward.17} parent=0 // pred_region
    _
  $region5: #{deno_mae_forward.17} parent=0 // pred_fallthru
    _
  // Predicated region
  $region6: #{deno_mae_forward.17} parent=0 // pred_check
    _
  $region7: #{deno_mae_forward.17} parent=0 // pred_check_branch
    %11 = sbr.rel (0) target = $region9
  $region8: #{deno_mae_forward.17} parent=0 // pred_region
    _
  $region9: #{deno_mae_forward.17} parent=0 // pred_fallthru
    _
  // Predicated region
  $region10: #{deno_mae_forward.17} parent=0 // pred_check
    _
  $region11: #{deno_mae_forward.17} parent=0 // pred_check_branch
    %13 = sbr.rel (0) target = $region13
  $region12: #{deno_mae_forward.17} parent=0 // pred_region
    _
  $region13: #{deno_mae_forward.17} parent=0 // pred_fallthru
    _
  %v15 = vld [vmem:[%s0] sm:$0xff]
  %v16 = vpack.c.bf16 %v15, %v15
  %v17 = vld [vmem:[%s1] sm:$0xf]
  %v18 = vld [vmem:[%s1 + $0x4] sm:$0xf]
  %v19 = vld [vmem:[%s1 + $0x8] sm:$0xf]
  %v20 = vld [vmem:[%s1 + $0xc] sm:$0xf]
  %v21 = vld [vmem:[%s2] sm:$0x1]
  %v23 = vlaneseq
  %v24 = vshrl.u32 %v23, 7
  %v25 = vsub.s32 0, %v24
  %v26 = vrot.slane %v21, %v25
  %v32 = vunpack.c.l.b16 %v17
  %v33 = vunpack.c.l.b16 %v18
  %v34 = vunpack.c.l.b16 %v19
  %v35 = vunpack.c.l.b16 %v20
  %v36 = vpack.c.b16 %v33, %v32
  %v37 = vpack.c.b16 %v35, %v34
  %vm40 = vcmask 261120
  %v42 = vsel %vm40, %v16, 0
  %44 = vmatprep.subr.bf16.mxu0 0
  %45 = vmatpush1.bf16.msra.mxu0 %v36
  %46 = vmatprep.subr.bf16.mxu0 0
  %47 = vmatpush1.bf16.msra.mxu0 %v37
  %48 = vmatprep.subr.bf16.mxu0 0
  %49 = vmatpush1.bf16.msra.mxu0 0
  %50 = vmatprep.subr.bf16.mxu0 0
  %51 = vmatpush1.bf16.msra.mxu0 0
  %52 = vmatprep.subr.bf16.mxu0 0
  %53 = vmatpush1.bf16.msra.mxu0 0
  %54 = vmatprep.subr.bf16.mxu0 0
  %55 = vmatpush1.bf16.msra.mxu0 0
  %56 = vmatprep.subr.bf16.mxu0 0
  %57 = vmatpush1.bf16.msra.mxu0 0
  %58 = vmatprep.subr.bf16.mxu0 0
  %59 = vmatpush1.bf16.msra.mxu0 0
  %60 = vmatprep.subr.bf16.mxu0 0
  %61 = vmatpush1.bf16.msra.mxu0 0
  %62 = vmatprep.subr.bf16.mxu0 0
  %63 = vmatpush1.bf16.msra.mxu0 0
  %64 = vmatprep.subr.bf16.mxu0 0
  %65 = vmatpush1.bf16.msra.mxu0 0
  %66 = vmatprep.subr.bf16.mxu0 0
  %67 = vmatpush1.bf16.msra.mxu0 0
  %68 = vmatprep.subr.bf16.mxu0 0
  %69 = vmatpush1.bf16.msra.mxu0 0
  %70 = vmatprep.subr.bf16.mxu0 0
  %71 = vmatpush1.bf16.msra.mxu0 0
  %72 = vmatprep.subr.bf16.mxu0 0
  %73 = vmatpush1.bf16.msra.mxu0 0
  %74 = vmatprep.subr.bf16.mxu0 0
  %75 = vmatpush1.bf16.msra.mxu0 0
  %76 = vmatprep.mubr.bf16.mxu0 0
  %77 = vmatmul.mubr.bf16.gmra.mrb[0].mxu0 %v42
  %v78 = vpop.f32.mrb[0].mxu0
  %v79 = vadd.f32 %v26, %v78
  %v80 = vpop.f32.mrb[0].mxu0
  %v81 = vpop.f32.mrb[0].mxu0
  %v82 = vpop.f32.mrb[0].mxu0
  %83 = vdwg.mxu0
  %vm84 = vcmask 392192
  %85 = vst.msk [vmem:[%s3] sm:$0xff] %vm84, %v79
  // Predicated region
  $region14: #{deno_mae_forward.17} parent=0 // pred_check
    _
  $region15: #{deno_mae_forward.17} parent=0 // pred_check_branch
    %87 = sbr.rel (0) target = $region17
  $region16: #{deno_mae_forward.17} parent=0 // pred_region
    _
  $region17: #{deno_mae_forward.17} parent=0 // pred_fallthru
    _
  // Predicated region
  $region18: #{deno_mae_forward.17} parent=0 // pred_check
    _
  $region19: #{deno_mae_forward.17} parent=0 // pred_check_branch
    %89 = sbr.rel (0) target = $region21
  $region20: #{deno_mae_forward.17} parent=0 // pred_region
    _
  $region21: #{deno_mae_forward.17} parent=0 // pred_fallthru
    _

// kernel: deno_mae_forward.10
$region0: #{deno_mae_forward.10}
  #allocation0 [shape = 'u32[]', space=smem, size = 0x4, offset = 0x4, fixed_abs, tag = 'smem constant byte address 0x4 - core index']
  #allocation1 [shape = 'u32[144,128]{1,0:T(1,128)}', space=vmem, size = 0x12000, scoped, tag = 'internal scratch']
  %s0 = inlined_call_operand.vmem [shape: f32[2,9,32], index: 0, kind: input, shape index: {}]
  %s1 = inlined_call_operand.vmem [shape: f32[1,32], index: 1, kind: input, shape index: {}]
  %s2 = inlined_call_operand.vmem [shape: f32[1,32], index: 2, kind: input, shape index: {}]
  %s3 = inlined_call_operand.vmem [shape: bf16[32,96], index: 3, kind: input, shape index: {}]
  %s4 = inlined_call_operand.vmem [shape: f32[1,96], index: 4, kind: input, shape index: {}]
  %s5 = inlined_call_operand.vmem [shape: bf16[32,32], index: 5, kind: input, shape index: {}]
  %s6 = inlined_call_operand.vmem [shape: f32[1,32], index: 6, kind: input, shape index: {}]
  %s7 = inlined_call_operand.vmem [shape: f32[1,32], index: 7, kind: input, shape index: {}]
  %s8 = inlined_call_operand.vmem [shape: f32[1,32], index: 8, kind: input, shape index: {}]
  %s9 = inlined_call_operand.vmem [shape: bf16[32,128], index: 9, kind: input, shape index: {}]
  %s10 = inlined_call_operand.vmem [shape: f32[1,128], index: 10, kind: input, shape index: {}]
  %s11 = inlined_call_operand.vmem [shape: bf16[128,32], index: 11, kind: input, shape index: {}]
  %s12 = inlined_call_operand.vmem [shape: f32[1,32], index: 12, kind: input, shape index: {}]
  %s13 = inlined_call_operand.vmem [shape: f32[2,9,32], index: 13, kind: output, shape index: {}]
  %s14 = sld [smem:[#allocation0]]
  $region85: #{deno_mae_forward.10} parent=0
    _
  %s16 = ssub.s32 1, %s14
  %s17 = scalar_select 0, %s16, %s14
  loop: start=0, step=1, limit=4
  $region2: #{deno_mae_forward.10} parent=0 // loop_pre_header
    _
  $region3: #{deno_mae_forward.10} parent=0 // loop_header
    %s19 = sphi 0, %s23
    %p20 = scmp.ge.s32.totalorder %s19, 4
    %s29 = sphi 0, %s31
    %s32 = sphi 0, %s29
    %s33 = sphi 0, %s32
    %s49 = sphi 0, %s33
    %s53 = sphi 0, %s53
    %s55 = sphi 0, %s53
    %s56 = sphi 0, %s55
    %s70 = sphi 0, %s56
    %s74 = sphi 0, %s74
    %s76 = sphi 0, %s74
    %s77 = sphi 0, %s76
    %s91 = sphi 0, %s77
    %s95 = sphi 0, %s95
    %s97 = sphi 0, %s95
    %s98 = sphi 0, %s97
    %s112 = sphi 0, %s98
    %s116 = sphi 0, %s116
    %s118 = sphi 0, %s116
    %s119 = sphi 0, %s118
    %s133 = sphi 0, %s119
    %s137 = sphi 0, %s137
    %s139 = sphi 0, %s137
    %s140 = sphi 0, %s139
    %s154 = sphi 0, %s140
    %s158 = sphi 0, %s158
    %s160 = sphi 0, %s158
    %s161 = sphi 0, %s160
    %s175 = sphi 0, %s161
    %s179 = sphi 0, %s179
    %s181 = sphi 0, %s179
    %s182 = sphi 0, %s181
    %s196 = sphi 0, %s182
    %s200 = sphi 0, %s200
    %s202 = sphi 0, %s200
    %s203 = sphi 0, %s202
    %s217 = sphi 0, %s203
    %s221 = sphi 0, %s221
    %s223 = sphi 0, %s221
    %s224 = sphi 0, %s223
    %s238 = sphi 0, %s224
    %s242 = sphi 0, %s242
    %s244 = sphi 0, %s242
    %s245 = sphi 0, %s244
    %s259 = sphi 0, %s245
    %s263 = sphi 0, %s263
    %s265 = sphi 0, %s263
    %s266 = sphi 0, %s265
    %s280 = sphi 0, %s266
    %s284 = sphi 0, %s284
    %s286 = sphi 0, %s284
    %s287 = sphi 0, %s286
    %s301 = sphi 0, %s287
    %s307 = sphi 0, %s309
    %s310 = sphi 0, %s307
    %s311 = sphi 0, %s310
    %s327 = sphi 0, %s311
  $region4: #{deno_mae_forward.10} parent=0 // loop_header_branch
    %22 = sbr.rel (%p20) target = $region8
  $region5: #{deno_mae_forward.10} parent=0 // loop_body
    %s24 = ssub.s32 %s19, 1
    %s25 = ssub.s32 %s19, 2
    %s26 = sadd.s32 %s19, 1
    %s27 = ssub.s32 %s19, %s26
    %p28 = scmp.eq.s32.totalorder %s27, 0
    %s30 = sadd.s32 %s29, 1
    %s31 = scalar_select %p28, %s29, %s30
    %p34 = pneg %p28
    %p35 = scmp.eq.s32.totalorder %s19, 1
    %p36 = por %p34, %p35
    %p37 = scmp.ne.s32.totalorder %s29, %s32
    %p38 = scmp.eq.s32.totalorder %s19, 0
    %p39 = por %p37, %p38
    %p40 = scmp.ne.s32.totalorder %s29, %s32
    %p41 = scmp.eq.s32.totalorder %s24, 1
    %p42 = por %p40, %p41
    %p43 = scmp.ne.s32.totalorder %s32, %s33
    %p44 = scmp.eq.s32.totalorder %s24, 0
    %p45 = por %p43, %p44
    %p46 = scmp.ne.s32.totalorder %s32, %s33
    %p47 = scmp.eq.s32.totalorder %s25, 1
    %p48 = por %p46, %p47
    %p50 = scmp.ne.s32.totalorder %s33, %s49
    %p51 = scmp.eq.s32.totalorder %s25, 0
    %p52 = por %p50, %p51
    %s54 = sadd.s32 %s53, 1
    %p57 = scmp.eq.s32.totalorder %s19, 1
    %p58 = scmp.ne.s32.totalorder %s53, %s55
    %p59 = scmp.eq.s32.totalorder %s19, 0
    %p60 = por %p58, %p59
    %p61 = scmp.ne.s32.totalorder %s53, %s55
    %p62 = scmp.eq.s32.totalorder %s24, 1
    %p63 = por %p61, %p62
    %p64 = scmp.ne.s32.totalorder %s55, %s56
    %p65 = scmp.eq.s32.totalorder %s24, 0
    %p66 = por %p64, %p65
    %p67 = scmp.ne.s32.totalorder %s55, %s56
    %p68 = scmp.eq.s32.totalorder %s25, 1
    %p69 = por %p67, %p68
    %p71 = scmp.ne.s32.totalorder %s56, %s70
    %p72 = scmp.eq.s32.totalorder %s25, 0
    %p73 = por %p71, %p72
    %s75 = sadd.s32 %s74, 1
    %p78 = scmp.eq.s32.totalorder %s19, 1
    %p79 = scmp.ne.s32.totalorder %s74, %s76
    %p80 = scmp.eq.s32.totalorder %s19, 0
    %p81 = por %p79, %p80
    %p82 = scmp.ne.s32.totalorder %s74, %s76
    %p83 = scmp.eq.s32.totalorder %s24, 1
    %p84 = por %p82, %p83
    %p85 = scmp.ne.s32.totalorder %s76, %s77
    %p86 = scmp.eq.s32.totalorder %s24, 0
    %p87 = por %p85, %p86
    %p88 = scmp.ne.s32.totalorder %s76, %s77
    %p89 = scmp.eq.s32.totalorder %s25, 1
    %p90 = por %p88, %p89
    %p92 = scmp.ne.s32.totalorder %s77, %s91
    %p93 = scmp.eq.s32.totalorder %s25, 0
    %p94 = por %p92, %p93
    %s96 = sadd.s32 %s95, 1
    %p99 = scmp.eq.s32.totalorder %s19, 1
    %p100 = scmp.ne.s32.totalorder %s95, %s97
    %p101 = scmp.eq.s32.totalorder %s19, 0
    %p102 = por %p100, %p101
    %p103 = scmp.ne.s32.totalorder %s95, %s97
    %p104 = scmp.eq.s32.totalorder %s24, 1
    %p105 = por %p103, %p104
    %p106 = scmp.ne.s32.totalorder %s97, %s98
    %p107 = scmp.eq.s32.totalorder %s24, 0
    %p108 = por %p106, %p107
    %p109 = scmp.ne.s32.totalorder %s97, %s98
    %p110 = scmp.eq.s32.totalorder %s25, 1
    %p111 = por %p109, %p110
    %p113 = scmp.ne.s32.totalorder %s98, %s112
    %p114 = scmp.eq.s32.totalorder %s25, 0
    %p115 = por %p113, %p114
    %s117 = sadd.s32 %s116, 1
    %p120 = scmp.eq.s32.totalorder %s19, 1
    %p121 = scmp.ne.s32.totalorder %s116, %s118
    %p122 = scmp.eq.s32.totalorder %s19, 0
    %p123 = por %p121, %p122
    %p124 = scmp.ne.s32.totalorder %s116, %s118
    %p125 = scmp.eq.s32.totalorder %s24, 1
    %p126 = por %p124, %p125
    %p127 = scmp.ne.s32.totalorder %s118, %s119
    %p128 = scmp.eq.s32.totalorder %s24, 0
    %p129 = por %p127, %p128
    %p130 = scmp.ne.s32.totalorder %s118, %s119
    %p131 = scmp.eq.s32.totalorder %s25, 1
    %p132 = por %p130, %p131
    %p134 = scmp.ne.s32.totalorder %s119, %s133
    %p135 = scmp.eq.s32.totalorder %s25, 0
    %p136 = por %p134, %p135
    %s138 = sadd.s32 %s137, 1
    %p141 = scmp.eq.s32.totalorder %s19, 1
    %p142 = scmp.ne.s32.totalorder %s137, %s139
    %p143 = scmp.eq.s32.totalorder %s19, 0
    %p144 = por %p142, %p143
    %p145 = scmp.ne.s32.totalorder %s137, %s139
    %p146 = scmp.eq.s32.totalorder %s24, 1
    %p147 = por %p145, %p146
    %p148 = scmp.ne.s32.totalorder %s139, %s140
    %p149 = scmp.eq.s32.totalorder %s24, 0
    %p150 = por %p148, %p149
    %p151 = scmp.ne.s32.totalorder %s139, %s140
    %p152 = scmp.eq.s32.totalorder %s25, 1
    %p153 = por %p151, %p152
    %p155 = scmp.ne.s32.totalorder %s140, %s154
    %p156 = scmp.eq.s32.totalorder %s25, 0
    %p157 = por %p155, %p156
    %s159 = sadd.s32 %s158, 1
    %p162 = scmp.eq.s32.totalorder %s19, 1
    %p163 = scmp.ne.s32.totalorder %s158, %s160
    %p164 = scmp.eq.s32.totalorder %s19, 0
    %p165 = por %p163, %p164
    %p166 = scmp.ne.s32.totalorder %s158, %s160
    %p167 = scmp.eq.s32.totalorder %s24, 1
    %p168 = por %p166, %p167
    %p169 = scmp.ne.s32.totalorder %s160, %s161
    %p170 = scmp.eq.s32.totalorder %s24, 0
    %p171 = por %p169, %p170
    %p172 = scmp.ne.s32.totalorder %s160, %s161
    %p173 = scmp.eq.s32.totalorder %s25, 1
    %p174 = por %p172, %p173
    %p176 = scmp.ne.s32.totalorder %s161, %s175
    %p177 = scmp.eq.s32.totalorder %s25, 0
    %p178 = por %p176, %p177
    %s180 = sadd.s32 %s179, 1
    %p183 = scmp.eq.s32.totalorder %s19, 1
    %p184 = scmp.ne.s32.totalorder %s179, %s181
    %p185 = scmp.eq.s32.totalorder %s19, 0
    %p186 = por %p184, %p185
    %p187 = scmp.ne.s32.totalorder %s179, %s181
    %p188 = scmp.eq.s32.totalorder %s24, 1
    %p189 = por %p187, %p188
    %p190 = scmp.ne.s32.totalorder %s181, %s182
    %p191 = scmp.eq.s32.totalorder %s24, 0
    %p192 = por %p190, %p191
    %p193 = scmp.ne.s32.totalorder %s181, %s182
    %p194 = scmp.eq.s32.totalorder %s25, 1
    %p195 = por %p193, %p194
    %p197 = scmp.ne.s32.totalorder %s182, %s196
    %p198 = scmp.eq.s32.totalorder %s25, 0
    %p199 = por %p197, %p198
    %s201 = sadd.s32 %s200, 1
    %p204 = scmp.eq.s32.totalorder %s19, 1
    %p205 = scmp.ne.s32.totalorder %s200, %s202
    %p206 = scmp.eq.s32.totalorder %s19, 0
    %p207 = por %p205, %p206
    %p208 = scmp.ne.s32.totalorder %s200, %s202
    %p209 = scmp.eq.s32.totalorder %s24, 1
    %p210 = por %p208, %p209
    %p211 = scmp.ne.s32.totalorder %s202, %s203
    %p212 = scmp.eq.s32.totalorder %s24, 0
    %p213 = por %p211, %p212
    %p214 = scmp.ne.s32.totalorder %s202, %s203
    %p215 = scmp.eq.s32.totalorder %s25, 1
    %p216 = por %p214, %p215
    %p218 = scmp.ne.s32.totalorder %s203, %s217
    %p219 = scmp.eq.s32.totalorder %s25, 0
    %p220 = por %p218, %p219
    %s222 = sadd.s32 %s221, 1
    %p225 = scmp.eq.s32.totalorder %s19, 1
    %p226 = scmp.ne.s32.totalorder %s221, %s223
    %p227 = scmp.eq.s32.totalorder %s19, 0
    %p228 = por %p226, %p227
    %p229 = scmp.ne.s32.totalorder %s221, %s223
    %p230 = scmp.eq.s32.totalorder %s24, 1
    %p231 = por %p229, %p230
    %p232 = scmp.ne.s32.totalorder %s223, %s224
    %p233 = scmp.eq.s32.totalorder %s24, 0
    %p234 = por %p232, %p233
    %p235 = scmp.ne.s32.totalorder %s223, %s224
    %p236 = scmp.eq.s32.totalorder %s25, 1
    %p237 = por %p235, %p236
    %p239 = scmp.ne.s32.totalorder %s224, %s238
    %p240 = scmp.eq.s32.totalorder %s25, 0
    %p241 = por %p239, %p240
    %s243 = sadd.s32 %s242, 1
    %p246 = scmp.eq.s32.totalorder %s19, 1
    %p247 = scmp.ne.s32.totalorder %s242, %s244
    %p248 = scmp.eq.s32.totalorder %s19, 0
    %p249 = por %p247, %p248
    %p250 = scmp.ne.s32.totalorder %s242, %s244
    %p251 = scmp.eq.s32.totalorder %s24, 1
    %p252 = por %p250, %p251
    %p253 = scmp.ne.s32.totalorder %s244, %s245
    %p254 = scmp.eq.s32.totalorder %s24, 0
    %p255 = por %p253, %p254
    %p256 = scmp.ne.s32.totalorder %s244, %s245
    %p257 = scmp.eq.s32.totalorder %s25, 1
    %p258 = por %p256, %p257
    %p260 = scmp.ne.s32.totalorder %s245, %s259
    %p261 = scmp.eq.s32.totalorder %s25, 0
    %p262 = por %p260, %p261
    %s264 = sadd.s32 %s263, 1
    %p267 = scmp.eq.s32.totalorder %s19, 1
    %p268 = scmp.ne.s32.totalorder %s263, %s265
    %p269 = scmp.eq.s32.totalorder %s19, 0
    %p270 = por %p268, %p269
    %p271 = scmp.ne.s32.totalorder %s263, %s265
    %p272 = scmp.eq.s32.totalorder %s24, 1
    %p273 = por %p271, %p272
    %p274 = scmp.ne.s32.totalorder %s265, %s266
    %p275 = scmp.eq.s32.totalorder %s24, 0
    %p276 = por %p274, %p275
    %p277 = scmp.ne.s32.totalorder %s265, %s266
    %p278 = scmp.eq.s32.totalorder %s25, 1
    %p279 = por %p277, %p278
    %p281 = scmp.ne.s32.totalorder %s266, %s280
    %p282 = scmp.eq.s32.totalorder %s25, 0
    %p283 = por %p281, %p282
    %s285 = sadd.s32 %s284, 1
    %p288 = scmp.eq.s32.totalorder %s19, 1
    %p289 = scmp.ne.s32.totalorder %s284, %s286
    %p290 = scmp.eq.s32.totalorder %s19, 0
    %p291 = por %p289, %p290
    %p292 = scmp.ne.s32.totalorder %s284, %s286
    %p293 = scmp.eq.s32.totalorder %s24, 1
    %p294 = por %p292, %p293
    %p295 = scmp.ne.s32.totalorder %s286, %s287
    %p296 = scmp.eq.s32.totalorder %s24, 0
    %p297 = por %p295, %p296
    %p298 = scmp.ne.s32.totalorder %s286, %s287
    %p299 = scmp.eq.s32.totalorder %s25, 1
    %p300 = por %p298, %p299
    %p302 = scmp.ne.s32.totalorder %s287, %s301
    %p303 = scmp.eq.s32.totalorder %s25, 0
    %p304 = por %p302, %p303
    %s305 = ssub.s32 %s19, %s26
    %p306 = scmp.eq.s32.totalorder %s305, 0
    %s308 = sadd.s32 %s307, 1
    %s309 = scalar_select %p306, %s307, %s308
    %p312 = pneg %p306
    %p313 = scmp.eq.s32.totalorder %s19, 1
    %p314 = por %p312, %p313
    %p315 = scmp.ne.s32.totalorder %s307, %s310
    %p316 = scmp.eq.s32.totalorder %s19, 0
    %p317 = por %p315, %p316
    %p318 = scmp.ne.s32.totalorder %s307, %s310
    %p319 = scmp.eq.s32.totalorder %s24, 1
    %p320 = por %p318, %p319
    %p321 = scmp.ne.s32.totalorder %s310, %s311
    %p322 = scmp.eq.s32.totalorder %s24, 0
    %p323 = por %p321, %p322
    %p324 = scmp.ne.s32.totalorder %s310, %s311
    %p325 = scmp.eq.s32.totalorder %s25, 1
    %p326 = por %p324, %p325
    %p328 = scmp.ne.s32.totalorder %s311, %s327
    %p329 = scmp.eq.s32.totalorder %s25, 0
    %p330 = por %p328, %p329
    %p331 = scmp.le.s32.totalorder 1, %s19
    %p332 = scmp.lt.s32.totalorder %s19, 3
    %p333 = pnand %p331, %p332
    %p334 = pneg %p333
    // Predicated region
    $region9: #{deno_mae_forward.10} parent=5 // pred_check
      _
    $region10: #{deno_mae_forward.10} parent=5 // pred_check_branch
      %336 = sbr.rel (%p333) target = $region12
    $region11: #{deno_mae_forward.10} parent=5 // pred_region
      %s337 = ssub.s32 %s19, 1
      // Predicated region
      $region13: #{deno_mae_forward.10} parent=11 // pred_check
        %p338 = pneg %p66
      $region14: #{deno_mae_forward.10} parent=11 // pred_check_branch
        %340 = sbr.rel (%p338) target = $region16
      $region15: #{deno_mae_forward.10} parent=11 // pred_region
        _
      $region16: #{deno_mae_forward.10} parent=11 // pred_fallthru
        _
      // Predicated region
      $region17: #{deno_mae_forward.10} parent=11 // pred_check
        %p341 = pneg %p87
      $region18: #{deno_mae_forward.10} parent=11 // pred_check_branch
        %343 = sbr.rel (%p341) target = $region20
      $region19: #{deno_mae_forward.10} parent=11 // pred_region
        _
      $region20: #{deno_mae_forward.10} parent=11 // pred_fallthru
        _
      // Predicated region
      $region21: #{deno_mae_forward.10} parent=11 // pred_check
        %p344 = pneg %p108
      $region22: #{deno_mae_forward.10} parent=11 // pred_check_branch
        %346 = sbr.rel (%p344) target = $region24
      $region23: #{deno_mae_forward.10} parent=11 // pred_region
        _
      $region24: #{deno_mae_forward.10} parent=11 // pred_fallthru
        _
      // Predicated region
      $region25: #{deno_mae_forward.10} parent=11 // pred_check
        %p347 = pneg %p129
      $region26: #{deno_mae_forward.10} parent=11 // pred_check_branch
        %349 = sbr.rel (%p347) target = $region28
      $region27: #{deno_mae_forward.10} parent=11 // pred_region
        _
      $region28: #{deno_mae_forward.10} parent=11 // pred_fallthru
        _
      // Predicated region
      $region29: #{deno_mae_forward.10} parent=11 // pred_check
        %p350 = pneg %p150
      $region30: #{deno_mae_forward.10} parent=11 // pred_check_branch
        %352 = sbr.rel (%p350) target = $region32
      $region31: #{deno_mae_forward.10} parent=11 // pred_region
        _
      $region32: #{deno_mae_forward.10} parent=11 // pred_fallthru
        _
      // Predicated region
      $region33: #{deno_mae_forward.10} parent=11 // pred_check
        %p353 = pneg %p171
      $region34: #{deno_mae_forward.10} parent=11 // pred_check_branch
        %355 = sbr.rel (%p353) target = $region36
      $region35: #{deno_mae_forward.10} parent=11 // pred_region
        _
      $region36: #{deno_mae_forward.10} parent=11 // pred_fallthru
        _
      // Predicated region
      $region37: #{deno_mae_forward.10} parent=11 // pred_check
        %p356 = pneg %p192
      $region38: #{deno_mae_forward.10} parent=11 // pred_check_branch
        %358 = sbr.rel (%p356) target = $region40
      $region39: #{deno_mae_forward.10} parent=11 // pred_region
        _
      $region40: #{deno_mae_forward.10} parent=11 // pred_fallthru
        _
      // Predicated region
      $region41: #{deno_mae_forward.10} parent=11 // pred_check
        %p359 = pneg %p213
      $region42: #{deno_mae_forward.10} parent=11 // pred_check_branch
        %361 = sbr.rel (%p359) target = $region44
      $region43: #{deno_mae_forward.10} parent=11 // pred_region
        _
      $region44: #{deno_mae_forward.10} parent=11 // pred_fallthru
        _
      // Predicated region
      $region45: #{deno_mae_forward.10} parent=11 // pred_check
        %p362 = pneg %p234
      $region46: #{deno_mae_forward.10} parent=11 // pred_check_branch
        %364 = sbr.rel (%p362) target = $region48
      $region47: #{deno_mae_forward.10} parent=11 // pred_region
        _
      $region48: #{deno_mae_forward.10} parent=11 // pred_fallthru
        _
      // Predicated region
      $region49: #{deno_mae_forward.10} parent=11 // pred_check
        %p365 = pneg %p255
      $region50: #{deno_mae_forward.10} parent=11 // pred_check_branch
        %367 = sbr.rel (%p365) target = $region52
      $region51: #{deno_mae_forward.10} parent=11 // pred_region
        _
      $region52: #{deno_mae_forward.10} parent=11 // pred_fallthru
        _
      // Predicated region
      $region53: #{deno_mae_forward.10} parent=11 // pred_check
        %p368 = pneg %p276
      $region54: #{deno_mae_forward.10} parent=11 // pred_check_branch
        %370 = sbr.rel (%p368) target = $region56
      $region55: #{deno_mae_forward.10} parent=11 // pred_region
        _
      $region56: #{deno_mae_forward.10} parent=11 // pred_fallthru
        _
      // Predicated region
      $region57: #{deno_mae_forward.10} parent=11 // pred_check
        %p371 = pneg %p297
      $region58: #{deno_mae_forward.10} parent=11 // pred_check_branch
        %373 = sbr.rel (%p371) target = $region60
      $region59: #{deno_mae_forward.10} parent=11 // pred_region
        _
      $region60: #{deno_mae_forward.10} parent=11 // pred_fallthru
        _
    $region12: #{deno_mae_forward.10} parent=5 // pred_fallthru
      _
    %p374 = scmp.lt.s32.totalorder %s19, 2
    // Predicated region
    $region61: #{deno_mae_forward.10} parent=5 // pred_check
      %p375 = pneg %p374
    $region62: #{deno_mae_forward.10} parent=5 // pred_check_branch
      %377 = sbr.rel (%p375) target = $region64
    $region63: #{deno_mae_forward.10} parent=5 // pred_region
      // Predicated region
      $region65: #{deno_mae_forward.10} parent=63 // pred_check
        %p378 = pneg %p39
      $region66: #{deno_mae_forward.10} parent=63 // pred_check_branch
        %380 = sbr.rel (%p378) target = $region68
      $region67: #{deno_mae_forward.10} parent=63 // pred_region
        %p381 = scmp.lt.s32.totalorder %s19, 1
        %s382 = scalar_select %p381, %s19, 1
        %s383 = smul.addr %s382, 2
        %s384 = smul.addr %s383, 8
        %s385 = scalar_lea.vmem %s0, %s384
      $region68: #{deno_mae_forward.10} parent=63 // pred_fallthru
        _
    $region64: #{deno_mae_forward.10} parent=5 // pred_fallthru
      _
    %p386 = scmp.le.s32.totalorder 1, %s19
    %p387 = scmp.lt.s32.totalorder %s19, 3
    %p388 = pnand %p386, %p387
    %p389 = pneg %p388
    // Predicated region
    $region69: #{deno_mae_forward.10} parent=5 // pred_check
      _
    $region70: #{deno_mae_forward.10} parent=5 // pred_check_branch
      %391 = sbr.rel (%p388) target = $region72
    $region71: #{deno_mae_forward.10} parent=5 // pred_region
      %s392 = ssub.s32 %s19, 1
      %p393 = scmp.lt.s32.totalorder %s24, 1
      %s394 = scalar_select %p393, %s24, 1
      %s395 = smul.addr %s394, 2
      %s396 = smul.addr %s395, 8
      %s397 = scalar_lea.vmem %s0, %s396
      %p398 = pneg %p45
      %p399 = pneg %p42
      %p400 = pneg %p66
      %p401 = pneg %p63
      %p402 = pneg %p87
      %p403 = pneg %p84
      %p404 = pneg %p108
      %p405 = pneg %p105
      %p406 = pneg %p129
      %p407 = pneg %p126
      %p408 = pneg %p150
      %p409 = pneg %p147
      %p410 = pneg %p171
      %p411 = pneg %p168
      %p412 = pneg %p192
      %p413 = pneg %p189
      %p414 = pneg %p213
      %p415 = pneg %p210
      %p416 = pneg %p234
      %p417 = pneg %p231
      %p418 = pneg %p255
      %p419 = pneg %p252
      %p420 = pneg %p276
      %p421 = pneg %p273
      %p422 = pneg %p297
      %p423 = pneg %p294
      %p424 = pneg %p323
      %p425 = pneg %p320
      %p426 = scmp.lt.s32.totalorder %s24, 1
      %s427 = scalar_select %p426, %s24, 1
      %s428 = smul.addr %s427, 2
      %s429 = smul.addr %s428, 8
      %s430 = scalar_lea.vmem %s13, %s429
      %p431 = scmp.lt.s32.totalorder %s24, 1
      %s432 = scalar_select %p431, %s24, 1
      %s433 = smul.addr %s432, 2
      %s434 = smul.addr %s433, 8
      %s435 = scalar_lea.vmem %s0, %s434
      %p436 = scmp.lt.s32.totalorder %s24, 1
      %s437 = scalar_select %p436, %s24, 1
      %s438 = smul.addr %s437, 2
      %s439 = smul.addr %s438, 8
      %s440 = scalar_lea.vmem %s13, %s439
      %v442 = vld [vmem:[%s435] sm:$0xff]
      %v443 = vld [vmem:[%s435 + $0x8] sm:$0x1]
      %v444 = vld [vmem:[%s1] sm:$0x1]
      %v445 = vld [vmem:[%s2] sm:$0x1]
      %vm446 = vcmask 261120
      %v447 = vsel %vm446, %v442, 0.0
      %448 = vadd.xlane.f32.xlu0 %v447
      %v449 = vpop.xlane.xlu0 %448
      %vm450 = vcmask 253952
      %v451 = vsel %vm450, %v443, 0.0
      %452 = vadd.xlane.f32.xlu0 %v451
      %v453 = vpop.xlane.xlu0 %452
      %v454 = vrcp.pop 32.0
      %v455 = vmul.f32 %v449, %v454
      %v456 = vmul.f32 %v453, %v454
      %v457 = vsub.f32 %v442, %v455
      %v458 = vsub.f32 %v443, %v456
      %v459 = vmul.f32 %v457, %v457
      %v460 = vmul.f32 %v458, %v458
      %v461 = vsel %vm446, %v459, 0.0
      %462 = vadd.xlane.f32.xlu0 %v461
      %v463 = vpop.xlane.xlu0 %462
      %v464 = vsel %vm450, %v460, 0.0
      %465 = vadd.xlane.f32.xlu0 %v464
      %v466 = vpop.xlane.xlu0 %465
      %v467 = vmul.f32 %v463, %v454
      %v468 = vmul.f32 %v466, %v454
      %v469 = vadd.f32 %v467, 1e-05
      %v470 = vadd.f32 %v468, 1e-05
      %v471 = vrsqrt.pop %v469
      %v472 = vrsqrt.pop %v470
      %v473 = vmul.f32 %v457, %v471
      %v474 = vmul.f32 %v458, %v472
      %v476 = vlaneseq
      %v477 = vshrl.u32 %v476, 7
      %v478 = vsub.s32 0, %v477
      %v479 = vrot.slane %v444, %v478
      %v481 = vmul.f32 %v473, %v479
      %v482 = vmul.f32 %v474, %v479
      %v484 = vlaneseq
      %v485 = vshrl.u32 %v484, 7
      %v486 = vsub.s32 0, %v485
      %v487 = vrot.slane %v445, %v486
      %v489 = vadd.f32 %v481, %v487
      %v490 = vadd.f32 %v482, %v487
      %v491 = vpack.c.bf16 %v490, %v489
      %v492 = vld [vmem:[%s3] sm:$0xf]
      %v493 = vld [vmem:[%s3 + $0x4] sm:$0xf]
      %v494 = vld [vmem:[%s3 + $0x8] sm:$0xf]
      %v495 = vld [vmem:[%s3 + $0xc] sm:$0xf]
      %v496 = vld [vmem:[%s4] sm:$0x1]
      %v498 = vlaneseq
      %v499 = vshrl.u32 %v498, 7
      %v500 = vsub.s32 0, %v499
      %v501 = vrot.slane %v496, %v500
      %v507 = vunpack.c.l.b16 %v492
      %v508 = vunpack.c.l.b16 %v493
      %v509 = vunpack.c.l.b16 %v494
      %v510 = vunpack.c.l.b16 %v495
      %v511 = vpack.c.b16 %v508, %v507
      %v512 = vpack.c.b16 %v510, %v509
      %v516 = vsel %vm446, %v491, 0
      %518 = vmatprep.subr.bf16.mxu0 0
      %519 = vmatpush1.bf16.msra.mxu0 %v511
      %520 = vmatprep.subr.bf16.mxu0 0
      %521 = vmatpush1.bf16.msra.mxu0 %v512
      %522 = vmatprep.subr.bf16.mxu0 0
      %523 = vmatpush1.bf16.msra.mxu0 0
      %524 = vmatprep.subr.bf16.mxu0 0
      %525 = vmatpush1.bf16.msra.mxu0 0
      %526 = vmatprep.subr.bf16.mxu0 0
      %527 = vmatpush1.bf16.msra.mxu0 0
      %528 = vmatprep.subr.bf16.mxu0 0
      %529 = vmatpush1.bf16.msra.mxu0 0
      %530 = vmatprep.subr.bf16.mxu0 0
      %531 = vmatpush1.bf16.msra.mxu0 0
      %532 = vmatprep.subr.bf16.mxu0 0
      %533 = vmatpush1.bf16.msra.mxu0 0
      %534 = vmatprep.subr.bf16.mxu0 0
      %535 = vmatpush1.bf16.msra.mxu0 0
      %536 = vmatprep.subr.bf16.mxu0 0
      %537 = vmatpush1.bf16.msra.mxu0 0
      %538 = vmatprep.subr.bf16.mxu0 0
      %539 = vmatpush1.bf16.msra.mxu0 0
      %540 = vmatprep.subr.bf16.mxu0 0
      %541 = vmatpush1.bf16.msra.mxu0 0
      %542 = vmatprep.subr.bf16.mxu0 0
      %543 = vmatpush1.bf16.msra.mxu0 0
      %544 = vmatprep.subr.bf16.mxu0 0
      %545 = vmatpush1.bf16.msra.mxu0 0
      %546 = vmatprep.subr.bf16.mxu0 0
      %547 = vmatpush1.bf16.msra.mxu0 0
      %548 = vmatprep.subr.bf16.mxu0 0
      %549 = vmatpush1.bf16.msra.mxu0 0
      %550 = vmatprep.mubr.bf16.mxu0 0
      %551 = vmatmul.mubr.bf16.gmra.mrb[0].mxu0 %v516
      %v552 = vpop.f32.mrb[0].mxu0
      %v553 = vadd.f32 %v501, %v552
      %v554 = vpop.f32.mrb[0].mxu0
      %v555 = vpop.f32.mrb[0].mxu0
      %v556 = vadd.f32 %v501, %v555
      %v557 = vpop.f32.mrb[0].mxu0
      %558 = vdwg.mxu0
      %v559 = vpack.c.bf16 %v556, %v553
      %561 = vrot.lane.b32.xlu0 %v559, 96
      %v562 = vpop.permute.xlu0 %561
      %vm563 = vcmask 64512
      %v565 = vsel %vm563, %v559, 0
      %v568 = vsel %vm563, %v562, 0
      %570 = vmatprep.subr.bf16.mxu0 0
      %571 = vmatpush1.bf16.xpose.msra.mxu0 %v568
      %572 = vmatprep.subr.bf16.mxu0 0
      %573 = vmatpush1.bf16.xpose.msra.mxu0 0
      %574 = vmatprep.subr.bf16.mxu0 0
      %575 = vmatpush1.bf16.xpose.msra.mxu0 0
      %576 = vmatprep.subr.bf16.mxu0 0
      %577 = vmatpush1.bf16.xpose.msra.mxu0 0
      %578 = vmatprep.subr.bf16.mxu0 0
      %579 = vmatpush1.bf16.xpose.msra.mxu0 0
      %580 = vmatprep.subr.bf16.mxu0 0
      %581 = vmatpush1.bf16.xpose.msra.mxu0 0
      %582 = vmatprep.subr.bf16.mxu0 0
      %583 = vmatpush1.bf16.xpose.msra.mxu0 0
      %584 = vmatprep.subr.bf16.mxu0 0
      %585 = vmatpush1.bf16.xpose.msra.mxu0 0
      %586 = vmatprep.subr.bf16.mxu0 0
      %587 = vmatpush1.bf16.xpose.msra.mxu0 0
      %588 = vmatprep.subr.bf16.mxu0 0
      %589 = vmatpush1.bf16.xpose.msra.mxu0 0
      %590 = vmatprep.subr.bf16.mxu0 0
      %591 = vmatpush1.bf16.xpose.msra.mxu0 0
      %592 = vmatprep.subr.bf16.mxu0 0
      %593 = vmatpush1.bf16.xpose.msra.mxu0 0
      %594 = vmatprep.subr.bf16.mxu0 0
      %595 = vmatpush1.bf16.xpose.msra.mxu0 0
      %596 = vmatprep.subr.bf16.mxu0 0
      %597 = vmatpush1.bf16.xpose.msra.mxu0 0
      %598 = vmatprep.subr.bf16.mxu0 0
      %599 = vmatpush1.bf16.xpose.msra.mxu0 0
      %600 = vmatprep.subr.bf16.mxu0 0
      %601 = vmatpush1.bf16.xpose.msra.mxu0 0
      %602 = vmatprep.mubr.bf16.mxu0 0
      %603 = vmatmul.mubr.bf16.gmra.mrb[0].mxu0 %v565
      %v604 = vpop.f32.mrb[0].mxu0
      %v605 = vadd.f32 0.0, %v604
      %v606 = vpop.f32.mrb[0].mxu0
      %v607 = vpop.f32.mrb[0].mxu0
      %v608 = vadd.f32 0.0, %v607
      %v609 = vpop.f32.mrb[0].mxu0
      %610 = vdwg.mxu0
      %v611 = vmul.f32 %v605, 0.35355338
      %v612 = vmul.f32 %v608, 0.35355338
      %vm613 = vcmask 72704
      %v614 = vsel %vm613, %v611, -inf
      %615 = vmax.xlane.f32.xlu0 %v614
      %v616 = vpop.xlane.xlu0 %615
      %vm617 = vcmask 65536
      %v618 = vsel %vm617, %v612, -inf
      %619 = vmax.xlane.f32.xlu0 %v618
      %v620 = vpop.xlane.xlu0 %619
      %v621 = vsub.f32 %v611, %v616
      %v622 = vsub.f32 %v612, %v620
      %v623 = vmul.f32 %v621, 1.442695
      %v624 = vpow.pop %v623
      %v625 = vmul.f32 %v622, 1.442695
      %v626 = vpow.pop %v625
      %v627 = vsel %vm613, %v624, 0.0
      %628 = vadd.xlane.f32.xlu0 %v627
      %v629 = vpop.xlane.xlu0 %628
      %v630 = vsel %vm617, %v626, 0.0
      %631 = vadd.xlane.f32.xlu0 %v630
      %v632 = vpop.xlane.xlu0 %631
      %v633 = vrcp.pop %v629
      %v634 = vrcp.pop %v632
      %v635 = vmul.f32 %v624, %v633
      %v636 = vmul.f32 %v626, %v634
      %v637 = vpack.c.bf16 %v636, %v635
      %638 = vrot.lane.b32.xlu0 %v559, 64
      %v639 = vpop.permute.xlu0 %638
      %v641 = vsel %vm613, %v637, 0
      %vm643 = vcmask 1043456
      %vm644 = vcmask 1044480
      %v645 = vsel %vm643, 4294967295, 65535
      %v646 = vsel %vm644, %v645, 0
      %v648 = vand.u32 %v639, %v646
      %650 = vmatprep.subr.bf16.mxu0 0
      %651 = vmatpush1.bf16.msra.mxu0 %v648
      %652 = vmatprep.subr.bf16.mxu0 0
      %653 = vmatpush1.bf16.msra.mxu0 0
      %654 = vmatprep.subr.bf16.mxu0 0
      %655 = vmatpush1.bf16.msra.mxu0 0
      %656 = vmatprep.subr.bf16.mxu0 0
      %657 = vmatpush1.bf16.msra.mxu0 0
      %658 = vmatprep.subr.bf16.mxu0 0
      %659 = vmatpush1.bf16.msra.mxu0 0
      %660 = vmatprep.subr.bf16.mxu0 0
      %661 = vmatpush1.bf16.msra.mxu0 0
      %662 = vmatprep.subr.bf16.mxu0 0
      %663 = vmatpush1.bf16.msra.mxu0 0
      %664 = vmatprep.subr.bf16.mxu0 0
      %665 = vmatpush1.bf16.msra.mxu0 0
      %666 = vmatprep.subr.bf16.mxu0 0
      %667 = vmatpush1.bf16.msra.mxu0 0
      %668 = vmatprep.subr.bf16.mxu0 0
      %669 = vmatpush1.bf16.msra.mxu0 0
      %670 = vmatprep.subr.bf16.mxu0 0
      %671 = vmatpush1.bf16.msra.mxu0 0
      %672 = vmatprep.subr.bf16.mxu0 0
      %673 = vmatpush1.bf16.msra.mxu0 0
      %674 = vmatprep.subr.bf16.mxu0 0
      %675 = vmatpush1.bf16.msra.mxu0 0
      %676 = vmatprep.subr.bf16.mxu0 0
      %677 = vmatpush1.bf16.msra.mxu0 0
      %678 = vmatprep.subr.bf16.mxu0 0
      %679 = vmatpush1.bf16.msra.mxu0 0
      %680 = vmatprep.subr.bf16.mxu0 0
      %681 = vmatpush1.bf16.msra.mxu0 0
      %682 = vmatprep.mubr.bf16.mxu0 0
      %683 = vmatmul.mubr.bf16.gmra.mrb[0].mxu0 %v641
      %v684 = vpop.f32.mrb[0].mxu0
      %v685 = vadd.f32 0.0, %v684
      %v686 = vpop.f32.mrb[0].mxu0
      %v687 = vpop.f32.mrb[0].mxu0
      %v688 = vadd.f32 0.0, %v687
      %v689 = vpop.f32.mrb[0].mxu0
      %690 = vdwg.mxu0
      %691 = vrot.lane.b32.xlu0 %v559, 120
      %v692 = vpop.permute.xlu0 %691
      %693 = vrot.lane.b32.xlu0 %v559, 88
      %v694 = vpop.permute.xlu0 %693
      %v696 = vsel %vm563, %v692, 0
      %v699 = vsel %vm563, %v694, 0
      %701 = vmatprep.subr.bf16.mxu0 0
      %702 = vmatpush1.bf16.xpose.msra.mxu0 %v699
      %703 = vmatprep.subr.bf16.mxu0 0
      %704 = vmatpush1.bf16.xpose.msra.mxu0 0
      %705 = vmatprep.subr.bf16.mxu0 0
      %706 = vmatpush1.bf16.xpose.msra.mxu0 0
      %707 = vmatprep.subr.bf16.mxu0 0
      %708 = vmatpush1.bf16.xpose.msra.mxu0 0
      %709 = vmatprep.subr.bf16.mxu0 0
      %710 = vmatpush1.bf16.xpose.msra.mxu0 0
      %711 = vmatprep.subr.bf16.mxu0 0
      %712 = vmatpush1.bf16.xpose.msra.mxu0 0
      %713 = vmatprep.subr.bf16.mxu0 0
      %714 = vmatpush1.bf16.xpose.msra.mxu0 0
      %715 = vmatprep.subr.bf16.mxu0 0
      %716 = vmatpush1.bf16.xpose.msra.mxu0 0
      %717 = vmatprep.subr.bf16.mxu0 0
      %718 = vmatpush1.bf16.xpose.msra.mxu0 0
      %719 = vmatprep.subr.bf16.mxu0 0
      %720 = vmatpush1.bf16.xpose.msra.mxu0 0
      %721 = vmatprep.subr.bf16.mxu0 0
      %722 = vmatpush1.bf16.xpose.msra.mxu0 0
      %723 = vmatprep.subr.bf16.mxu0 0
      %724 = vmatpush1.bf16.xpose.msra.mxu0 0
      %725 = vmatprep.subr.bf16.mxu0 0
      %726 = vmatpush1.bf16.xpose.msra.mxu0 0
      %727 = vmatprep.subr.bf16.mxu0 0
      %728 = vmatpush1.bf16.xpose.msra.mxu0 0
      %729 = vmatprep.subr.bf16.mxu0 0
      %730 = vmatpush1.bf16.xpose.msra.mxu0 0
      %731 = vmatprep.subr.bf16.mxu0 0
      %732 = vmatpush1.bf16.xpose.msra.mxu0 0
      %733 = vmatprep.mubr.bf16.mxu0 0
      %734 = vmatmul.mubr.bf16.gmra.mrb[0].mxu0 %v696
      %v735 = vpop.f32.mrb[0].mxu0
      %v736 = vadd.f32 0.0, %v735
      %v737 = vpop.f32.mrb[0].mxu0
      %v738 = vpop.f32.mrb[0].mxu0
      %v739 = vadd.f32 0.0, %v738
      %v740 = vpop.f32.mrb[0].mxu0
      %741 = vdwg.mxu0
      %v742 = vmul.f32 %v736, 0.35355338
      %v743 = vmul.f32 %v739, 0.35355338
      %v744 = vsel %vm613, %v742, -inf
      %745 = vmax.xlane.f32.xlu0 %v744
      %v746 = vpop.xlane.xlu0 %745
      %v747 = vsel %vm617, %v743, -inf
      %748 = vmax.xlane.f32.xlu0 %v747
      %v749 = vpop.xlane.xlu0 %748
      %v750 = vsub.f32 %v742, %v746
      %v751 = vsub.f32 %v743, %v749
      %v752 = vmul.f32 %v750, 1.442695
      %v753 = vpow.pop %v752
      %v754 = vmul.f32 %v751, 1.442695
      %v755 = vpow.pop %v754
      %v756 = vsel %vm613, %v753, 0.0
      %757 = vadd.xlane.f32.xlu0 %v756
      %v758 = vpop.xlane.xlu0 %757
      %v759 = vsel %vm617, %v755, 0.0
      %760 = vadd.xlane.f32.xlu0 %v759
      %v761 = vpop.xlane.xlu0 %760
      %v762 = vrcp.pop %v758
      %v763 = vrcp.pop %v761
      %v764 = vmul.f32 %v753, %v762
      %v765 = vmul.f32 %v755, %v763
      %v766 = vpack.c.bf16 %v765, %v764
      %767 = vrot.lane.b32.xlu0 %v559, 56
      %v768 = vpop.permute.xlu0 %767
      %v770 = vsel %vm613, %v766, 0
      %v773 = vand.u32 %v768, %v646
      %775 = vmatprep.subr.bf16.mxu0 0
      %776 = vmatpush1.bf16.msra.mxu0 %v773
      %777 = vmatprep.subr.bf16.mxu0 0
      %778 = vmatpush1.bf16.msra.mxu0 0
      %779 = vmatprep.subr.bf16.mxu0 0
      %780 = vmatpush1.bf16.msra.mxu0 0
      %781 = vmatprep.subr.bf16.mxu0 0
      %782 = vmatpush1.bf16.msra.mxu0 0
      %783 = vmatprep.subr.bf16.mxu0 0
      %784 = vmatpush1.bf16.msra.mxu0 0
      %785 = vmatprep.subr.bf16.mxu0 0
      %786 = vmatpush1.bf16.msra.mxu0 0
      %787 = vmatprep.subr.bf16.mxu0 0
      %788 = vmatpush1.bf16.msra.mxu0 0
      %789 = vmatprep.subr.bf16.mxu0 0
      %790 = vmatpush1.bf16.msra.mxu0 0
      %791 = vmatprep.subr.bf16.mxu0 0
      %792 = vmatpush1.bf16.msra.mxu0 0
      %793 = vmatprep.subr.bf16.mxu0 0
      %794 = vmatpush1.bf16.msra.mxu0 0
      %795 = vmatprep.subr.bf16.mxu0 0
      %796 = vmatpush1.bf16.msra.mxu0 0
      %797 = vmatprep.subr.bf16.mxu0 0
      %798 = vmatpush1.bf16.msra.mxu0 0
      %799 = vmatprep.subr.bf16.mxu0 0
      %800 = vmatpush1.bf16.msra.mxu0 0
      %801 = vmatprep.subr.bf16.mxu0 0
      %802 = vmatpush1.bf16.msra.mxu0 0
      %803 = vmatprep.subr.bf16.mxu0 0
      %804 = vmatpush1.bf16.msra.mxu0 0
      %805 = vmatprep.subr.bf16.mxu0 0
      %806 = vmatpush1.bf16.msra.mxu0 0
      %807 = vmatprep.mubr.bf16.mxu0 0
      %808 = vmatmul.mubr.bf16.gmra.mrb[0].mxu0 %v770
      %v809 = vpop.f32.mrb[0].mxu0
      %v810 = vadd.f32 0.0, %v809
      %v811 = vpop.f32.mrb[0].mxu0
      %v812 = vpop.f32.mrb[0].mxu0
      %v813 = vadd.f32 0.0, %v812
      %v814 = vpop.f32.mrb[0].mxu0
      %815 = vdwg.mxu0
      %816 = vrot.lane.b32.xlu0 %v559, 112
      %v817 = vpop.permute.xlu0 %816
      %818 = vrot.lane.b32.xlu0 %v559, 80
      %v819 = vpop.permute.xlu0 %818
      %v821 = vsel %vm563, %v817, 0
      %v824 = vsel %vm563, %v819, 0
      %826 = vmatprep.subr.bf16.mxu0 0
      %827 = vmatpush1.bf16.xpose.msra.mxu0 %v824
      %828 = vmatprep.subr.bf16.mxu0 0
      %829 = vmatpush1.bf16.xpose.msra.mxu0 0
      %830 = vmatprep.subr.bf16.mxu0 0
      %831 = vmatpush1.bf16.xpose.msra.mxu0 0
      %832 = vmatprep.subr.bf16.mxu0 0
      %833 = vmatpush1.bf16.xpose.msra.mxu0 0
      %834 = vmatprep.subr.bf16.mxu0 0
      %835 = vmatpush1.bf16.xpose.msra.mxu0 0
      %836 = vmatprep.subr.bf16.mxu0 0
      %837 = vmatpush1.bf16.xpose.msra.mxu0 0
      %838 = vmatprep.subr.bf16.mxu0 0
      %839 = vmatpush1.bf16.xpose.msra.mxu0 0
      %840 = vmatprep.subr.bf16.mxu0 0
      %841 = vmatpush1.bf16.xpose.msra.mxu0 0
      %842 = vmatprep.subr.bf16.mxu0 0
      %843 = vmatpush1.bf16.xpose.msra.mxu0 0
      %844 = vmatprep.subr.bf16.mxu0 0
      %845 = vmatpush1.bf16.xpose.msra.mxu0 0
      %846 = vmatprep.subr.bf16.mxu0 0
      %847 = vmatpush1.bf16.xpose.msra.mxu0 0
      %848 = vmatprep.subr.bf16.mxu0 0
      %849 = vmatpush1.bf16.xpose.msra.mxu0 0
      %850 = vmatprep.subr.bf16.mxu0 0
      %851 = vmatpush1.bf16.xpose.msra.mxu0 0
      %852 = vmatprep.subr.bf16.mxu0 0
      %853 = vmatpush1.bf16.xpose.msra.mxu0 0
      %854 = vmatprep.subr.bf16.mxu0 0
      %855 = vmatpush1.bf16.xpose.msra.mxu0 0
      %856 = vmatprep.subr.bf16.mxu0 0
      %857 = vmatpush1.bf16.xpose.msra.mxu0 0
      %858 = vmatprep.mubr.bf16.mxu0 0
      %859 = vmatmul.mubr.bf16.gmra.mrb[0].mxu0 %v821
      %v860 = vpop.f32.mrb[0].mxu0
      %v861 = vadd.f32 0.0, %v860
      %v862 = vpop.f32.mrb[0].mxu0
      %v863 = vpop.f32.mrb[0].mxu0
      %v864 = vadd.f32 0.0, %v863
      %v865 = vpop.f32.mrb[0].mxu0
      %866 = vdwg.mxu0
      %v867 = vmul.f32 %v861, 0.35355338
      %v868 = vmul.f32 %v864, 0.35355338
      %v869 = vsel %vm613, %v867, -inf
      %870 = vmax.xlane.f32.xlu0 %v869
      %v871 = vpop.xlane.xlu0 %870
      %v872 = vsel %vm617, %v868, -inf
      %873 = vmax.xlane.f32.xlu0 %v872
      %v874 = vpop.xlane.xlu0 %873
      %v875 = vsub.f32 %v867, %v871
      %v876 = vsub.f32 %v868, %v874
      %v877 = vmul.f32 %v875, 1.442695
      %v878 = vpow.pop %v877
      %v879 = vmul.f32 %v876, 1.442695
      %v880 = vpow.pop %v879
      %v881 = vsel %vm613, %v878, 0.0
      %882 = vadd.xlane.f32.xlu0 %v881
      %v883 = vpop.xlane.xlu0 %882
      %v884 = vsel %vm617, %v880, 0.0
      %885 = vadd.xlane.f32.xlu0 %v884
      %v886 = vpop.xlane.xlu0 %885
      %v887 = vrcp.pop %v883
      %v888 = vrcp.pop %v886
      %v889 = vmul.f32 %v878, %v887
      %v890 = vmul.f32 %v880, %v888
      %v891 = vpack.c.bf16 %v890, %v889
      %892 = vrot.lane.b32.xlu0 %v559, 48
      %v893 = vpop.permute.xlu0 %892
      %v895 = vsel %vm613, %v891, 0
      %v898 = vand.u32 %v893, %v646
      %900 = vmatprep.subr.bf16.mxu0 0
      %901 = vmatpush1.bf16.msra.mxu0 %v898
      %902 = vmatprep.subr.bf16.mxu0 0
      %903 = vmatpush1.bf16.msra.mxu0 0
      %904 = vmatprep.subr.bf16.mxu0 0
      %905 = vmatpush1.bf16.msra.mxu0 0
      %906 = vmatprep.subr.bf16.mxu0 0
      %907 = vmatpush1.bf16.msra.mxu0 0
      %908 = vmatprep.subr.bf16.mxu0 0
      %909 = vmatpush1.bf16.msra.mxu0 0
      %910 = vmatprep.subr.bf16.mxu0 0
      %911 = vmatpush1.bf16.msra.mxu0 0
      %912 = vmatprep.subr.bf16.mxu0 0
      %913 = vmatpush1.bf16.msra.mxu0 0
      %914 = vmatprep.subr.bf16.mxu0 0
      %915 = vmatpush1.bf16.msra.mxu0 0
      %916 = vmatprep.subr.bf16.mxu0 0
      %917 = vmatpush1.bf16.msra.mxu0 0
      %918 = vmatprep.subr.bf16.mxu0 0
      %919 = vmatpush1.bf16.msra.mxu0 0
      %920 = vmatprep.subr.bf16.mxu0 0
      %921 = vmatpush1.bf16.msra.mxu0 0
      %922 = vmatprep.subr.bf16.mxu0 0
      %923 = vmatpush1.bf16.msra.mxu0 0
      %924 = vmatprep.subr.bf16.mxu0 0
      %925 = vmatpush1.bf16.msra.mxu0 0
      %926 = vmatprep.subr.bf16.mxu0 0
      %927 = vmatpush1.bf16.msra.mxu0 0
      %928 = vmatprep.subr.bf16.mxu0 0
      %929 = vmatpush1.bf16.msra.mxu0 0
      %930 = vmatprep.subr.bf16.mxu0 0
      %931 = vmatpush1.bf16.msra.mxu0 0
      %932 = vmatprep.mubr.bf16.mxu0 0
      %933 = vmatmul.mubr.bf16.gmra.mrb[0].mxu0 %v895
      %v934 = vpop.f32.mrb[0].mxu0
      %v935 = vadd.f32 0.0, %v934
      %v936 = vpop.f32.mrb[0].mxu0
      %v937 = vpop.f32.mrb[0].mxu0
      %v938 = vadd.f32 0.0, %v937
      %v939 = vpop.f32.mrb[0].mxu0
      %940 = vdwg.mxu0
      %941 = vrot.lane.b32.xlu0 %v559, 104
      %v942 = vpop.permute.xlu0 %941
      %943 = vrot.lane.b32.xlu0 %v559, 72
      %v944 = vpop.permute.xlu0 %943
      %v946 = vsel %vm563, %v942, 0
      %v949 = vsel %vm563, %v944, 0
      %951 = vmatprep.subr.bf16.mxu0 0
      %952 = vmatpush1.bf16.xpose.msra.mxu0 %v949
      %953 = vmatprep.subr.bf16.mxu0 0
      %954 = vmatpush1.bf16.xpose.msra.mxu0 0
      %955 = vmatprep.subr.bf16.mxu0 0
      %956 = vmatpush1.bf16.xpose.msra.mxu0 0
      %957 = vmatprep.subr.bf16.mxu0 0
      %958 = vmatpush1.bf16.xpose.msra.mxu0 0
      %959 = vmatprep.subr.bf16.mxu0 0
      %960 = vmatpush1.bf16.xpose.msra.mxu0 0
      %961 = vmatprep.subr.bf16.mxu0 0
      %962 = vmatpush1.bf16.xpose.msra.mxu0 0
      %963 = vmatprep.subr.bf16.mxu0 0
      %964 = vmatpush1.bf16.xpose.msra.mxu0 0
      %965 = vmatprep.subr.bf16.mxu0 0
      %966 = vmatpush1.bf16.xpose.msra.mxu0 0
      %967 = vmatprep.subr.bf16.mxu0 0
      %968 = vmatpush1.bf16.xpose.msra.mxu0 0
      %969 = vmatprep.subr.bf16.mxu0 0
      %970 = vmatpush1.bf16.xpose.msra.mxu0 0
      %971 = vmatprep.subr.bf16.mxu0 0
      %972 = vmatpush1.bf16.xpose.msra.mxu0 0
      %973 = vmatprep.subr.bf16.mxu0 0
      %974 = vmatpush1.bf16.xpose.msra.mxu0 0
      %975 = vmatprep.subr.bf16.mxu0 0
      %976 = vmatpush1.bf16.xpose.msra.mxu0 0
      %977 = vmatprep.subr.bf16.mxu0 0
      %978 = vmatpush1.bf16.xpose.msra.mxu0 0
      %979 = vmatprep.subr.bf16.mxu0 0
      %980 = vmatpush1.bf16.xpose.msra.mxu0 0
      %981 = vmatprep.subr.bf16.mxu0 0
      %982 = vmatpush1.bf16.xpose.msra.mxu0 0
      %983 = vmatprep.mubr.bf16.mxu0 0
      %984 = vmatmul.mubr.bf16.gmra.mrb[0].mxu0 %v946
      %v985 = vpop.f32.mrb[0].mxu0
      %v986 = vadd.f32 0.0, %v985
      %v987 = vpop.f32.mrb[0].mxu0
      %v988 = vpop.f32.mrb[0].mxu0
      %v989 = vadd.f32 0.0, %v988
      %v990 = vpop.f32.mrb[0].mxu0
      %991 = vdwg.mxu0
      %v992 = vmul.f32 %v986, 0.35355338
      %v993 = vmul.f32 %v989, 0.35355338
      %v994 = vsel %vm613, %v992, -inf
      %995 = vmax.xlane.f32.xlu0 %v994
      %v996 = vpop.xlane.xlu0 %995
      %v997 = vsel %vm617, %v993, -inf
      %998 = vmax.xlane.f32.xlu0 %v997
      %v999 = vpop.xlane.xlu0 %998
      %v1000 = vsub.f32 %v992, %v996
      %v1001 = vsub.f32 %v993, %v999
      %v1002 = vmul.f32 %v1000, 1.442695
      %v1003 = vpow.pop %v1002
      %v1004 = vmul.f32 %v1001, 1.442695
      %v1005 = vpow.pop %v1004
      %v1006 = vsel %vm613, %v1003, 0.0
      %1007 = vadd.xlane.f32.xlu0 %v1006
      %v1008 = vpop.xlane.xlu0 %1007
      %v1009 = vsel %vm617, %v1005, 0.0
      %1010 = vadd.xlane.f32.xlu0 %v1009
      %v1011 = vpop.xlane.xlu0 %1010
      %v1012 = vrcp.pop %v1008
      %v1013 = vrcp.pop %v1011
      %v1014 = vmul.f32 %v1003, %v1012
      %v1015 = vmul.f32 %v1005, %v1013
      %v1016 = vpack.c.bf16 %v1015, %v1014
      %1017 = vrot.lane.b32.xlu0 %v559, 40
      %v1018 = vpop.permute.xlu0 %1017
      %v1020 = vsel %vm613, %v1016, 0
      %v1023 = vand.u32 %v1018, %v646
      %1025 = vmatprep.subr.bf16.mxu0 0
      %1026 = vmatpush1.bf16.msra.mxu0 %v1023
      %1027 = vmatprep.subr.bf16.mxu0 0
      %1028 = vmatpush1.bf16.msra.mxu0 0
      %1029 = vmatprep.subr.bf16.mxu0 0
      %1030 = vmatpush1.bf16.msra.mxu0 0
      %1031 = vmatprep.subr.bf16.mxu0 0
      %1032 = vmatpush1.bf16.msra.mxu0 0
      %1033 = vmatprep.subr.bf16.mxu0 0
      %1034 = vmatpush1.bf16.msra.mxu0 0
      %1035 = vmatprep.subr.bf16.mxu0 0
      %1036 = vmatpush1.bf16.msra.mxu0 0
      %1037 = vmatprep.subr.bf16.mxu0 0
      %1038 = vmatpush1.bf16.msra.mxu0 0
      %1039 = vmatprep.subr.bf16.mxu0 0
      %1040 = vmatpush1.bf16.msra.mxu0 0
      %1041 = vmatprep.subr.bf16.mxu0 0
      %1042 = vmatpush1.bf16.msra.mxu0 0
      %1043 = vmatprep.subr.bf16.mxu0 0
      %1044 = vmatpush1.bf16.msra.mxu0 0
      %1045 = vmatprep.subr.bf16.mxu0 0
      %1046 = vmatpush1.bf16.msra.mxu0 0
      %1047 = vmatprep.subr.bf16.mxu0 0
      %1048 = vmatpush1.bf16.msra.mxu0 0
      %1049 = vmatprep.subr.bf16.mxu0 0
      %1050 = vmatpush1.bf16.msra.mxu0 0
      %1051 = vmatprep.subr.bf16.mxu0 0
      %1052 = vmatpush1.bf16.msra.mxu0 0
      %1053 = vmatprep.subr.bf16.mxu0 0
      %1054 = vmatpush1.bf16.msra.mxu0 0
      %1055 = vmatprep.subr.bf16.mxu0 0
      %1056 = vmatpush1.bf16.msra.mxu0 0
      %1057 = vmatprep.mubr.bf16.mxu0 0
      %1058 = vmatmul.mubr.bf16.gmra.mrb[0].mxu0 %v1020
      %v1059 = vpop.f32.mrb[0].mxu0
      %v1060 = vadd.f32 0.0, %v1059
      %v1061 = vpop.f32.mrb[0].mxu0
      %v1062 = vpop.f32.mrb[0].mxu0
      %v1063 = vadd.f32 0.0, %v1062
      %v1064 = vpop.f32.mrb[0].mxu0
      %1065 = vdwg.mxu0
      %1068 = vrot.lane.b32.xlu0 %v810, 8
      %v1069 = vpop.permute.xlu0 %1068
      %1070 = vrot.lane.b32.xlu0 %v813, 8
      %v1071 = vpop.permute.xlu0 %1070
      %1076 = vrot.lane.b32.xlu0 %v935, 16
      %v1077 = vpop.permute.xlu0 %1076
      %1078 = vrot.lane.b32.xlu0 %v938, 16
      %v1079 = vpop.permute.xlu0 %1078
      %1084 = vrot.lane.b32.xlu0 %v1060, 24
      %v1085 = vpop.permute.xlu0 %1084
      %1086 = vrot.lane.b32.xlu0 %v1063, 24
      %v1087 = vpop.permute.xlu0 %1086
      %v1090 = vsel %vm563, %v685, %v1069
      %v1091 = vsel %vm563, %v688, %v1071
      %vm1092 = vcmask 130048
      %v1093 = vsel %vm1092, %v1090, %v1077
      %v1094 = vsel %vm1092, %v1091, %v1079
      %vm1095 = vcmask 195584
      %v1096 = vsel %vm1095, %v1093, %v1085
      %v1097 = vsel %vm1095, %v1094, %v1087
      %v1098 = vpack.c.bf16 %v1097, %v1096
      %v1099 = vld [vmem:[%s5] sm:$0xf]
      %v1100 = vld [vmem:[%s5 + $0x4] sm:$0xf]
      %v1101 = vld [vmem:[%s5 + $0x8] sm:$0xf]
      %v1102 = vld [vmem:[%s5 + $0xc] sm:$0xf]
      %v1103 = vld [vmem:[%s6] sm:$0x1]
      %v1105 = vlaneseq
      %v1106 = vshrl.u32 %v1105, 7
      %v1107 = vsub.s32 0, %v1106
      %v1108 = vrot.slane %v1103, %v1107
      %v1114 = vunpack.c.l.b16 %v1099
      %v1115 = vunpack.c.l.b16 %v1100
      %v1116 = vunpack.c.l.b16 %v1101
      %v1117 = vunpack.c.l.b16 %v1102
      %v1118 = vpack.c.b16 %v1115, %v1114
      %v1119 = vpack.c.b16 %v1117, %v1116
      %v1123 = vsel %vm446, %v1098, 0
      %1125 = vmatprep.subr.bf16.mxu0 0
      %1126 = vmatpush1.bf16.msra.mxu0 %v1118
      %1127 = vmatprep.subr.bf16.mxu0 0
      %1128 = vmatpush1.bf16.msra.mxu0 %v1119
      %1129 = vmatprep.subr.bf16.mxu0 0
      %1130 = vmatpush1.bf16.msra.mxu0 0
      %1131 = vmatprep.subr.bf16.mxu0 0
      %1132 = vmatpush1.bf16.msra.mxu0 0
      %1133 = vmatprep.subr.bf16.mxu0 0
      %1134 = vmatpush1.bf16.msra.mxu0 0
      %1135 = vmatprep.subr.bf16.mxu0 0
      %1136 = vmatpush1.bf16.msra.mxu0 0
      %1137 = vmatprep.subr.bf16.mxu0 0
      %1138 = vmatpush1.bf16.msra.mxu0 0
      %1139 = vmatprep.subr.bf16.mxu0 0
      %1140 = vmatpush1.bf16.msra.mxu0 0
      %1141 = vmatprep.subr.bf16.mxu0 0
      %1142 = vmatpush1.bf16.msra.mxu0 0
      %1143 = vmatprep.subr.bf16.mxu0 0
      %1144 = vmatpush1.bf16.msra.mxu0 0
      %1145 = vmatprep.subr.bf16.mxu0 0
      %1146 = vmatpush1.bf16.msra.mxu0 0
      %1147 = vmatprep.subr.bf16.mxu0 0
      %1148 = vmatpush1.bf16.msra.mxu0 0
      %1149 = vmatprep.subr.bf16.mxu0 0
      %1150 = vmatpush1.bf16.msra.mxu0 0
      %1151 = vmatprep.subr.bf16.mxu0 0
      %1152 = vmatpush1.bf16.msra.mxu0 0
      %1153 = vmatprep.subr.bf16.mxu0 0
      %1154 = vmatpush1.bf16.msra.mxu0 0
      %1155 = vmatprep.subr.bf16.mxu0 0
      %1156 = vmatpush1.bf16.msra.mxu0 0
      %1157 = vmatprep.mubr.bf16.mxu0 0
      %1158 = vmatmul.mubr.bf16.gmra.mrb[0].mxu0 %v1123
      %v1159 = vpop.f32.mrb[0].mxu0
      %v1160 = vadd.f32 %v1108, %v1159
      %v1161 = vpop.f32.mrb[0].mxu0
      %v1162 = vpop.f32.mrb[0].mxu0
      %v1163 = vadd.f32 %v1108, %v1162
      %v1164 = vpop.f32.mrb[0].mxu0
      %1165 = vdwg.mxu0
      %v1166 = vadd.f32 %v442, %v1160
      %v1167 = vadd.f32 %v443, %v1163
      %v1168 = vld [vmem:[%s7] sm:$0x1]
      %v1169 = vld [vmem:[%s8] sm:$0x1]
      %v1170 = vsel %vm446, %v1166, 0.0
      %1171 = vadd.xlane.f32.xlu0 %v1170
      %v1172 = vpop.xlane.xlu0 %1171
      %v1173 = vsel %vm450, %v1167, 0.0
      %1174 = vadd.xlane.f32.xlu0 %v1173
      %v1175 = vpop.xlane.xlu0 %1174
      %v1176 = vmul.f32 %v1172, %v454
      %v1177 = vmul.f32 %v1175, %v454
      %v1178 = vsub.f32 %v1166, %v1176
      %v1179 = vsub.f32 %v1167, %v1177
      %v1180 = vmul.f32 %v1178, %v1178
      %v1181 = vmul.f32 %v1179, %v1179
      %v1182 = vsel %vm446, %v1180, 0.0
      %1183 = vadd.xlane.f32.xlu0 %v1182
      %v1184 = vpop.xlane.xlu0 %1183
      %v1185 = vsel %vm450, %v1181, 0.0
      %1186 = vadd.xlane.f32.xlu0 %v1185
      %v1187 = vpop.xlane.xlu0 %1186
      %v1188 = vmul.f32 %v1184, %v454
      %v1189 = vmul.f32 %v1187, %v454
      %v1190 = vadd.f32 %v1188, 1e-05
      %v1191 = vadd.f32 %v1189, 1e-05
      %v1192 = vrsqrt.pop %v1190
      %v1193 = vrsqrt.pop %v1191
      %v1194 = vmul.f32 %v1178, %v1192
      %v1195 = vmul.f32 %v1179, %v1193
      %v1197 = vlaneseq
      %v1198 = vshrl.u32 %v1197, 7
      %v1199 = vsub.s32 0, %v1198
      %v1200 = vrot.slane %v1168, %v1199
      %v1202 = vmul.f32 %v1194, %v1200
      %v1203 = vmul.f32 %v1195, %v1200
      %v1205 = vlaneseq
      %v1206 = vshrl.u32 %v1205, 7
      %v1207 = vsub.s32 0, %v1206
      %v1208 = vrot.slane %v1169, %v1207
      %v1210 = vadd.f32 %v1202, %v1208
      %v1211 = vadd.f32 %v1203, %v1208
      %v1212 = vpack.c.bf16 %v1211, %v1210
      %v1213 = vld [vmem:[%s9] sm:$0xf]
      %v1214 = vld [vmem:[%s9 + $0x4] sm:$0xf]
      %v1215 = vld [vmem:[%s9 + $0x8] sm:$0xf]
      %v1216 = vld [vmem:[%s9 + $0xc] sm:$0xf]
      %v1217 = vld [vmem:[%s10] sm:$0x1]
      %v1219 = vlaneseq
      %v1220 = vshrl.u32 %v1219, 7
      %v1221 = vsub.s32 0, %v1220
      %v1222 = vrot.slane %v1217, %v1221
      %v1228 = vunpack.c.l.b16 %v1213
      %v1229 = vunpack.c.l.b16 %v1214
      %v1230 = vunpack.c.l.b16 %v1215
      %v1231 = vunpack.c.l.b16 %v1216
      %v1232 = vpack.c.b16 %v1229, %v1228
      %v1233 = vpack.c.b16 %v1231, %v1230
      %v1237 = vsel %vm446, %v1212, 0
      %1239 = vmatprep.subr.bf16.mxu0 0
      %1240 = vmatpush1.bf16.msra.mxu0 %v1232
      %1241 = vmatprep.subr.bf16.mxu0 0
      %1242 = vmatpush1.bf16.msra.mxu0 %v1233
      %1243 = vmatprep.subr.bf16.mxu0 0
      %1244 = vmatpush1.bf16.msra.mxu0 0
      %1245 = vmatprep.subr.bf16.mxu0 0
      %1246 = vmatpush1.bf16.msra.mxu0 0
      %1247 = vmatprep.subr.bf16.mxu0 0
      %1248 = vmatpush1.bf16.msra.mxu0 0
      %1249 = vmatprep.subr.bf16.mxu0 0
      %1250 = vmatpush1.bf16.msra.mxu0 0
      %1251 = vmatprep.subr.bf16.mxu0 0
      %1252 = vmatpush1.bf16.msra.mxu0 0
      %1253 = vmatprep.subr.bf16.mxu0 0
      %1254 = vmatpush1.bf16.msra.mxu0 0
      %1255 = vmatprep.subr.bf16.mxu0 0
      %1256 = vmatpush1.bf16.msra.mxu0 0
      %1257 = vmatprep.subr.bf16.mxu0 0
      %1258 = vmatpush1.bf16.msra.mxu0 0
      %1259 = vmatprep.subr.bf16.mxu0 0
      %1260 = vmatpush1.bf16.msra.mxu0 0
      %1261 = vmatprep.subr.bf16.mxu0 0
      %1262 = vmatpush1.bf16.msra.mxu0 0
      %1263 = vmatprep.subr.bf16.mxu0 0
      %1264 = vmatpush1.bf16.msra.mxu0 0
      %1265 = vmatprep.subr.bf16.mxu0 0
      %1266 = vmatpush1.bf16.msra.mxu0 0
      %1267 = vmatprep.subr.bf16.mxu0 0
      %1268 = vmatpush1.bf16.msra.mxu0 0
      %1269 = vmatprep.subr.bf16.mxu0 0
      %1270 = vmatpush1.bf16.msra.mxu0 0
      %1271 = vmatprep.mubr.bf16.mxu0 0
      %1272 = vmatmul.mubr.bf16.gmra.mrb[0].mxu0 %v1237
      %v1273 = vpop.f32.mrb[0].mxu0
      %v1274 = vadd.f32 %v1222, %v1273
      %v1275 = vpop.f32.mrb[0].mxu0
      %v1276 = vpop.f32.mrb[0].mxu0
      %v1277 = vadd.f32 %v1222, %v1276
      %v1278 = vpop.f32.mrb[0].mxu0
      %1279 = vdwg.mxu0
      %v1280 = vmul.f32 %v1274, %v1274
      %v1281 = vmul.f32 %v1277, %v1277
      %v1282 = vmul.f32 %v1274, %v1280
      %v1283 = vmul.f32 %v1277, %v1281
      %v1284 = vmul.f32 %v1282, 0.044715
      %v1285 = vmul.f32 %v1283, 0.044715
      %v1286 = vadd.f32 %v1274, %v1284
      %v1287 = vadd.f32 %v1277, %v1285
      %v1288 = vmul.f32 %v1286, 0.7978846
      %v1289 = vmul.f32 %v1287, 0.7978846
      %v1290 = vtanh.pop %v1288
      %v1291 = vtanh.pop %v1289
      %v1292 = vadd.f32 %v1290, 1.0
      %v1293 = vadd.f32 %v1291, 1.0
      %v1294 = vmul.f32 %v1292, 0.5
      %v1295 = vmul.f32 %v1293, 0.5
      %v1296 = vmul.f32 %v1274, %v1294
      %v1297 = vmul.f32 %v1277, %v1295
      %v1298 = vpack.c.bf16 %v1297, %v1296
      %v1299 = vld [vmem:[%s11] sm:$0xf]
      %v1300 = vld [vmem:[%s11 + $0x4] sm:$0xf]
      %v1301 = vld [vmem:[%s11 + $0x8] sm:$0xf]
      %v1302 = vld [vmem:[%s11 + $0xc] sm:$0xf]
      %v1303 = vld [vmem:[%s11 + $0x10] sm:$0xf]
      %v1304 = vld [vmem:[%s11 + $0x14] sm:$0xf]
      %v1305 = vld [vmem:[%s11 + $0x18] sm:$0xf]
      %v1306 = vld [vmem:[%s11 + $0x1c] sm:$0xf]
      %v1307 = vld [vmem:[%s11 + $0x20] sm:$0xf]
      %v1308 = vld [vmem:[%s11 + $0x24] sm:$0xf]
      %v1309 = vld [vmem:[%s11 + $0x28] sm:$0xf]
      %v1310 = vld [vmem:[%s11 + $0x2c] sm:$0xf]
      %v1311 = vld [vmem:[%s11 + $0x30] sm:$0xf]
      %v1312 = vld [vmem:[%s11 + $0x34] sm:$0xf]
      %v1313 = vld [vmem:[%s11 + $0x38] sm:$0xf]
      %v1314 = vld [vmem:[%s11 + $0x3c] sm:$0xf]
      %v1315 = vld [vmem:[%s12] sm:$0x1]
      %v1317 = vlaneseq
      %v1318 = vshrl.u32 %v1317, 7
      %v1319 = vsub.s32 0, %v1318
      %v1320 = vrot.slane %v1315, %v1319
      %v1338 = vunpack.c.l.b16 %v1299
      %v1339 = vunpack.c.l.b16 %v1300
      %v1340 = vunpack.c.l.b16 %v1301
      %v1341 = vunpack.c.l.b16 %v1302
      %v1342 = vunpack.c.l.b16 %v1303
      %v1343 = vunpack.c.l.b16 %v1304
      %v1344 = vunpack.c.l.b16 %v1305
      %v1345 = vunpack.c.l.b16 %v1306
      %v1346 = vunpack.c.l.b16 %v1307
      %v1347 = vunpack.c.l.b16 %v1308
      %v1348 = vunpack.c.l.b16 %v1309
      %v1349 = vunpack.c.l.b16 %v1310
      %v1350 = vunpack.c.l.b16 %v1311
      %v1351 = vunpack.c.l.b16 %v1312
      %v1352 = vunpack.c.l.b16 %v1313
      %v1353 = vunpack.c.l.b16 %v1314
      %v1354 = vpack.c.b16 %v1339, %v1338
      %v1355 = vpack.c.b16 %v1341, %v1340
      %v1356 = vpack.c.b16 %v1343, %v1342
      %v1357 = vpack.c.b16 %v1345, %v1344
      %v1358 = vpack.c.b16 %v1347, %v1346
      %v1359 = vpack.c.b16 %v1349, %v1348
      %v1360 = vpack.c.b16 %v1351, %v1350
      %v1361 = vpack.c.b16 %v1353, %v1352
      %1370 = vmatprep.subr.bf16.mxu0 0
      %1371 = vmatpush1.bf16.msra.mxu0 %v1354
      %1372 = vmatprep.subr.bf16.mxu0 0
      %1373 = vmatpush1.bf16.msra.mxu0 %v1355
      %1374 = vmatprep.subr.bf16.mxu0 0
      %1375 = vmatpush1.bf16.msra.mxu0 %v1356
      %1376 = vmatprep.subr.bf16.mxu0 0
      %1377 = vmatpush1.bf16.msra.mxu0 %v1357
      %1378 = vmatprep.subr.bf16.mxu0 0
      %1379 = vmatpush1.bf16.msra.mxu0 %v1358
      %1380 = vmatprep.subr.bf16.mxu0 0
      %1381 = vmatpush1.bf16.msra.mxu0 %v1359
      %1382 = vmatprep.subr.bf16.mxu0 0
      %1383 = vmatpush1.bf16.msra.mxu0 %v1360
      %1384 = vmatprep.subr.bf16.mxu0 0
      %1385 = vmatpush1.bf16.msra.mxu0 %v1361
      %1386 = vmatprep.subr.bf16.mxu0 0
      %1387 = vmatpush1.bf16.msra.mxu0 0
      %1388 = vmatprep.subr.bf16.mxu0 0
      %1389 = vmatpush1.bf16.msra.mxu0 0
      %1390 = vmatprep.subr.bf16.mxu0 0
      %1391 = vmatpush1.bf16.msra.mxu0 0
      %1392 = vmatprep.subr.bf16.mxu0 0
      %1393 = vmatpush1.bf16.msra.mxu0 0
      %1394 = vmatprep.subr.bf16.mxu0 0
      %1395 = vmatpush1.bf16.msra.mxu0 0
      %1396 = vmatprep.subr.bf16.mxu0 0
      %1397 = vmatpush1.bf16.msra.mxu0 0
      %1398 = vmatprep.subr.bf16.mxu0 0
      %1399 = vmatpush1.bf16.msra.mxu0 0
      %1400 = vmatprep.subr.bf16.mxu0 0
      %1401 = vmatpush1.bf16.msra.mxu0 0
      %1402 = vmatprep.mubr.bf16.mxu0 0
      %1403 = vmatmul.mubr.bf16.gmra.mrb[0].mxu0 %v1298
      %v1404 = vpop.f32.mrb[0].mxu0
      %v1405 = vadd.f32 %v1320, %v1404
      %v1406 = vpop.f32.mrb[0].mxu0
      %v1407 = vpop.f32.mrb[0].mxu0
      %v1408 = vadd.f32 %v1320, %v1407
      %v1409 = vpop.f32.mrb[0].mxu0
      %1410 = vdwg.mxu0
      %v1411 = vadd.f32 %v1166, %v1405
      %v1412 = vadd.f32 %v1167, %v1408
      %1413 = vst.msk [vmem:[%s440] sm:$0xff] %vm446, %v1411
      %1414 = vst.msk [vmem:[%s440 + $0x8] sm:$0x1] %vm450, %v1412
      %p1415 = scmp.lt.s32.totalorder %s24, 1
      %s1416 = scalar_select %p1415, %s24, 1
      %s1417 = smul.addr %s1416, 2
      %s1418 = smul.addr %s1417, 8
      %s1419 = scalar_lea.vmem %s13, %s1418
      // Predicated region
      $region73: #{deno_mae_forward.10} parent=71 // pred_check
        %p1420 = pneg %p320
      $region74: #{deno_mae_forward.10} parent=71 // pred_check_branch
        %1422 = sbr.rel (%p1420) target = $region76
      $region75: #{deno_mae_forward.10} parent=71 // pred_region
        _
      $region76: #{deno_mae_forward.10} parent=71 // pred_fallthru
        _
    $region72: #{deno_mae_forward.10} parent=5 // pred_fallthru
      _
    %p1423 = scmp.le.s32.totalorder 2, %s19
    // Predicated region
    $region77: #{deno_mae_forward.10} parent=5 // pred_check
      %p1424 = pneg %p1423
    $region78: #{deno_mae_forward.10} parent=5 // pred_check_branch
      %1426 = sbr.rel (%p1424) target = $region80
    $region79: #{deno_mae_forward.10} parent=5 // pred_region
      %s1427 = ssub.s32 %s19, 2
      // Predicated region
      $region81: #{deno_mae_forward.10} parent=79 // pred_check
        %p1428 = pneg %p326
      $region82: #{deno_mae_forward.10} parent=79 // pred_check_branch
        %1430 = sbr.rel (%p1428) target = $region84
      $region83: #{deno_mae_forward.10} parent=79 // pred_region
        %p1431 = scmp.lt.s32.totalorder %s25, 1
        %s1432 = scalar_select %p1431, %s25, 1
        %s1433 = smul.addr %s1432, 2
        %s1434 = smul.addr %s1433, 8
        %s1435 = scalar_lea.vmem %s13, %s1434
      $region84: #{deno_mae_forward.10} parent=79 // pred_fallthru
        _
    $region80: #{deno_mae_forward.10} parent=5 // pred_fallthru
      _
  $region6: #{deno_mae_forward.10} parent=0 // loop_footer
    %s23 = sadd.s32 1, %s19
  $region7: #{deno_mae_forward.10} parent=0 // loop_footer_branch
    %18 = sbr.rel target = $region3
  $region8: #{deno_mae_forward.10} parent=0 // loop_exit
    _

// kernel: deno_mae_forward.16
$region0: #{deno_mae_forward.16}
  #allocation0 [shape = 'u32[]', space=smem, size = 0x4, offset = 0x4, fixed_abs, tag = 'smem constant byte address 0x4 - core index']
  #allocation1 [shape = 'u32[144,128]{1,0:T(1,128)}', space=vmem, size = 0x12000, scoped, tag = 'internal scratch']
  %s0 = inlined_call_operand.vmem [shape: f32[2,4,32], index: 0, kind: input, shape index: {}]
  %s1 = inlined_call_operand.vmem [shape: f32[1,32], index: 1, kind: input, shape index: {}]
  %s2 = inlined_call_operand.vmem [shape: f32[1,32], index: 2, kind: input, shape index: {}]
  %s3 = inlined_call_operand.vmem [shape: bf16[32,96], index: 3, kind: input, shape index: {}]
  %s4 = inlined_call_operand.vmem [shape: f32[1,96], index: 4, kind: input, shape index: {}]
  %s5 = inlined_call_operand.vmem [shape: bf16[32,32], index: 5, kind: input, shape index: {}]
  %s6 = inlined_call_operand.vmem [shape: f32[1,32], index: 6, kind: input, shape index: {}]
  %s7 = inlined_call_operand.vmem [shape: f32[1,32], index: 7, kind: input, shape index: {}]
  %s8 = inlined_call_operand.vmem [shape: f32[1,32], index: 8, kind: input, shape index: {}]
  %s9 = inlined_call_operand.vmem [shape: bf16[32,128], index: 9, kind: input, shape index: {}]
  %s10 = inlined_call_operand.vmem [shape: f32[1,128], index: 10, kind: input, shape index: {}]
  %s11 = inlined_call_operand.vmem [shape: bf16[128,32], index: 11, kind: input, shape index: {}]
  %s12 = inlined_call_operand.vmem [shape: f32[1,32], index: 12, kind: input, shape index: {}]
  %s13 = inlined_call_operand.vmem [shape: f32[2,4,32], index: 13, kind: output, shape index: {}]
  %s14 = sld [smem:[#allocation0]]
  $region85: #{deno_mae_forward.16} parent=0
    _
  %s16 = ssub.s32 1, %s14
  %s17 = scalar_select 0, %s16, %s14
  loop: start=0, step=1, limit=4
  $region2: #{deno_mae_forward.16} parent=0 // loop_pre_header
    _
  $region3: #{deno_mae_forward.16} parent=0 // loop_header
    %s19 = sphi 0, %s23
    %p20 = scmp.ge.s32.totalorder %s19, 4
    %s29 = sphi 0, %s31
    %s32 = sphi 0, %s29
    %s33 = sphi 0, %s32
    %s49 = sphi 0, %s33
    %s53 = sphi 0, %s53
    %s55 = sphi 0, %s53
    %s56 = sphi 0, %s55
    %s70 = sphi 0, %s56
    %s74 = sphi 0, %s74
    %s76 = sphi 0, %s74
    %s77 = sphi 0, %s76
    %s91 = sphi 0, %s77
    %s95 = sphi 0, %s95
    %s97 = sphi 0, %s95
    %s98 = sphi 0, %s97
    %s112 = sphi 0, %s98
    %s116 = sphi 0, %s116
    %s118 = sphi 0, %s116
    %s119 = sphi 0, %s118
    %s133 = sphi 0, %s119
    %s137 = sphi 0, %s137
    %s139 = sphi 0, %s137
    %s140 = sphi 0, %s139
    %s154 = sphi 0, %s140
    %s158 = sphi 0, %s158
    %s160 = sphi 0, %s158
    %s161 = sphi 0, %s160
    %s175 = sphi 0, %s161
    %s179 = sphi 0, %s179
    %s181 = sphi 0, %s179
    %s182 = sphi 0, %s181
    %s196 = sphi 0, %s182
    %s200 = sphi 0, %s200
    %s202 = sphi 0, %s200
    %s203 = sphi 0, %s202
    %s217 = sphi 0, %s203
    %s221 = sphi 0, %s221
    %s223 = sphi 0, %s221
    %s224 = sphi 0, %s223
    %s238 = sphi 0, %s224
    %s242 = sphi 0, %s242
    %s244 = sphi 0, %s242
    %s245 = sphi 0, %s244
    %s259 = sphi 0, %s245
    %s263 = sphi 0, %s263
    %s265 = sphi 0, %s263
    %s266 = sphi 0, %s265
    %s280 = sphi 0, %s266
    %s284 = sphi 0, %s284
    %s286 = sphi 0, %s284
    %s287 = sphi 0, %s286
    %s301 = sphi 0, %s287
    %s307 = sphi 0, %s309
    %s310 = sphi 0, %s307
    %s311 = sphi 0, %s310
    %s327 = sphi 0, %s311
  $region4: #{deno_mae_forward.16} parent=0 // loop_header_branch
    %22 = sbr.rel (%p20) target = $region8
  $region5: #{deno_mae_forward.16} parent=0 // loop_body
    %s24 = ssub.s32 %s19, 1
    %s25 = ssub.s32 %s19, 2
    %s26 = sadd.s32 %s19, 1
    %s27 = ssub.s32 %s19, %s26
    %p28 = scmp.eq.s32.totalorder %s27, 0
    %s30 = sadd.s32 %s29, 1
    %s31 = scalar_select %p28, %s29, %s30
    %p34 = pneg %p28
    %p35 = scmp.eq.s32.totalorder %s19, 1
    %p36 = por %p34, %p35
    %p37 = scmp.ne.s32.totalorder %s29, %s32
    %p38 = scmp.eq.s32.totalorder %s19, 0
    %p39 = por %p37, %p38
    %p40 = scmp.ne.s32.totalorder %s29, %s32
    %p41 = scmp.eq.s32.totalorder %s24, 1
    %p42 = por %p40, %p41
    %p43 = scmp.ne.s32.totalorder %s32, %s33
    %p44 = scmp.eq.s32.totalorder %s24, 0
    %p45 = por %p43, %p44
    %p46 = scmp.ne.s32.totalorder %s32, %s33
    %p47 = scmp.eq.s32.totalorder %s25, 1
    %p48 = por %p46, %p47
    %p50 = scmp.ne.s32.totalorder %s33, %s49
    %p51 = scmp.eq.s32.totalorder %s25, 0
    %p52 = por %p50, %p51
    %s54 = sadd.s32 %s53, 1
    %p57 = scmp.eq.s32.totalorder %s19, 1
    %p58 = scmp.ne.s32.totalorder %s53, %s55
    %p59 = scmp.eq.s32.totalorder %s19, 0
    %p60 = por %p58, %p59
    %p61 = scmp.ne.s32.totalorder %s53, %s55
    %p62 = scmp.eq.s32.totalorder %s24, 1
    %p63 = por %p61, %p62
    %p64 = scmp.ne.s32.totalorder %s55, %s56
    %p65 = scmp.eq.s32.totalorder %s24, 0
    %p66 = por %p64, %p65
    %p67 = scmp.ne.s32.totalorder %s55, %s56
    %p68 = scmp.eq.s32.totalorder %s25, 1
    %p69 = por %p67, %p68
    %p71 = scmp.ne.s32.totalorder %s56, %s70
    %p72 = scmp.eq.s32.totalorder %s25, 0
    %p73 = por %p71, %p72
    %s75 = sadd.s32 %s74, 1
    %p78 = scmp.eq.s32.totalorder %s19, 1
    %p79 = scmp.ne.s32.totalorder %s74, %s76
    %p80 = scmp.eq.s32.totalorder %s19, 0
    %p81 = por %p79, %p80
    %p82 = scmp.ne.s32.totalorder %s74, %s76
    %p83 = scmp.eq.s32.totalorder %s24, 1
    %p84 = por %p82, %p83
    %p85 = scmp.ne.s32.totalorder %s76, %s77
    %p86 = scmp.eq.s32.totalorder %s24, 0
    %p87 = por %p85, %p86
    %p88 = scmp.ne.s32.totalorder %s76, %s77
    %p89 = scmp.eq.s32.totalorder %s25, 1
    %p90 = por %p88, %p89
    %p92 = scmp.ne.s32.totalorder %s77, %s91
    %p93 = scmp.eq.s32.totalorder %s25, 0
    %p94 = por %p92, %p93
    %s96 = sadd.s32 %s95, 1
    %p99 = scmp.eq.s32.totalorder %s19, 1
    %p100 = scmp.ne.s32.totalorder %s95, %s97
    %p101 = scmp.eq.s32.totalorder %s19, 0
    %p102 = por %p100, %p101
    %p103 = scmp.ne.s32.totalorder %s95, %s97
    %p104 = scmp.eq.s32.totalorder %s24, 1
    %p105 = por %p103, %p104
    %p106 = scmp.ne.s32.totalorder %s97, %s98
    %p107 = scmp.eq.s32.totalorder %s24, 0
    %p108 = por %p106, %p107
    %p109 = scmp.ne.s32.totalorder %s97, %s98
    %p110 = scmp.eq.s32.totalorder %s25, 1
    %p111 = por %p109, %p110
    %p113 = scmp.ne.s32.totalorder %s98, %s112
    %p114 = scmp.eq.s32.totalorder %s25, 0
    %p115 = por %p113, %p114
    %s117 = sadd.s32 %s116, 1
    %p120 = scmp.eq.s32.totalorder %s19, 1
    %p121 = scmp.ne.s32.totalorder %s116, %s118
    %p122 = scmp.eq.s32.totalorder %s19, 0
    %p123 = por %p121, %p122
    %p124 = scmp.ne.s32.totalorder %s116, %s118
    %p125 = scmp.eq.s32.totalorder %s24, 1
    %p126 = por %p124, %p125
    %p127 = scmp.ne.s32.totalorder %s118, %s119
    %p128 = scmp.eq.s32.totalorder %s24, 0
    %p129 = por %p127, %p128
    %p130 = scmp.ne.s32.totalorder %s118, %s119
    %p131 = scmp.eq.s32.totalorder %s25, 1
    %p132 = por %p130, %p131
    %p134 = scmp.ne.s32.totalorder %s119, %s133
    %p135 = scmp.eq.s32.totalorder %s25, 0
    %p136 = por %p134, %p135
    %s138 = sadd.s32 %s137, 1
    %p141 = scmp.eq.s32.totalorder %s19, 1
    %p142 = scmp.ne.s32.totalorder %s137, %s139
    %p143 = scmp.eq.s32.totalorder %s19, 0
    %p144 = por %p142, %p143
    %p145 = scmp.ne.s32.totalorder %s137, %s139
    %p146 = scmp.eq.s32.totalorder %s24, 1
    %p147 = por %p145, %p146
    %p148 = scmp.ne.s32.totalorder %s139, %s140
    %p149 = scmp.eq.s32.totalorder %s24, 0
    %p150 = por %p148, %p149
    %p151 = scmp.ne.s32.totalorder %s139, %s140
    %p152 = scmp.eq.s32.totalorder %s25, 1
    %p153 = por %p151, %p152
    %p155 = scmp.ne.s32.totalorder %s140, %s154
    %p156 = scmp.eq.s32.totalorder %s25, 0
    %p157 = por %p155, %p156
    %s159 = sadd.s32 %s158, 1
    %p162 = scmp.eq.s32.totalorder %s19, 1
    %p163 = scmp.ne.s32.totalorder %s158, %s160
    %p164 = scmp.eq.s32.totalorder %s19, 0
    %p165 = por %p163, %p164
    %p166 = scmp.ne.s32.totalorder %s158, %s160
    %p167 = scmp.eq.s32.totalorder %s24, 1
    %p168 = por %p166, %p167
    %p169 = scmp.ne.s32.totalorder %s160, %s161
    %p170 = scmp.eq.s32.totalorder %s24, 0
    %p171 = por %p169, %p170
    %p172 = scmp.ne.s32.totalorder %s160, %s161
    %p173 = scmp.eq.s32.totalorder %s25, 1
    %p174 = por %p172, %p173
    %p176 = scmp.ne.s32.totalorder %s161, %s175
    %p177 = scmp.eq.s32.totalorder %s25, 0
    %p178 = por %p176, %p177
    %s180 = sadd.s32 %s179, 1
    %p183 = scmp.eq.s32.totalorder %s19, 1
    %p184 = scmp.ne.s32.totalorder %s179, %s181
    %p185 = scmp.eq.s32.totalorder %s19, 0
    %p186 = por %p184, %p185
    %p187 = scmp.ne.s32.totalorder %s179, %s181
    %p188 = scmp.eq.s32.totalorder %s24, 1
    %p189 = por %p187, %p188
    %p190 = scmp.ne.s32.totalorder %s181, %s182
    %p191 = scmp.eq.s32.totalorder %s24, 0
    %p192 = por %p190, %p191
    %p193 = scmp.ne.s32.totalorder %s181, %s182
    %p194 = scmp.eq.s32.totalorder %s25, 1
    %p195 = por %p193, %p194
    %p197 = scmp.ne.s32.totalorder %s182, %s196
    %p198 = scmp.eq.s32.totalorder %s25, 0
    %p199 = por %p197, %p198
    %s201 = sadd.s32 %s200, 1
    %p204 = scmp.eq.s32.totalorder %s19, 1
    %p205 = scmp.ne.s32.totalorder %s200, %s202
    %p206 = scmp.eq.s32.totalorder %s19, 0
    %p207 = por %p205, %p206
    %p208 = scmp.ne.s32.totalorder %s200, %s202
    %p209 = scmp.eq.s32.totalorder %s24, 1
    %p210 = por %p208, %p209
    %p211 = scmp.ne.s32.totalorder %s202, %s203
    %p212 = scmp.eq.s32.totalorder %s24, 0
    %p213 = por %p211, %p212
    %p214 = scmp.ne.s32.totalorder %s202, %s203
    %p215 = scmp.eq.s32.totalorder %s25, 1
    %p216 = por %p214, %p215
    %p218 = scmp.ne.s32.totalorder %s203, %s217
    %p219 = scmp.eq.s32.totalorder %s25, 0
    %p220 = por %p218, %p219
    %s222 = sadd.s32 %s221, 1
    %p225 = scmp.eq.s32.totalorder %s19, 1
    %p226 = scmp.ne.s32.totalorder %s221, %s223
    %p227 = scmp.eq.s32.totalorder %s19, 0
    %p228 = por %p226, %p227
    %p229 = scmp.ne.s32.totalorder %s221, %s223
    %p230 = scmp.eq.s32.totalorder %s24, 1
    %p231 = por %p229, %p230
    %p232 = scmp.ne.s32.totalorder %s223, %s224
    %p233 = scmp.eq.s32.totalorder %s24, 0
    %p234 = por %p232, %p233
    %p235 = scmp.ne.s32.totalorder %s223, %s224
    %p236 = scmp.eq.s32.totalorder %s25, 1
    %p237 = por %p235, %p236
    %p239 = scmp.ne.s32.totalorder %s224, %s238
    %p240 = scmp.eq.s32.totalorder %s25, 0
    %p241 = por %p239, %p240
    %s243 = sadd.s32 %s242, 1
    %p246 = scmp.eq.s32.totalorder %s19, 1
    %p247 = scmp.ne.s32.totalorder %s242, %s244
    %p248 = scmp.eq.s32.totalorder %s19, 0
    %p249 = por %p247, %p248
    %p250 = scmp.ne.s32.totalorder %s242, %s244
    %p251 = scmp.eq.s32.totalorder %s24, 1
    %p252 = por %p250, %p251
    %p253 = scmp.ne.s32.totalorder %s244, %s245
    %p254 = scmp.eq.s32.totalorder %s24, 0
    %p255 = por %p253, %p254
    %p256 = scmp.ne.s32.totalorder %s244, %s245
    %p257 = scmp.eq.s32.totalorder %s25, 1
    %p258 = por %p256, %p257
    %p260 = scmp.ne.s32.totalorder %s245, %s259
    %p261 = scmp.eq.s32.totalorder %s25, 0
    %p262 = por %p260, %p261
    %s264 = sadd.s32 %s263, 1
    %p267 = scmp.eq.s32.totalorder %s19, 1
    %p268 = scmp.ne.s32.totalorder %s263, %s265
    %p269 = scmp.eq.s32.totalorder %s19, 0
    %p270 = por %p268, %p269
    %p271 = scmp.ne.s32.totalorder %s263, %s265
    %p272 = scmp.eq.s32.totalorder %s24, 1
    %p273 = por %p271, %p272
    %p274 = scmp.ne.s32.totalorder %s265, %s266
    %p275 = scmp.eq.s32.totalorder %s24, 0
    %p276 = por %p274, %p275
    %p277 = scmp.ne.s32.totalorder %s265, %s266
    %p278 = scmp.eq.s32.totalorder %s25, 1
    %p279 = por %p277, %p278
    %p281 = scmp.ne.s32.totalorder %s266, %s280
    %p282 = scmp.eq.s32.totalorder %s25, 0
    %p283 = por %p281, %p282
    %s285 = sadd.s32 %s284, 1
    %p288 = scmp.eq.s32.totalorder %s19, 1
    %p289 = scmp.ne.s32.totalorder %s284, %s286
    %p290 = scmp.eq.s32.totalorder %s19, 0
    %p291 = por %p289, %p290
    %p292 = scmp.ne.s32.totalorder %s284, %s286
    %p293 = scmp.eq.s32.totalorder %s24, 1
    %p294 = por %p292, %p293
    %p295 = scmp.ne.s32.totalorder %s286, %s287
    %p296 = scmp.eq.s32.totalorder %s24, 0
    %p297 = por %p295, %p296
    %p298 = scmp.ne.s32.totalorder %s286, %s287
    %p299 = scmp.eq.s32.totalorder %s25, 1
    %p300 = por %p298, %p299
    %p302 = scmp.ne.s32.totalorder %s287, %s301
    %p303 = scmp.eq.s32.totalorder %s25, 0
    %p304 = por %p302, %p303
    %s305 = ssub.s32 %s19, %s26
    %p306 = scmp.eq.s32.totalorder %s305, 0
    %s308 = sadd.s32 %s307, 1
    %s309 = scalar_select %p306, %s307, %s308
    %p312 = pneg %p306
    %p313 = scmp.eq.s32.totalorder %s19, 1
    %p314 = por %p312, %p313
    %p315 = scmp.ne.s32.totalorder %s307, %s310
    %p316 = scmp.eq.s32.totalorder %s19, 0
    %p317 = por %p315, %p316
    %p318 = scmp.ne.s32.totalorder %s307, %s310
    %p319 = scmp.eq.s32.totalorder %s24, 1
    %p320 = por %p318, %p319
    %p321 = scmp.ne.s32.totalorder %s310, %s311
    %p322 = scmp.eq.s32.totalorder %s24, 0
    %p323 = por %p321, %p322
    %p324 = scmp.ne.s32.totalorder %s310, %s311
    %p325 = scmp.eq.s32.totalorder %s25, 1
    %p326 = por %p324, %p325
    %p328 = scmp.ne.s32.totalorder %s311, %s327
    %p329 = scmp.eq.s32.totalorder %s25, 0
    %p330 = por %p328, %p329
    %p331 = scmp.le.s32.totalorder 1, %s19
    %p332 = scmp.lt.s32.totalorder %s19, 3
    %p333 = pnand %p331, %p332
    %p334 = pneg %p333
    // Predicated region
    $region9: #{deno_mae_forward.16} parent=5 // pred_check
      _
    $region10: #{deno_mae_forward.16} parent=5 // pred_check_branch
      %336 = sbr.rel (%p333) target = $region12
    $region11: #{deno_mae_forward.16} parent=5 // pred_region
      %s337 = ssub.s32 %s19, 1
      // Predicated region
      $region13: #{deno_mae_forward.16} parent=11 // pred_check
        %p338 = pneg %p66
      $region14: #{deno_mae_forward.16} parent=11 // pred_check_branch
        %340 = sbr.rel (%p338) target = $region16
      $region15: #{deno_mae_forward.16} parent=11 // pred_region
        _
      $region16: #{deno_mae_forward.16} parent=11 // pred_fallthru
        _
      // Predicated region
      $region17: #{deno_mae_forward.16} parent=11 // pred_check
        %p341 = pneg %p87
      $region18: #{deno_mae_forward.16} parent=11 // pred_check_branch
        %343 = sbr.rel (%p341) target = $region20
      $region19: #{deno_mae_forward.16} parent=11 // pred_region
        _
      $region20: #{deno_mae_forward.16} parent=11 // pred_fallthru
        _
      // Predicated region
      $region21: #{deno_mae_forward.16} parent=11 // pred_check
        %p344 = pneg %p108
      $region22: #{deno_mae_forward.16} parent=11 // pred_check_branch
        %346 = sbr.rel (%p344) target = $region24
      $region23: #{deno_mae_forward.16} parent=11 // pred_region
        _
      $region24: #{deno_mae_forward.16} parent=11 // pred_fallthru
        _
      // Predicated region
      $region25: #{deno_mae_forward.16} parent=11 // pred_check
        %p347 = pneg %p129
      $region26: #{deno_mae_forward.16} parent=11 // pred_check_branch
        %349 = sbr.rel (%p347) target = $region28
      $region27: #{deno_mae_forward.16} parent=11 // pred_region
        _
      $region28: #{deno_mae_forward.16} parent=11 // pred_fallthru
        _
      // Predicated region
      $region29: #{deno_mae_forward.16} parent=11 // pred_check
        %p350 = pneg %p150
      $region30: #{deno_mae_forward.16} parent=11 // pred_check_branch
        %352 = sbr.rel (%p350) target = $region32
      $region31: #{deno_mae_forward.16} parent=11 // pred_region
        _
      $region32: #{deno_mae_forward.16} parent=11 // pred_fallthru
        _
      // Predicated region
      $region33: #{deno_mae_forward.16} parent=11 // pred_check
        %p353 = pneg %p171
      $region34: #{deno_mae_forward.16} parent=11 // pred_check_branch
        %355 = sbr.rel (%p353) target = $region36
      $region35: #{deno_mae_forward.16} parent=11 // pred_region
        _
      $region36: #{deno_mae_forward.16} parent=11 // pred_fallthru
        _
      // Predicated region
      $region37: #{deno_mae_forward.16} parent=11 // pred_check
        %p356 = pneg %p192
      $region38: #{deno_mae_forward.16} parent=11 // pred_check_branch
        %358 = sbr.rel (%p356) target = $region40
      $region39: #{deno_mae_forward.16} parent=11 // pred_region
        _
      $region40: #{deno_mae_forward.16} parent=11 // pred_fallthru
        _
      // Predicated region
      $region41: #{deno_mae_forward.16} parent=11 // pred_check
        %p359 = pneg %p213
      $region42: #{deno_mae_forward.16} parent=11 // pred_check_branch
        %361 = sbr.rel (%p359) target = $region44
      $region43: #{deno_mae_forward.16} parent=11 // pred_region
        _
      $region44: #{deno_mae_forward.16} parent=11 // pred_fallthru
        _
      // Predicated region
      $region45: #{deno_mae_forward.16} parent=11 // pred_check
        %p362 = pneg %p234
      $region46: #{deno_mae_forward.16} parent=11 // pred_check_branch
        %364 = sbr.rel (%p362) target = $region48
      $region47: #{deno_mae_forward.16} parent=11 // pred_region
        _
      $region48: #{deno_mae_forward.16} parent=11 // pred_fallthru
        _
      // Predicated region
      $region49: #{deno_mae_forward.16} parent=11 // pred_check
        %p365 = pneg %p255
      $region50: #{deno_mae_forward.16} parent=11 // pred_check_branch
        %367 = sbr.rel (%p365) target = $region52
      $region51: #{deno_mae_forward.16} parent=11 // pred_region
        _
      $region52: #{deno_mae_forward.16} parent=11 // pred_fallthru
        _
      // Predicated region
      $region53: #{deno_mae_forward.16} parent=11 // pred_check
        %p368 = pneg %p276
      $region54: #{deno_mae_forward.16} parent=11 // pred_check_branch
        %370 = sbr.rel (%p368) target = $region56
      $region55: #{deno_mae_forward.16} parent=11 // pred_region
        _
      $region56: #{deno_mae_forward.16} parent=11 // pred_fallthru
        _
      // Predicated region
      $region57: #{deno_mae_forward.16} parent=11 // pred_check
        %p371 = pneg %p297
      $region58: #{deno_mae_forward.16} parent=11 // pred_check_branch
        %373 = sbr.rel (%p371) target = $region60
      $region59: #{deno_mae_forward.16} parent=11 // pred_region
        _
      $region60: #{deno_mae_forward.16} parent=11 // pred_fallthru
        _
    $region12: #{deno_mae_forward.16} parent=5 // pred_fallthru
      _
    %p374 = scmp.lt.s32.totalorder %s19, 2
    // Predicated region
    $region61: #{deno_mae_forward.16} parent=5 // pred_check
      %p375 = pneg %p374
    $region62: #{deno_mae_forward.16} parent=5 // pred_check_branch
      %377 = sbr.rel (%p375) target = $region64
    $region63: #{deno_mae_forward.16} parent=5 // pred_region
      // Predicated region
      $region65: #{deno_mae_forward.16} parent=63 // pred_check
        %p378 = pneg %p39
      $region66: #{deno_mae_forward.16} parent=63 // pred_check_branch
        %380 = sbr.rel (%p378) target = $region68
      $region67: #{deno_mae_forward.16} parent=63 // pred_region
        %p381 = scmp.lt.s32.totalorder %s19, 1
        %s382 = scalar_select %p381, %s19, 1
        %s383 = smul.addr %s382, 4
        %s384 = scalar_lea.vmem %s0, %s383
      $region68: #{deno_mae_forward.16} parent=63 // pred_fallthru
        _
    $region64: #{deno_mae_forward.16} parent=5 // pred_fallthru
      _
    %p385 = scmp.le.s32.totalorder 1, %s19
    %p386 = scmp.lt.s32.totalorder %s19, 3
    %p387 = pnand %p385, %p386
    %p388 = pneg %p387
    // Predicated region
    $region69: #{deno_mae_forward.16} parent=5 // pred_check
      _
    $region70: #{deno_mae_forward.16} parent=5 // pred_check_branch
      %390 = sbr.rel (%p387) target = $region72
    $region71: #{deno_mae_forward.16} parent=5 // pred_region
      %s391 = ssub.s32 %s19, 1
      %p392 = scmp.lt.s32.totalorder %s24, 1
      %s393 = scalar_select %p392, %s24, 1
      %s394 = smul.addr %s393, 4
      %s395 = scalar_lea.vmem %s0, %s394
      %p396 = pneg %p45
      %p397 = pneg %p42
      %p398 = pneg %p66
      %p399 = pneg %p63
      %p400 = pneg %p87
      %p401 = pneg %p84
      %p402 = pneg %p108
      %p403 = pneg %p105
      %p404 = pneg %p129
      %p405 = pneg %p126
      %p406 = pneg %p150
      %p407 = pneg %p147
      %p408 = pneg %p171
      %p409 = pneg %p168
      %p410 = pneg %p192
      %p411 = pneg %p189
      %p412 = pneg %p213
      %p413 = pneg %p210
      %p414 = pneg %p234
      %p415 = pneg %p231
      %p416 = pneg %p255
      %p417 = pneg %p252
      %p418 = pneg %p276
      %p419 = pneg %p273
      %p420 = pneg %p297
      %p421 = pneg %p294
      %p422 = pneg %p323
      %p423 = pneg %p320
      %p424 = scmp.lt.s32.totalorder %s24, 1
      %s425 = scalar_select %p424, %s24, 1
      %s426 = smul.addr %s425, 4
      %s427 = scalar_lea.vmem %s13, %s426
      %p428 = scmp.lt.s32.totalorder %s24, 1
      %s429 = scalar_select %p428, %s24, 1
      %s430 = smul.addr %s429, 4
      %s431 = scalar_lea.vmem %s0, %s430
      %p432 = scmp.lt.s32.totalorder %s24, 1
      %s433 = scalar_select %p432, %s24, 1
      %s434 = smul.addr %s433, 4
      %s435 = scalar_lea.vmem %s13, %s434
      %v437 = vld [vmem:[%s431] sm:$0xf]
      %v438 = vld [vmem:[%s1] sm:$0x1]
      %v439 = vld [vmem:[%s2] sm:$0x1]
      %vm440 = vcmask 257024
      %v441 = vsel %vm440, %v437, 0.0
      %442 = vadd.xlane.f32.xlu0 %v441
      %v443 = vpop.xlane.xlu0 %442
      %v444 = vrcp.pop 32.0
      %v445 = vmul.f32 %v443, %v444
      %v446 = vsub.f32 %v437, %v445
      %v447 = vmul.f32 %v446, %v446
      %v448 = vsel %vm440, %v447, 0.0
      %449 = vadd.xlane.f32.xlu0 %v448
      %v450 = vpop.xlane.xlu0 %449
      %v451 = vmul.f32 %v450, %v444
      %v452 = vadd.f32 %v451, 1e-05
      %v453 = vrsqrt.pop %v452
      %v454 = vmul.f32 %v446, %v453
      %v456 = vlaneseq
      %v457 = vshrl.u32 %v456, 7
      %v458 = vsub.s32 0, %v457
      %v459 = vrot.slane %v438, %v458
      %v461 = vmul.f32 %v454, %v459
      %v463 = vlaneseq
      %v464 = vshrl.u32 %v463, 7
      %v465 = vsub.s32 0, %v464
      %v466 = vrot.slane %v439, %v465
      %v468 = vadd.f32 %v461, %v466
      %v469 = vpack.c.bf16 %v468, %v468
      %v470 = vld [vmem:[%s3] sm:$0xf]
      %v471 = vld [vmem:[%s3 + $0x4] sm:$0xf]
      %v472 = vld [vmem:[%s3 + $0x8] sm:$0xf]
      %v473 = vld [vmem:[%s3 + $0xc] sm:$0xf]
      %v474 = vld [vmem:[%s4] sm:$0x1]
      %v476 = vlaneseq
      %v477 = vshrl.u32 %v476, 7
      %v478 = vsub.s32 0, %v477
      %v479 = vrot.slane %v474, %v478
      %v485 = vunpack.c.l.b16 %v470
      %v486 = vunpack.c.l.b16 %v471
      %v487 = vunpack.c.l.b16 %v472
      %v488 = vunpack.c.l.b16 %v473
      %v489 = vpack.c.b16 %v486, %v485
      %v490 = vpack.c.b16 %v488, %v487
      %vm493 = vcmask 261120
      %v495 = vsel %vm493, %v469, 0
      %497 = vmatprep.subr.bf16.mxu0 0
      %498 = vmatpush1.bf16.msra.mxu0 %v489
      %499 = vmatprep.subr.bf16.mxu0 0
      %500 = vmatpush1.bf16.msra.mxu0 %v490
      %501 = vmatprep.subr.bf16.mxu0 0
      %502 = vmatpush1.bf16.msra.mxu0 0
      %503 = vmatprep.subr.bf16.mxu0 0
      %504 = vmatpush1.bf16.msra.mxu0 0
      %505 = vmatprep.subr.bf16.mxu0 0
      %506 = vmatpush1.bf16.msra.mxu0 0
      %507 = vmatprep.subr.bf16.mxu0 0
      %508 = vmatpush1.bf16.msra.mxu0 0
      %509 = vmatprep.subr.bf16.mxu0 0
      %510 = vmatpush1.bf16.msra.mxu0 0
      %511 = vmatprep.subr.bf16.mxu0 0
      %512 = vmatpush1.bf16.msra.mxu0 0
      %513 = vmatprep.subr.bf16.mxu0 0
      %514 = vmatpush1.bf16.msra.mxu0 0
      %515 = vmatprep.subr.bf16.mxu0 0
      %516 = vmatpush1.bf16.msra.mxu0 0
      %517 = vmatprep.subr.bf16.mxu0 0
      %518 = vmatpush1.bf16.msra.mxu0 0
      %519 = vmatprep.subr.bf16.mxu0 0
      %520 = vmatpush1.bf16.msra.mxu0 0
      %521 = vmatprep.subr.bf16.mxu0 0
      %522 = vmatpush1.bf16.msra.mxu0 0
      %523 = vmatprep.subr.bf16.mxu0 0
      %524 = vmatpush1.bf16.msra.mxu0 0
      %525 = vmatprep.subr.bf16.mxu0 0
      %526 = vmatpush1.bf16.msra.mxu0 0
      %527 = vmatprep.subr.bf16.mxu0 0
      %528 = vmatpush1.bf16.msra.mxu0 0
      %529 = vmatprep.mubr.bf16.mxu0 0
      %530 = vmatmul.mubr.bf16.gmra.mrb[0].mxu0 %v495
      %v531 = vpop.f32.mrb[0].mxu0
      %v532 = vadd.f32 %v479, %v531
      %v533 = vpop.f32.mrb[0].mxu0
      %v534 = vpop.f32.mrb[0].mxu0
      %v535 = vpop.f32.mrb[0].mxu0
      %536 = vdwg.mxu0
      %v537 = vpack.c.bf16 %v532, %v532
      %539 = vrot.lane.b32.xlu0 %v537, 96
      %v540 = vpop.permute.xlu0 %539
      %vm541 = vcmask 64512
      %v543 = vsel %vm541, %v537, 0
      %v546 = vsel %vm541, %v540, 0
      %548 = vmatprep.subr.bf16.mxu0 0
      %549 = vmatpush1.bf16.xpose.msra.mxu0 %v546
      %550 = vmatprep.subr.bf16.mxu0 0
      %551 = vmatpush1.bf16.xpose.msra.mxu0 0
      %552 = vmatprep.subr.bf16.mxu0 0
      %553 = vmatpush1.bf16.xpose.msra.mxu0 0
      %554 = vmatprep.subr.bf16.mxu0 0
      %555 = vmatpush1.bf16.xpose.msra.mxu0 0
      %556 = vmatprep.subr.bf16.mxu0 0
      %557 = vmatpush1.bf16.xpose.msra.mxu0 0
      %558 = vmatprep.subr.bf16.mxu0 0
      %559 = vmatpush1.bf16.xpose.msra.mxu0 0
      %560 = vmatprep.subr.bf16.mxu0 0
      %561 = vmatpush1.bf16.xpose.msra.mxu0 0
      %562 = vmatprep.subr.bf16.mxu0 0
      %563 = vmatpush1.bf16.xpose.msra.mxu0 0
      %564 = vmatprep.subr.bf16.mxu0 0
      %565 = vmatpush1.bf16.xpose.msra.mxu0 0
      %566 = vmatprep.subr.bf16.mxu0 0
      %567 = vmatpush1.bf16.xpose.msra.mxu0 0
      %568 = vmatprep.subr.bf16.mxu0 0
      %569 = vmatpush1.bf16.xpose.msra.mxu0 0
      %570 = vmatprep.subr.bf16.mxu0 0
      %571 = vmatpush1.bf16.xpose.msra.mxu0 0
      %572 = vmatprep.subr.bf16.mxu0 0
      %573 = vmatpush1.bf16.xpose.msra.mxu0 0
      %574 = vmatprep.subr.bf16.mxu0 0
      %575 = vmatpush1.bf16.xpose.msra.mxu0 0
      %576 = vmatprep.subr.bf16.mxu0 0
      %577 = vmatpush1.bf16.xpose.msra.mxu0 0
      %578 = vmatprep.subr.bf16.mxu0 0
      %579 = vmatpush1.bf16.xpose.msra.mxu0 0
      %580 = vmatprep.mubr.bf16.mxu0 0
      %581 = vmatmul.mubr.bf16.gmra.mrb[0].mxu0 %v543
      %v582 = vpop.f32.mrb[0].mxu0
      %v583 = vadd.f32 0.0, %v582
      %v584 = vpop.f32.mrb[0].mxu0
      %v585 = vpop.f32.mrb[0].mxu0
      %v586 = vpop.f32.mrb[0].mxu0
      %587 = vdwg.mxu0
      %v588 = vmul.f32 %v583, 0.35355338
      %vm589 = vcmask 27648
      %v590 = vsel %vm589, %v588, -inf
      %591 = vmax.xlane.f32.xlu0 %v590
      %v592 = vpop.xlane.xlu0 %591
      %v593 = vsub.f32 %v588, %v592
      %v594 = vmul.f32 %v593, 1.442695
      %v595 = vpow.pop %v594
      %v596 = vsel %vm589, %v595, 0.0
      %597 = vadd.xlane.f32.xlu0 %v596
      %v598 = vpop.xlane.xlu0 %597
      %v599 = vrcp.pop %v598
      %v600 = vmul.f32 %v595, %v599
      %v601 = vpack.c.bf16 %v600, %v600
      %602 = vrot.lane.b32.xlu0 %v537, 64
      %v603 = vpop.permute.xlu0 %602
      %vm604 = vcmask 31744
      %v606 = vsel %vm604, %v601, 0
      %vm608 = vcmask 1041408
      %v610 = vsel %vm608, %v603, 0
      %612 = vmatprep.subr.bf16.mxu0 0
      %613 = vmatpush1.bf16.msra.mxu0 %v610
      %614 = vmatprep.subr.bf16.mxu0 0
      %615 = vmatpush1.bf16.msra.mxu0 0
      %616 = vmatprep.subr.bf16.mxu0 0
      %617 = vmatpush1.bf16.msra.mxu0 0
      %618 = vmatprep.subr.bf16.mxu0 0
      %619 = vmatpush1.bf16.msra.mxu0 0
      %620 = vmatprep.subr.bf16.mxu0 0
      %621 = vmatpush1.bf16.msra.mxu0 0
      %622 = vmatprep.subr.bf16.mxu0 0
      %623 = vmatpush1.bf16.msra.mxu0 0
      %624 = vmatprep.subr.bf16.mxu0 0
      %625 = vmatpush1.bf16.msra.mxu0 0
      %626 = vmatprep.subr.bf16.mxu0 0
      %627 = vmatpush1.bf16.msra.mxu0 0
      %628 = vmatprep.subr.bf16.mxu0 0
      %629 = vmatpush1.bf16.msra.mxu0 0
      %630 = vmatprep.subr.bf16.mxu0 0
      %631 = vmatpush1.bf16.msra.mxu0 0
      %632 = vmatprep.subr.bf16.mxu0 0
      %633 = vmatpush1.bf16.msra.mxu0 0
      %634 = vmatprep.subr.bf16.mxu0 0
      %635 = vmatpush1.bf16.msra.mxu0 0
      %636 = vmatprep.subr.bf16.mxu0 0
      %637 = vmatpush1.bf16.msra.mxu0 0
      %638 = vmatprep.subr.bf16.mxu0 0
      %639 = vmatpush1.bf16.msra.mxu0 0
      %640 = vmatprep.subr.bf16.mxu0 0
      %641 = vmatpush1.bf16.msra.mxu0 0
      %642 = vmatprep.subr.bf16.mxu0 0
      %643 = vmatpush1.bf16.msra.mxu0 0
      %644 = vmatprep.mubr.bf16.mxu0 0
      %645 = vmatmul.mubr.bf16.gmra.mrb[0].mxu0 %v606
      %v646 = vpop.f32.mrb[0].mxu0
      %v647 = vadd.f32 0.0, %v646
      %v648 = vpop.f32.mrb[0].mxu0
      %v649 = vpop.f32.mrb[0].mxu0
      %v650 = vpop.f32.mrb[0].mxu0
      %651 = vdwg.mxu0
      %652 = vrot.lane.b32.xlu0 %v537, 120
      %v653 = vpop.permute.xlu0 %652
      %654 = vrot.lane.b32.xlu0 %v537, 88
      %v655 = vpop.permute.xlu0 %654
      %v657 = vsel %vm541, %v653, 0
      %v660 = vsel %vm541, %v655, 0
      %662 = vmatprep.subr.bf16.mxu0 0
      %663 = vmatpush1.bf16.xpose.msra.mxu0 %v660
      %664 = vmatprep.subr.bf16.mxu0 0
      %665 = vmatpush1.bf16.xpose.msra.mxu0 0
      %666 = vmatprep.subr.bf16.mxu0 0
      %667 = vmatpush1.bf16.xpose.msra.mxu0 0
      %668 = vmatprep.subr.bf16.mxu0 0
      %669 = vmatpush1.bf16.xpose.msra.mxu0 0
      %670 = vmatprep.subr.bf16.mxu0 0
      %671 = vmatpush1.bf16.xpose.msra.mxu0 0
      %672 = vmatprep.subr.bf16.mxu0 0
      %673 = vmatpush1.bf16.xpose.msra.mxu0 0
      %674 = vmatprep.subr.bf16.mxu0 0
      %675 = vmatpush1.bf16.xpose.msra.mxu0 0
      %676 = vmatprep.subr.bf16.mxu0 0
      %677 = vmatpush1.bf16.xpose.msra.mxu0 0
      %678 = vmatprep.subr.bf16.mxu0 0
      %679 = vmatpush1.bf16.xpose.msra.mxu0 0
      %680 = vmatprep.subr.bf16.mxu0 0
      %681 = vmatpush1.bf16.xpose.msra.mxu0 0
      %682 = vmatprep.subr.bf16.mxu0 0
      %683 = vmatpush1.bf16.xpose.msra.mxu0 0
      %684 = vmatprep.subr.bf16.mxu0 0
      %685 = vmatpush1.bf16.xpose.msra.mxu0 0
      %686 = vmatprep.subr.bf16.mxu0 0
      %687 = vmatpush1.bf16.xpose.msra.mxu0 0
      %688 = vmatprep.subr.bf16.mxu0 0
      %689 = vmatpush1.bf16.xpose.msra.mxu0 0
      %690 = vmatprep.subr.bf16.mxu0 0
      %691 = vmatpush1.bf16.xpose.msra.mxu0 0
      %692 = vmatprep.subr.bf16.mxu0 0
      %693 = vmatpush1.bf16.xpose.msra.mxu0 0
      %694 = vmatprep.mubr.bf16.mxu0 0
      %695 = vmatmul.mubr.bf16.gmra.mrb[0].mxu0 %v657
      %v696 = vpop.f32.mrb[0].mxu0
      %v697 = vadd.f32 0.0, %v696
      %v698 = vpop.f32.mrb[0].mxu0
      %v699 = vpop.f32.mrb[0].mxu0
      %v700 = vpop.f32.mrb[0].mxu0
      %701 = vdwg.mxu0
      %v702 = vmul.f32 %v697, 0.35355338
      %v703 = vsel %vm589, %v702, -inf
      %704 = vmax.xlane.f32.xlu0 %v703
      %v705 = vpop.xlane.xlu0 %704
      %v706 = vsub.f32 %v702, %v705
      %v707 = vmul.f32 %v706, 1.442695
      %v708 = vpow.pop %v707
      %v709 = vsel %vm589, %v708, 0.0
      %710 = vadd.xlane.f32.xlu0 %v709
      %v711 = vpop.xlane.xlu0 %710
      %v712 = vrcp.pop %v711
      %v713 = vmul.f32 %v708, %v712
      %v714 = vpack.c.bf16 %v713, %v713
      %715 = vrot.lane.b32.xlu0 %v537, 56
      %v716 = vpop.permute.xlu0 %715
      %v718 = vsel %vm604, %v714, 0
      %v721 = vsel %vm608, %v716, 0
      %723 = vmatprep.subr.bf16.mxu0 0
      %724 = vmatpush1.bf16.msra.mxu0 %v721
      %725 = vmatprep.subr.bf16.mxu0 0
      %726 = vmatpush1.bf16.msra.mxu0 0
      %727 = vmatprep.subr.bf16.mxu0 0
      %728 = vmatpush1.bf16.msra.mxu0 0
      %729 = vmatprep.subr.bf16.mxu0 0
      %730 = vmatpush1.bf16.msra.mxu0 0
      %731 = vmatprep.subr.bf16.mxu0 0
      %732 = vmatpush1.bf16.msra.mxu0 0
      %733 = vmatprep.subr.bf16.mxu0 0
      %734 = vmatpush1.bf16.msra.mxu0 0
      %735 = vmatprep.subr.bf16.mxu0 0
      %736 = vmatpush1.bf16.msra.mxu0 0
      %737 = vmatprep.subr.bf16.mxu0 0
      %738 = vmatpush1.bf16.msra.mxu0 0
      %739 = vmatprep.subr.bf16.mxu0 0
      %740 = vmatpush1.bf16.msra.mxu0 0
      %741 = vmatprep.subr.bf16.mxu0 0
      %742 = vmatpush1.bf16.msra.mxu0 0
      %743 = vmatprep.subr.bf16.mxu0 0
      %744 = vmatpush1.bf16.msra.mxu0 0
      %745 = vmatprep.subr.bf16.mxu0 0
      %746 = vmatpush1.bf16.msra.mxu0 0
      %747 = vmatprep.subr.bf16.mxu0 0
      %748 = vmatpush1.bf16.msra.mxu0 0
      %749 = vmatprep.subr.bf16.mxu0 0
      %750 = vmatpush1.bf16.msra.mxu0 0
      %751 = vmatprep.subr.bf16.mxu0 0
      %752 = vmatpush1.bf16.msra.mxu0 0
      %753 = vmatprep.subr.bf16.mxu0 0
      %754 = vmatpush1.bf16.msra.mxu0 0
      %755 = vmatprep.mubr.bf16.mxu0 0
      %756 = vmatmul.mubr.bf16.gmra.mrb[0].mxu0 %v718
      %v757 = vpop.f32.mrb[0].mxu0
      %v758 = vadd.f32 0.0, %v757
      %v759 = vpop.f32.mrb[0].mxu0
      %v760 = vpop.f32.mrb[0].mxu0
      %v761 = vpop.f32.mrb[0].mxu0
      %762 = vdwg.mxu0
      %763 = vrot.lane.b32.xlu0 %v537, 112
      %v764 = vpop.permute.xlu0 %763
      %765 = vrot.lane.b32.xlu0 %v537, 80
      %v766 = vpop.permute.xlu0 %765
      %v768 = vsel %vm541, %v764, 0
      %v771 = vsel %vm541, %v766, 0
      %773 = vmatprep.subr.bf16.mxu0 0
      %774 = vmatpush1.bf16.xpose.msra.mxu0 %v771
      %775 = vmatprep.subr.bf16.mxu0 0
      %776 = vmatpush1.bf16.xpose.msra.mxu0 0
      %777 = vmatprep.subr.bf16.mxu0 0
      %778 = vmatpush1.bf16.xpose.msra.mxu0 0
      %779 = vmatprep.subr.bf16.mxu0 0
      %780 = vmatpush1.bf16.xpose.msra.mxu0 0
      %781 = vmatprep.subr.bf16.mxu0 0
      %782 = vmatpush1.bf16.xpose.msra.mxu0 0
      %783 = vmatprep.subr.bf16.mxu0 0
      %784 = vmatpush1.bf16.xpose.msra.mxu0 0
      %785 = vmatprep.subr.bf16.mxu0 0
      %786 = vmatpush1.bf16.xpose.msra.mxu0 0
      %787 = vmatprep.subr.bf16.mxu0 0
      %788 = vmatpush1.bf16.xpose.msra.mxu0 0
      %789 = vmatprep.subr.bf16.mxu0 0
      %790 = vmatpush1.bf16.xpose.msra.mxu0 0
      %791 = vmatprep.subr.bf16.mxu0 0
      %792 = vmatpush1.bf16.xpose.msra.mxu0 0
      %793 = vmatprep.subr.bf16.mxu0 0
      %794 = vmatpush1.bf16.xpose.msra.mxu0 0
      %795 = vmatprep.subr.bf16.mxu0 0
      %796 = vmatpush1.bf16.xpose.msra.mxu0 0
      %797 = vmatprep.subr.bf16.mxu0 0
      %798 = vmatpush1.bf16.xpose.msra.mxu0 0
      %799 = vmatprep.subr.bf16.mxu0 0
      %800 = vmatpush1.bf16.xpose.msra.mxu0 0
      %801 = vmatprep.subr.bf16.mxu0 0
      %802 = vmatpush1.bf16.xpose.msra.mxu0 0
      %803 = vmatprep.subr.bf16.mxu0 0
      %804 = vmatpush1.bf16.xpose.msra.mxu0 0
      %805 = vmatprep.mubr.bf16.mxu0 0
      %806 = vmatmul.mubr.bf16.gmra.mrb[0].mxu0 %v768
      %v807 = vpop.f32.mrb[0].mxu0
      %v808 = vadd.f32 0.0, %v807
      %v809 = vpop.f32.mrb[0].mxu0
      %v810 = vpop.f32.mrb[0].mxu0
      %v811 = vpop.f32.mrb[0].mxu0
      %812 = vdwg.mxu0
      %v813 = vmul.f32 %v808, 0.35355338
      %v814 = vsel %vm589, %v813, -inf
      %815 = vmax.xlane.f32.xlu0 %v814
      %v816 = vpop.xlane.xlu0 %815
      %v817 = vsub.f32 %v813, %v816
      %v818 = vmul.f32 %v817, 1.442695
      %v819 = vpow.pop %v818
      %v820 = vsel %vm589, %v819, 0.0
      %821 = vadd.xlane.f32.xlu0 %v820
      %v822 = vpop.xlane.xlu0 %821
      %v823 = vrcp.pop %v822
      %v824 = vmul.f32 %v819, %v823
      %v825 = vpack.c.bf16 %v824, %v824
      %826 = vrot.lane.b32.xlu0 %v537, 48
      %v827 = vpop.permute.xlu0 %826
      %v829 = vsel %vm604, %v825, 0
      %v832 = vsel %vm608, %v827, 0
      %834 = vmatprep.subr.bf16.mxu0 0
      %835 = vmatpush1.bf16.msra.mxu0 %v832
      %836 = vmatprep.subr.bf16.mxu0 0
      %837 = vmatpush1.bf16.msra.mxu0 0
      %838 = vmatprep.subr.bf16.mxu0 0
      %839 = vmatpush1.bf16.msra.mxu0 0
      %840 = vmatprep.subr.bf16.mxu0 0
      %841 = vmatpush1.bf16.msra.mxu0 0
      %842 = vmatprep.subr.bf16.mxu0 0
      %843 = vmatpush1.bf16.msra.mxu0 0
      %844 = vmatprep.subr.bf16.mxu0 0
      %845 = vmatpush1.bf16.msra.mxu0 0
      %846 = vmatprep.subr.bf16.mxu0 0
      %847 = vmatpush1.bf16.msra.mxu0 0
      %848 = vmatprep.subr.bf16.mxu0 0
      %849 = vmatpush1.bf16.msra.mxu0 0
      %850 = vmatprep.subr.bf16.mxu0 0
      %851 = vmatpush1.bf16.msra.mxu0 0
      %852 = vmatprep.subr.bf16.mxu0 0
      %853 = vmatpush1.bf16.msra.mxu0 0
      %854 = vmatprep.subr.bf16.mxu0 0
      %855 = vmatpush1.bf16.msra.mxu0 0
      %856 = vmatprep.subr.bf16.mxu0 0
      %857 = vmatpush1.bf16.msra.mxu0 0
      %858 = vmatprep.subr.bf16.mxu0 0
      %859 = vmatpush1.bf16.msra.mxu0 0
      %860 = vmatprep.subr.bf16.mxu0 0
      %861 = vmatpush1.bf16.msra.mxu0 0
      %862 = vmatprep.subr.bf16.mxu0 0
      %863 = vmatpush1.bf16.msra.mxu0 0
      %864 = vmatprep.subr.bf16.mxu0 0
      %865 = vmatpush1.bf16.msra.mxu0 0
      %866 = vmatprep.mubr.bf16.mxu0 0
      %867 = vmatmul.mubr.bf16.gmra.mrb[0].mxu0 %v829
      %v868 = vpop.f32.mrb[0].mxu0
      %v869 = vadd.f32 0.0, %v868
      %v870 = vpop.f32.mrb[0].mxu0
      %v871 = vpop.f32.mrb[0].mxu0
      %v872 = vpop.f32.mrb[0].mxu0
      %873 = vdwg.mxu0
      %874 = vrot.lane.b32.xlu0 %v537, 104
      %v875 = vpop.permute.xlu0 %874
      %876 = vrot.lane.b32.xlu0 %v537, 72
      %v877 = vpop.permute.xlu0 %876
      %v879 = vsel %vm541, %v875, 0
      %v882 = vsel %vm541, %v877, 0
      %884 = vmatprep.subr.bf16.mxu0 0
      %885 = vmatpush1.bf16.xpose.msra.mxu0 %v882
      %886 = vmatprep.subr.bf16.mxu0 0
      %887 = vmatpush1.bf16.xpose.msra.mxu0 0
      %888 = vmatprep.subr.bf16.mxu0 0
      %889 = vmatpush1.bf16.xpose.msra.mxu0 0
      %890 = vmatprep.subr.bf16.mxu0 0
      %891 = vmatpush1.bf16.xpose.msra.mxu0 0
      %892 = vmatprep.subr.bf16.mxu0 0
      %893 = vmatpush1.bf16.xpose.msra.mxu0 0
      %894 = vmatprep.subr.bf16.mxu0 0
      %895 = vmatpush1.bf16.xpose.msra.mxu0 0
      %896 = vmatprep.subr.bf16.mxu0 0
      %897 = vmatpush1.bf16.xpose.msra.mxu0 0
      %898 = vmatprep.subr.bf16.mxu0 0
      %899 = vmatpush1.bf16.xpose.msra.mxu0 0
      %900 = vmatprep.subr.bf16.mxu0 0
      %901 = vmatpush1.bf16.xpose.msra.mxu0 0
      %902 = vmatprep.subr.bf16.mxu0 0
      %903 = vmatpush1.bf16.xpose.msra.mxu0 0
      %904 = vmatprep.subr.bf16.mxu0 0
      %905 = vmatpush1.bf16.xpose.msra.mxu0 0
      %906 = vmatprep.subr.bf16.mxu0 0
      %907 = vmatpush1.bf16.xpose.msra.mxu0 0
      %908 = vmatprep.subr.bf16.mxu0 0
      %909 = vmatpush1.bf16.xpose.msra.mxu0 0
      %910 = vmatprep.subr.bf16.mxu0 0
      %911 = vmatpush1.bf16.xpose.msra.mxu0 0
      %912 = vmatprep.subr.bf16.mxu0 0
      %913 = vmatpush1.bf16.xpose.msra.mxu0 0
      %914 = vmatprep.subr.bf16.mxu0 0
      %915 = vmatpush1.bf16.xpose.msra.mxu0 0
      %916 = vmatprep.mubr.bf16.mxu0 0
      %917 = vmatmul.mubr.bf16.gmra.mrb[0].mxu0 %v879
      %v918 = vpop.f32.mrb[0].mxu0
      %v919 = vadd.f32 0.0, %v918
      %v920 = vpop.f32.mrb[0].mxu0
      %v921 = vpop.f32.mrb[0].mxu0
      %v922 = vpop.f32.mrb[0].mxu0
      %923 = vdwg.mxu0
      %v924 = vmul.f32 %v919, 0.35355338
      %v925 = vsel %vm589, %v924, -inf
      %926 = vmax.xlane.f32.xlu0 %v925
      %v927 = vpop.xlane.xlu0 %926
      %v928 = vsub.f32 %v924, %v927
      %v929 = vmul.f32 %v928, 1.442695
      %v930 = vpow.pop %v929
      %v931 = vsel %vm589, %v930, 0.0
      %932 = vadd.xlane.f32.xlu0 %v931
      %v933 = vpop.xlane.xlu0 %932
      %v934 = vrcp.pop %v933
      %v935 = vmul.f32 %v930, %v934
      %v936 = vpack.c.bf16 %v935, %v935
      %937 = vrot.lane.b32.xlu0 %v537, 40
      %v938 = vpop.permute.xlu0 %937
      %v940 = vsel %vm604, %v936, 0
      %v943 = vsel %vm608, %v938, 0
      %945 = vmatprep.subr.bf16.mxu0 0
      %946 = vmatpush1.bf16.msra.mxu0 %v943
      %947 = vmatprep.subr.bf16.mxu0 0
      %948 = vmatpush1.bf16.msra.mxu0 0
      %949 = vmatprep.subr.bf16.mxu0 0
      %950 = vmatpush1.bf16.msra.mxu0 0
      %951 = vmatprep.subr.bf16.mxu0 0
      %952 = vmatpush1.bf16.msra.mxu0 0
      %953 = vmatprep.subr.bf16.mxu0 0
      %954 = vmatpush1.bf16.msra.mxu0 0
      %955 = vmatprep.subr.bf16.mxu0 0
      %956 = vmatpush1.bf16.msra.mxu0 0
      %957 = vmatprep.subr.bf16.mxu0 0
      %958 = vmatpush1.bf16.msra.mxu0 0
      %959 = vmatprep.subr.bf16.mxu0 0
      %960 = vmatpush1.bf16.msra.mxu0 0
      %961 = vmatprep.subr.bf16.mxu0 0
      %962 = vmatpush1.bf16.msra.mxu0 0
      %963 = vmatprep.subr.bf16.mxu0 0
      %964 = vmatpush1.bf16.msra.mxu0 0
      %965 = vmatprep.subr.bf16.mxu0 0
      %966 = vmatpush1.bf16.msra.mxu0 0
      %967 = vmatprep.subr.bf16.mxu0 0
      %968 = vmatpush1.bf16.msra.mxu0 0
      %969 = vmatprep.subr.bf16.mxu0 0
      %970 = vmatpush1.bf16.msra.mxu0 0
      %971 = vmatprep.subr.bf16.mxu0 0
      %972 = vmatpush1.bf16.msra.mxu0 0
      %973 = vmatprep.subr.bf16.mxu0 0
      %974 = vmatpush1.bf16.msra.mxu0 0
      %975 = vmatprep.subr.bf16.mxu0 0
      %976 = vmatpush1.bf16.msra.mxu0 0
      %977 = vmatprep.mubr.bf16.mxu0 0
      %978 = vmatmul.mubr.bf16.gmra.mrb[0].mxu0 %v940
      %v979 = vpop.f32.mrb[0].mxu0
      %v980 = vadd.f32 0.0, %v979
      %v981 = vpop.f32.mrb[0].mxu0
      %v982 = vpop.f32.mrb[0].mxu0
      %v983 = vpop.f32.mrb[0].mxu0
      %984 = vdwg.mxu0
      %986 = vrot.lane.b32.xlu0 %v758, 8
      %v987 = vpop.permute.xlu0 %986
      %990 = vrot.lane.b32.xlu0 %v869, 16
      %v991 = vpop.permute.xlu0 %990
      %994 = vrot.lane.b32.xlu0 %v980, 24
      %v995 = vpop.permute.xlu0 %994
      %v997 = vsel %vm541, %v647, %v987
      %vm998 = vcmask 130048
      %v999 = vsel %vm998, %v997, %v991
      %vm1000 = vcmask 195584
      %v1001 = vsel %vm1000, %v999, %v995
      %v1002 = vpack.c.bf16 %v1001, %v1001
      %v1003 = vld [vmem:[%s5] sm:$0xf]
      %v1004 = vld [vmem:[%s5 + $0x4] sm:$0xf]
      %v1005 = vld [vmem:[%s5 + $0x8] sm:$0xf]
      %v1006 = vld [vmem:[%s5 + $0xc] sm:$0xf]
      %v1007 = vld [vmem:[%s6] sm:$0x1]
      %v1009 = vlaneseq
      %v1010 = vshrl.u32 %v1009, 7
      %v1011 = vsub.s32 0, %v1010
      %v1012 = vrot.slane %v1007, %v1011
      %v1018 = vunpack.c.l.b16 %v1003
      %v1019 = vunpack.c.l.b16 %v1004
      %v1020 = vunpack.c.l.b16 %v1005
      %v1021 = vunpack.c.l.b16 %v1006
      %v1022 = vpack.c.b16 %v1019, %v1018
      %v1023 = vpack.c.b16 %v1021, %v1020
      %v1027 = vsel %vm493, %v1002, 0
      %1029 = vmatprep.subr.bf16.mxu0 0
      %1030 = vmatpush1.bf16.msra.mxu0 %v1022
      %1031 = vmatprep.subr.bf16.mxu0 0
      %1032 = vmatpush1.bf16.msra.mxu0 %v1023
      %1033 = vmatprep.subr.bf16.mxu0 0
      %1034 = vmatpush1.bf16.msra.mxu0 0
      %1035 = vmatprep.subr.bf16.mxu0 0
      %1036 = vmatpush1.bf16.msra.mxu0 0
      %1037 = vmatprep.subr.bf16.mxu0 0
      %1038 = vmatpush1.bf16.msra.mxu0 0
      %1039 = vmatprep.subr.bf16.mxu0 0
      %1040 = vmatpush1.bf16.msra.mxu0 0
      %1041 = vmatprep.subr.bf16.mxu0 0
      %1042 = vmatpush1.bf16.msra.mxu0 0
      %1043 = vmatprep.subr.bf16.mxu0 0
      %1044 = vmatpush1.bf16.msra.mxu0 0
      %1045 = vmatprep.subr.bf16.mxu0 0
      %1046 = vmatpush1.bf16.msra.mxu0 0
      %1047 = vmatprep.subr.bf16.mxu0 0
      %1048 = vmatpush1.bf16.msra.mxu0 0
      %1049 = vmatprep.subr.bf16.mxu0 0
      %1050 = vmatpush1.bf16.msra.mxu0 0
      %1051 = vmatprep.subr.bf16.mxu0 0
      %1052 = vmatpush1.bf16.msra.mxu0 0
      %1053 = vmatprep.subr.bf16.mxu0 0
      %1054 = vmatpush1.bf16.msra.mxu0 0
      %1055 = vmatprep.subr.bf16.mxu0 0
      %1056 = vmatpush1.bf16.msra.mxu0 0
      %1057 = vmatprep.subr.bf16.mxu0 0
      %1058 = vmatpush1.bf16.msra.mxu0 0
      %1059 = vmatprep.subr.bf16.mxu0 0
      %1060 = vmatpush1.bf16.msra.mxu0 0
      %1061 = vmatprep.mubr.bf16.mxu0 0
      %1062 = vmatmul.mubr.bf16.gmra.mrb[0].mxu0 %v1027
      %v1063 = vpop.f32.mrb[0].mxu0
      %v1064 = vadd.f32 %v1012, %v1063
      %v1065 = vpop.f32.mrb[0].mxu0
      %v1066 = vpop.f32.mrb[0].mxu0
      %v1067 = vpop.f32.mrb[0].mxu0
      %1068 = vdwg.mxu0
      %v1069 = vadd.f32 %v437, %v1064
      %v1070 = vld [vmem:[%s7] sm:$0x1]
      %v1071 = vld [vmem:[%s8] sm:$0x1]
      %v1072 = vsel %vm440, %v1069, 0.0
      %1073 = vadd.xlane.f32.xlu0 %v1072
      %v1074 = vpop.xlane.xlu0 %1073
      %v1075 = vmul.f32 %v1074, %v444
      %v1076 = vsub.f32 %v1069, %v1075
      %v1077 = vmul.f32 %v1076, %v1076
      %v1078 = vsel %vm440, %v1077, 0.0
      %1079 = vadd.xlane.f32.xlu0 %v1078
      %v1080 = vpop.xlane.xlu0 %1079
      %v1081 = vmul.f32 %v1080, %v444
      %v1082 = vadd.f32 %v1081, 1e-05
      %v1083 = vrsqrt.pop %v1082
      %v1084 = vmul.f32 %v1076, %v1083
      %v1086 = vlaneseq
      %v1087 = vshrl.u32 %v1086, 7
      %v1088 = vsub.s32 0, %v1087
      %v1089 = vrot.slane %v1070, %v1088
      %v1091 = vmul.f32 %v1084, %v1089
      %v1093 = vlaneseq
      %v1094 = vshrl.u32 %v1093, 7
      %v1095 = vsub.s32 0, %v1094
      %v1096 = vrot.slane %v1071, %v1095
      %v1098 = vadd.f32 %v1091, %v1096
      %v1099 = vpack.c.bf16 %v1098, %v1098
      %v1100 = vld [vmem:[%s9] sm:$0xf]
      %v1101 = vld [vmem:[%s9 + $0x4] sm:$0xf]
      %v1102 = vld [vmem:[%s9 + $0x8] sm:$0xf]
      %v1103 = vld [vmem:[%s9 + $0xc] sm:$0xf]
      %v1104 = vld [vmem:[%s10] sm:$0x1]
      %v1106 = vlaneseq
      %v1107 = vshrl.u32 %v1106, 7
      %v1108 = vsub.s32 0, %v1107
      %v1109 = vrot.slane %v1104, %v1108
      %v1115 = vunpack.c.l.b16 %v1100
      %v1116 = vunpack.c.l.b16 %v1101
      %v1117 = vunpack.c.l.b16 %v1102
      %v1118 = vunpack.c.l.b16 %v1103
      %v1119 = vpack.c.b16 %v1116, %v1115
      %v1120 = vpack.c.b16 %v1118, %v1117
      %v1124 = vsel %vm493, %v1099, 0
      %1126 = vmatprep.subr.bf16.mxu0 0
      %1127 = vmatpush1.bf16.msra.mxu0 %v1119
      %1128 = vmatprep.subr.bf16.mxu0 0
      %1129 = vmatpush1.bf16.msra.mxu0 %v1120
      %1130 = vmatprep.subr.bf16.mxu0 0
      %1131 = vmatpush1.bf16.msra.mxu0 0
      %1132 = vmatprep.subr.bf16.mxu0 0
      %1133 = vmatpush1.bf16.msra.mxu0 0
      %1134 = vmatprep.subr.bf16.mxu0 0
      %1135 = vmatpush1.bf16.msra.mxu0 0
      %1136 = vmatprep.subr.bf16.mxu0 0
      %1137 = vmatpush1.bf16.msra.mxu0 0
      %1138 = vmatprep.subr.bf16.mxu0 0
      %1139 = vmatpush1.bf16.msra.mxu0 0
      %1140 = vmatprep.subr.bf16.mxu0 0
      %1141 = vmatpush1.bf16.msra.mxu0 0
      %1142 = vmatprep.subr.bf16.mxu0 0
      %1143 = vmatpush1.bf16.msra.mxu0 0
      %1144 = vmatprep.subr.bf16.mxu0 0
      %1145 = vmatpush1.bf16.msra.mxu0 0
      %1146 = vmatprep.subr.bf16.mxu0 0
      %1147 = vmatpush1.bf16.msra.mxu0 0
      %1148 = vmatprep.subr.bf16.mxu0 0
      %1149 = vmatpush1.bf16.msra.mxu0 0
      %1150 = vmatprep.subr.bf16.mxu0 0
      %1151 = vmatpush1.bf16.msra.mxu0 0
      %1152 = vmatprep.subr.bf16.mxu0 0
      %1153 = vmatpush1.bf16.msra.mxu0 0
      %1154 = vmatprep.subr.bf16.mxu0 0
      %1155 = vmatpush1.bf16.msra.mxu0 0
      %1156 = vmatprep.subr.bf16.mxu0 0
      %1157 = vmatpush1.bf16.msra.mxu0 0
      %1158 = vmatprep.mubr.bf16.mxu0 0
      %1159 = vmatmul.mubr.bf16.gmra.mrb[0].mxu0 %v1124
      %v1160 = vpop.f32.mrb[0].mxu0
      %v1161 = vadd.f32 %v1109, %v1160
      %v1162 = vpop.f32.mrb[0].mxu0
      %v1163 = vpop.f32.mrb[0].mxu0
      %v1164 = vpop.f32.mrb[0].mxu0
      %1165 = vdwg.mxu0
      %v1166 = vmul.f32 %v1161, %v1161
      %v1167 = vmul.f32 %v1161, %v1166
      %v1168 = vmul.f32 %v1167, 0.044715
      %v1169 = vadd.f32 %v1161, %v1168
      %v1170 = vmul.f32 %v1169, 0.7978846
      %v1171 = vtanh.pop %v1170
      %v1172 = vadd.f32 %v1171, 1.0
      %v1173 = vmul.f32 %v1172, 0.5
      %v1174 = vmul.f32 %v1161, %v1173
      %v1175 = vpack.c.bf16 %v1174, %v1174
      %v1176 = vld [vmem:[%s11] sm:$0xf]
      %v1177 = vld [vmem:[%s11 + $0x4] sm:$0xf]
      %v1178 = vld [vmem:[%s11 + $0x8] sm:$0xf]
      %v1179 = vld [vmem:[%s11 + $0xc] sm:$0xf]
      %v1180 = vld [vmem:[%s11 + $0x10] sm:$0xf]
      %v1181 = vld [vmem:[%s11 + $0x14] sm:$0xf]
      %v1182 = vld [vmem:[%s11 + $0x18] sm:$0xf]
      %v1183 = vld [vmem:[%s11 + $0x1c] sm:$0xf]
      %v1184 = vld [vmem:[%s11 + $0x20] sm:$0xf]
      %v1185 = vld [vmem:[%s11 + $0x24] sm:$0xf]
      %v1186 = vld [vmem:[%s11 + $0x28] sm:$0xf]
      %v1187 = vld [vmem:[%s11 + $0x2c] sm:$0xf]
      %v1188 = vld [vmem:[%s11 + $0x30] sm:$0xf]
      %v1189 = vld [vmem:[%s11 + $0x34] sm:$0xf]
      %v1190 = vld [vmem:[%s11 + $0x38] sm:$0xf]
      %v1191 = vld [vmem:[%s11 + $0x3c] sm:$0xf]
      %v1192 = vld [vmem:[%s12] sm:$0x1]
      %v1194 = vlaneseq
      %v1195 = vshrl.u32 %v1194, 7
      %v1196 = vsub.s32 0, %v1195
      %v1197 = vrot.slane %v1192, %v1196
      %v1215 = vunpack.c.l.b16 %v1176
      %v1216 = vunpack.c.l.b16 %v1177
      %v1217 = vunpack.c.l.b16 %v1178
      %v1218 = vunpack.c.l.b16 %v1179
      %v1219 = vunpack.c.l.b16 %v1180
      %v1220 = vunpack.c.l.b16 %v1181
      %v1221 = vunpack.c.l.b16 %v1182
      %v1222 = vunpack.c.l.b16 %v1183
      %v1223 = vunpack.c.l.b16 %v1184
      %v1224 = vunpack.c.l.b16 %v1185
      %v1225 = vunpack.c.l.b16 %v1186
      %v1226 = vunpack.c.l.b16 %v1187
      %v1227 = vunpack.c.l.b16 %v1188
      %v1228 = vunpack.c.l.b16 %v1189
      %v1229 = vunpack.c.l.b16 %v1190
      %v1230 = vunpack.c.l.b16 %v1191
      %v1231 = vpack.c.b16 %v1216, %v1215
      %v1232 = vpack.c.b16 %v1218, %v1217
      %v1233 = vpack.c.b16 %v1220, %v1219
      %v1234 = vpack.c.b16 %v1222, %v1221
      %v1235 = vpack.c.b16 %v1224, %v1223
      %v1236 = vpack.c.b16 %v1226, %v1225
      %v1237 = vpack.c.b16 %v1228, %v1227
      %v1238 = vpack.c.b16 %v1230, %v1229
      %1247 = vmatprep.subr.bf16.mxu0 0
      %1248 = vmatpush1.bf16.msra.mxu0 %v1231
      %1249 = vmatprep.subr.bf16.mxu0 0
      %1250 = vmatpush1.bf16.msra.mxu0 %v1232
      %1251 = vmatprep.subr.bf16.mxu0 0
      %1252 = vmatpush1.bf16.msra.mxu0 %v1233
      %1253 = vmatprep.subr.bf16.mxu0 0
      %1254 = vmatpush1.bf16.msra.mxu0 %v1234
      %1255 = vmatprep.subr.bf16.mxu0 0
      %1256 = vmatpush1.bf16.msra.mxu0 %v1235
      %1257 = vmatprep.subr.bf16.mxu0 0
      %1258 = vmatpush1.bf16.msra.mxu0 %v1236
      %1259 = vmatprep.subr.bf16.mxu0 0
      %1260 = vmatpush1.bf16.msra.mxu0 %v1237
      %1261 = vmatprep.subr.bf16.mxu0 0
      %1262 = vmatpush1.bf16.msra.mxu0 %v1238
      %1263 = vmatprep.subr.bf16.mxu0 0
      %1264 = vmatpush1.bf16.msra.mxu0 0
      %1265 = vmatprep.subr.bf16.mxu0 0
      %1266 = vmatpush1.bf16.msra.mxu0 0
      %1267 = vmatprep.subr.bf16.mxu0 0
      %1268 = vmatpush1.bf16.msra.mxu0 0
      %1269 = vmatprep.subr.bf16.mxu0 0
      %1270 = vmatpush1.bf16.msra.mxu0 0
      %1271 = vmatprep.subr.bf16.mxu0 0
      %1272 = vmatpush1.bf16.msra.mxu0 0
      %1273 = vmatprep.subr.bf16.mxu0 0
      %1274 = vmatpush1.bf16.msra.mxu0 0
      %1275 = vmatprep.subr.bf16.mxu0 0
      %1276 = vmatpush1.bf16.msra.mxu0 0
      %1277 = vmatprep.subr.bf16.mxu0 0
      %1278 = vmatpush1.bf16.msra.mxu0 0
      %1279 = vmatprep.mubr.bf16.mxu0 0
      %1280 = vmatmul.mubr.bf16.gmra.mrb[0].mxu0 %v1175
      %v1281 = vpop.f32.mrb[0].mxu0
      %v1282 = vadd.f32 %v1197, %v1281
      %v1283 = vpop.f32.mrb[0].mxu0
      %v1284 = vpop.f32.mrb[0].mxu0
      %v1285 = vpop.f32.mrb[0].mxu0
      %1286 = vdwg.mxu0
      %v1287 = vadd.f32 %v1069, %v1282
      %1288 = vst.msk [vmem:[%s435] sm:$0xf] %vm440, %v1287
      %p1289 = scmp.lt.s32.totalorder %s24, 1
      %s1290 = scalar_select %p1289, %s24, 1
      %s1291 = smul.addr %s1290, 4
      %s1292 = scalar_lea.vmem %s13, %s1291
      // Predicated region
      $region73: #{deno_mae_forward.16} parent=71 // pred_check
        %p1293 = pneg %p320
      $region74: #{deno_mae_forward.16} parent=71 // pred_check_branch
        %1295 = sbr.rel (%p1293) target = $region76
      $region75: #{deno_mae_forward.16} parent=71 // pred_region
        _
      $region76: #{deno_mae_forward.16} parent=71 // pred_fallthru
        _
    $region72: #{deno_mae_forward.16} parent=5 // pred_fallthru
      _
    %p1296 = scmp.le.s32.totalorder 2, %s19
    // Predicated region
    $region77: #{deno_mae_forward.16} parent=5 // pred_check
      %p1297 = pneg %p1296
    $region78: #{deno_mae_forward.16} parent=5 // pred_check_branch
      %1299 = sbr.rel (%p1297) target = $region80
    $region79: #{deno_mae_forward.16} parent=5 // pred_region
      %s1300 = ssub.s32 %s19, 2
      // Predicated region
      $region81: #{deno_mae_forward.16} parent=79 // pred_check
        %p1301 = pneg %p326
      $region82: #{deno_mae_forward.16} parent=79 // pred_check_branch
        %1303 = sbr.rel (%p1301) target = $region84
      $region83: #{deno_mae_forward.16} parent=79 // pred_region
        %p1304 = scmp.lt.s32.totalorder %s25, 1
        %s1305 = scalar_select %p1304, %s25, 1
        %s1306 = smul.addr %s1305, 4
        %s1307 = scalar_lea.vmem %s13, %s1306
      $region84: #{deno_mae_forward.16} parent=79 // pred_fallthru
        _
    $region80: #{deno_mae_forward.16} parent=5 // pred_fallthru
      _
  $region6: #{deno_mae_forward.16} parent=0 // loop_footer
    %s23 = sadd.s32 1, %s19
  $region7: #{deno_mae_forward.16} parent=0 // loop_footer_branch
    %18 = sbr.rel target = $region3
  $region8: #{deno_mae_forward.16} parent=0 // loop_exit
    _

</llo_original>
